<compile_context>
chip_gen: v6e
topology: v6e:2x2x1
jax: 0.10.0
libtpu: 0.0.40
codegen_flags: <defaults>
</compile_context>

<pallas_src>
import jax
import jax.numpy as jnp
from jax import lax
from jax.experimental import pallas as pl
from jax.experimental.pallas import tpu as pltpu

_LANE = 128
_ROWS_PER_IMG = 8          # row-block per image used for every activation inside the kernel
_DEFAULT_BATCH_TILE = 64


def _round_up(x, m):
    return (x + m - 1) // m * m


# ---------------------------------------------------------------------------
# Fused Pallas kernel
# ---------------------------------------------------------------------------
def _shift_rows_up(v, s):
    """out[i] = v[i + s] (rows that wrap land only in ignored junk positions)."""
    if s == 0:
        return v
    return jnp.concatenate([v[s:], v[:s]], axis=0)


def mynet_fused_kernel(x_ref, c1w_ref, c1b_ref, c2w_ref, c2b_ref,
                       f1w_ref, f1b_ref, f2w_ref, f2b_ref, f3w_ref, f3b_ref,
                       o_ref):
    """Entire MyNet forward for one batch tile.

    x_ref : (4, M, 128) f32   input rows phase-split mod 4, M = tb*8, cols = (w, cin)
    c1w/c2w : (5, 128, 256) bf16 banded conv weights (kh-indexed; dj=0/1 column halves)
    c1b/c2b : (1, 256) f32    conv biases tiled over output columns (per dj half)
    f1w : (5, 128, 128) bf16  fc1 split per conv2-output row (torch CHW flatten folded in)
    f2w/f3w : (128, 128) bf16; f?b : (1, 128) f32
    o_ref : (M, 128) f32      row b*8 of each image block = logits (cols 0..9 valid)
    """
    half = c1w_ref.shape[-1] // 2                       # 128: per-dj column block

    # ---- conv1 + bias + relu + 2x2 maxpool --------------------------------
    # 8 shifted input slabs cover all (output-phase, pool-di, kh) row offsets.
    x = [x_ref[a] for a in range(4)]                                       # (M,128) f32
    s_in = [_shift_rows_up(x[o & 3], o >> 2).astype(jnp.bfloat16) for o in range(8)]

    y_phase = []                                        # conv1 output, rows mod-2 phases
    for p in range(2):
        y = None
        for di in range(2):
            acc = None
            for kh in range(5):
                t = jnp.dot(s_in[2 * p + di + kh], c1w_ref[kh],
                            preferred_element_type=jnp.float32)
                acc = t if acc is None else acc + t
            act = jnp.maximum(acc + c1b_ref[...], 0.0)          # relu(conv+bias), both dj
            cand = jnp.maximum(act[:, :half], act[:, half:])    # max over dj
            y = cand if y is None else jnp.maximum(y, cand)     # max over di
        y_phase.append(y)                                       # (M,128) f32, cols (w,c)

    # ---- conv2 + bias + relu + 2x2 maxpool --------------------------------
    s_y = [_shift_rows_up(y_phase[o & 1], o >> 1).astype(jnp.bfloat16) for o in range(6)]
    z = None
    for di in range(2):
        acc = None
        for kh in range(5):
            t = jnp.dot(s_y[di + kh], c2w_ref[kh], preferred_element_type=jnp.float32)
            acc = t if acc is None else acc + t
        act = jnp.maximum(acc + c2b_ref[...], 0.0)
        cand = jnp.maximum(act[:, :half], act[:, half:])
        z = cand if z is None else jnp.maximum(z, cand)         # rows 0..4 / image valid

    # ---- fc1 -> relu -> fc2 -> relu -> fc3 --------------------------------
    h = None
    for r in range(5):                                          # sum over conv2 output rows
        t = jnp.dot(_shift_rows_up(z, r).astype(jnp.bfloat16), f1w_ref[r],
                    preferred_element_type=jnp.float32)
        h = t if h is None else h + t
    h = jnp.maximum(h + f1b_ref[...], 0.0).astype(jnp.bfloat16)
    h = jnp.maximum(jnp.dot(h, f2w_ref[...], preferred_element_type=jnp.float32)
                    + f2b_ref[...], 0.0).astype(jnp.bfloat16)
    o_ref[...] = jnp.dot(h, f3w_ref[...], preferred_element_type=jnp.float32) + f3b_ref[...]


# ---------------------------------------------------------------------------
# Host-side weight banding / input phase split (tiny, runs in XLA once per call)
# ---------------------------------------------------------------------------
def _conv_band(w, w_in, dj):
    """Banded matrices B[kh][(w*cin+ci), (ow*cout+co)] = w[co,ci,kh, w-(2*ow+dj)]."""
    cout, cin, k, _ = w.shape
    ow2 = (w_in - k + 1) // 2
    w_idx = jnp.arange(w_in)[:, None]
    ow_idx = jnp.arange(ow2)[None, :]
    kw = w_idx - 2 * ow_idx - dj                                 # (w_in, ow2)
    valid = (kw >= 0) & (kw < k)
    vals = w[:, :, :, jnp.clip(kw, 0, k - 1)]                    # (co, ci, kh, w, ow)
    vals = vals * valid[None, None, None, :, :]
    vals = jnp.transpose(vals, (2, 3, 1, 4, 0))                  # (kh, w, ci, ow, co)
    return vals.reshape(k, w_in * cin, ow2 * cout)


def _conv_band_cat(w, w_in):
    cout, cin, k, _ = w.shape
    ow2 = (w_in - k + 1) // 2
    kin, kout = w_in * cin, ow2 * cout
    kin_p, kout_p = _round_up(kin, _LANE), _round_up(kout, _LANE)
    blocks = []
    for dj in range(2):
        b = _conv_band(w, w_in, dj)
        blocks.append(jnp.pad(b, ((0, 0), (0, kin_p - kin), (0, kout_p - kout))))
    return jnp.concatenate(blocks, axis=2).astype(jnp.bfloat16)  # (k, 128, 256)


def _conv_bias_row(b, ow2, kout_p):
    row = jnp.pad(jnp.tile(b, ow2), (0, kout_p - ow2 * b.shape[0]))
    return jnp.concatenate([row, row]).reshape(1, -1).astype(jnp.float32)   # (1, 256)


def _fc1_row_weights(w1, oh2, ow2, cout):
    """Per conv2-output-row fc1 weights; folds torch's CHW flatten order in."""
    d_out = w1.shape[0]
    w4 = w1.reshape(d_out, cout, oh2, ow2)                        # (j, c, h, w)
    w4 = jnp.transpose(w4, (2, 3, 1, 0))                          # (h, w, c, j)
    wh = w4.reshape(oh2, ow2 * cout, d_out)                       # (h, w*cout+c, j)
    kin_p, dout_p = _round_up(ow2 * cout, _LANE), _round_up(d_out, _LANE)
    wh = jnp.pad(wh, ((0, 0), (0, kin_p - ow2 * cout), (0, dout_p - d_out)))
    return wh.astype(jnp.bfloat16)                                # (5, 128, 128)


def _fc_weight(w, din_p, dout_p):
    return jnp.pad(w.T, ((0, din_p - w.shape[1]), (0, dout_p - w.shape[0]))).astype(jnp.bfloat16)


def _fc_bias(b, dout_p):
    return jnp.pad(b, (0, dout_p - b.shape[0])).reshape(1, -1).astype(jnp.float32)


def _phase_rows(x_nchw, bp):
    """(B,3,H,W) NCHW -> (4, Bp*8, 128) f32: X[a][b*8+q, w*3+ci] = x[b,ci,4q+a,w]."""
    B, C, H, W = x_nchw.shape
    assert H % 4 == 0 and W * C <= _LANE
    x = jnp.transpose(x_nchw, (0, 2, 3, 1)).reshape(B, H, W * C)
    x = x.reshape(B, H // 4, 4, W * C)
    x = jnp.transpose(x, (2, 0, 1, 3))                            # (4, B, H//4, W*C)
    x = jnp.pad(x, ((0, 0), (0, bp - B), (0, 0), (0, _LANE - W * C)))
    return x.reshape(4, bp * (H // 4), _LANE).astype(jnp.float32)


# ---------------------------------------------------------------------------
# Forward pass
# ---------------------------------------------------------------------------
@jax.jit
def mynet_forward(x_nchw, params):
    (cw1, cb1) = params["conv1"]
    (cw2, cb2) = params["conv2"]
    (w1, b1), (w2, b2), (w3, b3) = params["fc"]

    B, _, H, W = x_nchw.shape
    assert H == 32 and W == 32, "MyNet flatten (16*5*5) implies 32x32 inputs"

    # >=2 grid steps whenever possible so both v7x TensorCores get work (even at B=2).
    tb = max(1, min(_DEFAULT_BATCH_TILE, -(-B // 2)))
    bp = _round_up(B, tb)
    m = tb * _ROWS_PER_IMG

    ow2_1 = (W - 5 + 1) // 2                      # 14
    ow2_2 = (ow2_1 - 5 + 1) // 2                  # 5
    cout2 = cw2.shape[0]                          # 16

    xph = _phase_rows(x_nchw, bp)                                     # (4, Bp*8, 128)
    c1w = _conv_band_cat(cw1, W)                                      # (5, 128, 256)
    c1b = _conv_bias_row(cb1, ow2_1, _LANE)                           # (1, 256)
    c2w = _conv_band_cat(cw2, ow2_1)                                  # (5, 128, 256)
    c2b = _conv_bias_row(cb2, ow2_2, _LANE)                           # (1, 256)
    f1w = _fc1_row_weights(w1, ow2_2, ow2_2, cout2)                   # (5, 128, 128)
    f1b = _fc_bias(b1, _LANE)
    f2w = _fc_weight(w2, _LANE, _LANE)
    f2b = _fc_bias(b2, _LANE)
    f3w = _fc_weight(w3, _LANE, _LANE)
    f3b = _fc_bias(b3, _LANE)

    const = lambda i: (0, 0, 0)
    const2 = lambda i: (0, 0)
    out = pl.pallas_call(
        mynet_fused_kernel,
        out_shape=jax.ShapeDtypeStruct((bp * _ROWS_PER_IMG, _LANE), jnp.float32),
        grid=(bp // tb,),
        in_specs=[
            pl.BlockSpec((4, m, _LANE), lambda i: (0, i, 0)),         # batch-tiled input
            pl.BlockSpec((5, _LANE, 2 * _LANE), const),               # weights: resident
            pl.BlockSpec((1, 2 * _LANE), const2),
            pl.BlockSpec((5, _LANE, 2 * _LANE), const),
            pl.BlockSpec((1, 2 * _LANE), const2),
            pl.BlockSpec((5, _LANE, _LANE), const),
            pl.BlockSpec((1, _LANE), const2),
            pl.BlockSpec((_LANE, _LANE), const2),
            pl.BlockSpec((1, _LANE), const2),
            pl.BlockSpec((_LANE, _LANE), const2),
            pl.BlockSpec((1, _LANE), const2),
        ],
        out_specs=pl.BlockSpec((m, _LANE), lambda i: (i, 0)),
        compiler_params=pltpu.CompilerParams(
            dimension_semantics=("parallel",),
            vmem_limit_bytes=32 * 1024 * 1024),
    )(xph, c1w, c1b, c2w, c2b, f1w, f1b, f2w, f2b, f3w, f3b)

    # row b*8 of each image block holds the logits; cols 0..9 are valid.
    return out.reshape(bp, _ROWS_PER_IMG, _LANE)[:B, 0, :10]


# ---------------------------------------------------------------------------
# Pure-JAX f32 reference (for correctness) and deterministic init
# ---------------------------------------------------------------------------
def mynet_reference(x, params):
    (cw1, cb1) = params["conv1"]
    (cw2, cb2) = params["conv2"]
    (w1, b1), (w2, b2), (w3, b3) = params["fc"]

    def conv(x, w, b):
        y = lax.conv_general_dilated(x, w, (1, 1), "VALID",
                                     dimension_numbers=("NCHW", "OIHW", "NCHW"),
                                     precision=lax.Precision.HIGHEST)
        return y + b.reshape(1, -1, 1, 1)

    def pool(x):
        B, C, H, W = x.shape
        return jnp.max(x.reshape(B, C, H // 2, 2, W // 2, 2), axis=(3, 5))

    def dense(x, w, b):
        return jnp.dot(x, w.T, precision=lax.Precision.HIGHEST) + b

    x = pool(jax.nn.relu(conv(x, cw1, cb1)))
    x = pool(jax.nn.relu(conv(x, cw2, cb2)))
    x = x.reshape(x.shape[0], -1)
    x = jax.nn.relu(dense(x, w1, b1))
    x = jax.nn.relu(dense(x, w2, b2))
    return dense(x, w3, b3)


def init_params(key):
    ks = jax.random.split(key, 10)

    def u(k, shape, fan_in):
        bound = 1.0 / jnp.sqrt(jnp.float32(fan_in))
        return jax.random.uniform(k, shape, jnp.float32, -bound, bound)

    conv1_w = u(ks[0], (6, 3, 5, 5), 3 * 25);   conv1_b = u(ks[1], (6,), 3 * 25)
    conv2_w = u(ks[2], (16, 6, 5, 5), 6 * 25);  conv2_b = u(ks[3], (16,), 6 * 25)
    fc1_w = u(ks[4], (120, 400), 400);          fc1_b = u(ks[5], (120,), 400)
    fc2_w = u(ks[6], (84, 120), 120);           fc2_b = u(ks[7], (84,), 120)
    fc3_w = u(ks[8], (10, 84), 84);             fc3_b = u(ks[9], (10,), 84)
    return {
        "conv1": (conv1_w, conv1_b),
        "conv2": (conv2_w, conv2_b),
        "fc": ((fc1_w, fc1_b), (fc2_w, fc2_b), (fc3_w, fc3_b)),
    }


if __name__ == "__main__":
    key = jax.random.PRNGKey(0)
    pkey, xkey = jax.random.split(key)
    params = init_params(pkey)
    # 32x32 spatial so the flatten matches 16*5*5 = 400 (LeNet / CIFAR geometry).
    x = jax.random.normal(xkey, (2, 3, 32, 32), dtype=jnp.float32)

    out = jax.block_until_ready(mynet_forward(x, params))
    ref = mynet_reference(x, params)
    assert out.shape == (2, 10), out.shape
    # bf16 MXU inputs with f32 accumulation vs. f32 reference: comfortably within 2e-2.
    assert jnp.allclose(out, ref, rtol=2e-2, atol=2e-2), float(jnp.max(jnp.abs(out - ref)))
    print("KERNEL_OK")
</pallas_src>

<mosaic_0001>
module attributes {stable_mosaic.version = 11 : i64} {
  func.func @mynet_fused_kernel(%arg0: i32, %arg1: memref<4x8x128xf32, #tpu.memory_space<vmem>>, %arg2: memref<5x128x256xbf16, #tpu.memory_space<vmem>>, %arg3: memref<1x256xf32, #tpu.memory_space<vmem>>, %arg4: memref<5x128x256xbf16, #tpu.memory_space<vmem>>, %arg5: memref<1x256xf32, #tpu.memory_space<vmem>>, %arg6: memref<5x128x128xbf16, #tpu.memory_space<vmem>>, %arg7: memref<1x128xf32, #tpu.memory_space<vmem>>, %arg8: memref<128x128xbf16, #tpu.memory_space<vmem>>, %arg9: memref<1x128xf32, #tpu.memory_space<vmem>>, %arg10: memref<128x128xbf16, #tpu.memory_space<vmem>>, %arg11: memref<1x128xf32, #tpu.memory_space<vmem>>, %arg12: memref<8x128xf32, #tpu.memory_space<vmem>>) attributes {dimension_semantics = [#tpu.dimension_semantics<parallel>], iteration_bounds = array<i64: 2>, scalar_prefetch = 0 : i64, scratch_operands = 0 : i64, tpu.core_type = #tpu.core_type<tc>, window_params = [{transform_indices = @transform_0, window_bounds = array<i64: 4, 8, 128>}, {pipeline_mode = #tpu.pipeline_mode<synchronous>, transform_indices = @transform_1, window_bounds = array<i64: 5, 128, 256>}, {pipeline_mode = #tpu.pipeline_mode<synchronous>, transform_indices = @transform_2, window_bounds = array<i64: 1, 256>}, {pipeline_mode = #tpu.pipeline_mode<synchronous>, transform_indices = @transform_3, window_bounds = array<i64: 5, 128, 256>}, {pipeline_mode = #tpu.pipeline_mode<synchronous>, transform_indices = @transform_4, window_bounds = array<i64: 1, 256>}, {pipeline_mode = #tpu.pipeline_mode<synchronous>, transform_indices = @transform_5, window_bounds = array<i64: 5, 128, 128>}, {pipeline_mode = #tpu.pipeline_mode<synchronous>, transform_indices = @transform_6, window_bounds = array<i64: 1, 128>}, {pipeline_mode = #tpu.pipeline_mode<synchronous>, transform_indices = @transform_7, window_bounds = array<i64: 128, 128>}, {pipeline_mode = #tpu.pipeline_mode<synchronous>, transform_indices = @transform_8, window_bounds = array<i64: 1, 128>}, {pipeline_mode = #tpu.pipeline_mode<synchronous>, transform_indices = @transform_9, window_bounds = array<i64: 128, 128>}, {pipeline_mode = #tpu.pipeline_mode<synchronous>, transform_indices = @transform_10, window_bounds = array<i64: 1, 128>}, {transform_indices = @transform_11, window_bounds = array<i64: 8, 128>}]} {
    %c0 = arith.constant 0 : index
    %c0_0 = arith.constant 0 : index
    %c0_1 = arith.constant 0 : index
    %0 = vector.load %arg1[%c0, %c0_0, %c0_1] : memref<4x8x128xf32, #tpu.memory_space<vmem>>, vector<1x8x128xf32>
    %1 = vector.shape_cast %0 : vector<1x8x128xf32> to vector<8x128xf32>
    %c1 = arith.constant 1 : index
    %c0_2 = arith.constant 0 : index
    %c0_3 = arith.constant 0 : index
    %2 = vector.load %arg1[%c1, %c0_2, %c0_3] : memref<4x8x128xf32, #tpu.memory_space<vmem>>, vector<1x8x128xf32>
    %3 = vector.shape_cast %2 : vector<1x8x128xf32> to vector<8x128xf32>
    %c2 = arith.constant 2 : index
    %c0_4 = arith.constant 0 : index
    %c0_5 = arith.constant 0 : index
    %4 = vector.load %arg1[%c2, %c0_4, %c0_5] : memref<4x8x128xf32, #tpu.memory_space<vmem>>, vector<1x8x128xf32>
    %5 = vector.shape_cast %4 : vector<1x8x128xf32> to vector<8x128xf32>
    %c3 = arith.constant 3 : index
    %c0_6 = arith.constant 0 : index
    %c0_7 = arith.constant 0 : index
    %6 = vector.load %arg1[%c3, %c0_6, %c0_7] : memref<4x8x128xf32, #tpu.memory_space<vmem>>, vector<1x8x128xf32>
    %7 = vector.shape_cast %6 : vector<1x8x128xf32> to vector<8x128xf32>
    %8 = arith.truncf %1 : vector<8x128xf32> to vector<8x128xbf16>
    %9 = arith.truncf %3 : vector<8x128xf32> to vector<8x128xbf16>
    %10 = arith.truncf %5 : vector<8x128xf32> to vector<8x128xbf16>
    %11 = arith.truncf %7 : vector<8x128xf32> to vector<8x128xbf16>
    %12 = vector.extract_strided_slice %1 {offsets = [1, 0], sizes = [7, 128], strides = [1, 1]} : vector<8x128xf32> to vector<7x128xf32>
    %13 = vector.extract_strided_slice %1 {offsets = [0, 0], sizes = [1, 128], strides = [1, 1]} : vector<8x128xf32> to vector<1x128xf32>
    %14 = tpu.concatenate %12, %13 in 0 : vector<7x128xf32>, vector<1x128xf32> -> vector<8x128xf32>
    %15 = arith.truncf %14 : vector<8x128xf32> to vector<8x128xbf16>
    %16 = vector.extract_strided_slice %3 {offsets = [1, 0], sizes = [7, 128], strides = [1, 1]} : vector<8x128xf32> to vector<7x128xf32>
    %17 = vector.extract_strided_slice %3 {offsets = [0, 0], sizes = [1, 128], strides = [1, 1]} : vector<8x128xf32> to vector<1x128xf32>
    %18 = tpu.concatenate %16, %17 in 0 : vector<7x128xf32>, vector<1x128xf32> -> vector<8x128xf32>
    %19 = arith.truncf %18 : vector<8x128xf32> to vector<8x128xbf16>
    %20 = vector.extract_strided_slice %5 {offsets = [1, 0], sizes = [7, 128], strides = [1, 1]} : vector<8x128xf32> to vector<7x128xf32>
    %21 = vector.extract_strided_slice %5 {offsets = [0, 0], sizes = [1, 128], strides = [1, 1]} : vector<8x128xf32> to vector<1x128xf32>
    %22 = tpu.concatenate %20, %21 in 0 : vector<7x128xf32>, vector<1x128xf32> -> vector<8x128xf32>
    %23 = arith.truncf %22 : vector<8x128xf32> to vector<8x128xbf16>
    %24 = vector.extract_strided_slice %7 {offsets = [1, 0], sizes = [7, 128], strides = [1, 1]} : vector<8x128xf32> to vector<7x128xf32>
    %25 = vector.extract_strided_slice %7 {offsets = [0, 0], sizes = [1, 128], strides = [1, 1]} : vector<8x128xf32> to vector<1x128xf32>
    %26 = tpu.concatenate %24, %25 in 0 : vector<7x128xf32>, vector<1x128xf32> -> vector<8x128xf32>
    %27 = arith.truncf %26 : vector<8x128xf32> to vector<8x128xbf16>
    %c0_8 = arith.constant 0 : index
    %c0_9 = arith.constant 0 : index
    %c0_10 = arith.constant 0 : index
    %28 = vector.load %arg2[%c0_8, %c0_9, %c0_10] : memref<5x128x256xbf16, #tpu.memory_space<vmem>>, vector<1x128x256xbf16>
    %29 = vector.shape_cast %28 : vector<1x128x256xbf16> to vector<128x256xbf16>
    %cst = arith.constant dense<0.000000e+00> : vector<8x256xf32>
    %30 = tpu.matmul %8, %29, %cst {dimension_numbers = #tpu.dot_dimension_numbers<[1], [0], [0], [1], [0, 0, 1, 1], [], []>} : vector<8x128xbf16>, vector<128x256xbf16>, vector<8x256xf32> -> vector<8x256xf32>
    %c1_11 = arith.constant 1 : index
    %c0_12 = arith.constant 0 : index
    %c0_13 = arith.constant 0 : index
    %31 = vector.load %arg2[%c1_11, %c0_12, %c0_13] : memref<5x128x256xbf16, #tpu.memory_space<vmem>>, vector<1x128x256xbf16>
    %32 = vector.shape_cast %31 : vector<1x128x256xbf16> to vector<128x256xbf16>
    %cst_14 = arith.constant dense<0.000000e+00> : vector<8x256xf32>
    %33 = tpu.matmul %9, %32, %cst_14 {dimension_numbers = #tpu.dot_dimension_numbers<[1], [0], [0], [1], [0, 0, 1, 1], [], []>} : vector<8x128xbf16>, vector<128x256xbf16>, vector<8x256xf32> -> vector<8x256xf32>
    %34 = arith.addf %30, %33 : vector<8x256xf32>
    %c2_15 = arith.constant 2 : index
    %c0_16 = arith.constant 0 : index
    %c0_17 = arith.constant 0 : index
    %35 = vector.load %arg2[%c2_15, %c0_16, %c0_17] : memref<5x128x256xbf16, #tpu.memory_space<vmem>>, vector<1x128x256xbf16>
    %36 = vector.shape_cast %35 : vector<1x128x256xbf16> to vector<128x256xbf16>
    %cst_18 = arith.constant dense<0.000000e+00> : vector<8x256xf32>
    %37 = tpu.matmul %10, %36, %cst_18 {dimension_numbers = #tpu.dot_dimension_numbers<[1], [0], [0], [1], [0, 0, 1, 1], [], []>} : vector<8x128xbf16>, vector<128x256xbf16>, vector<8x256xf32> -> vector<8x256xf32>
    %38 = arith.addf %34, %37 : vector<8x256xf32>
    %c3_19 = arith.constant 3 : index
    %c0_20 = arith.constant 0 : index
    %c0_21 = arith.constant 0 : index
    %39 = vector.load %arg2[%c3_19, %c0_20, %c0_21] : memref<5x128x256xbf16, #tpu.memory_space<vmem>>, vector<1x128x256xbf16>
    %40 = vector.shape_cast %39 : vector<1x128x256xbf16> to vector<128x256xbf16>
    %cst_22 = arith.constant dense<0.000000e+00> : vector<8x256xf32>
    %41 = tpu.matmul %11, %40, %cst_22 {dimension_numbers = #tpu.dot_dimension_numbers<[1], [0], [0], [1], [0, 0, 1, 1], [], []>} : vector<8x128xbf16>, vector<128x256xbf16>, vector<8x256xf32> -> vector<8x256xf32>
    %42 = arith.addf %38, %41 : vector<8x256xf32>
    %c4 = arith.constant 4 : index
    %c0_23 = arith.constant 0 : index
    %c0_24 = arith.constant 0 : index
    %43 = vector.load %arg2[%c4, %c0_23, %c0_24] : memref<5x128x256xbf16, #tpu.memory_space<vmem>>, vector<1x128x256xbf16>
    %44 = vector.shape_cast %43 : vector<1x128x256xbf16> to vector<128x256xbf16>
    %cst_25 = arith.constant dense<0.000000e+00> : vector<8x256xf32>
    %45 = tpu.matmul %15, %44, %cst_25 {dimension_numbers = #tpu.dot_dimension_numbers<[1], [0], [0], [1], [0, 0, 1, 1], [], []>} : vector<8x128xbf16>, vector<128x256xbf16>, vector<8x256xf32> -> vector<8x256xf32>
    %46 = arith.addf %42, %45 : vector<8x256xf32>
    %c0_26 = arith.constant 0 : index
    %c0_27 = arith.constant 0 : index
    %47 = vector.load %arg3[%c0_26, %c0_27] : memref<1x256xf32, #tpu.memory_space<vmem>>, vector<1x256xf32>
    %48 = vector.broadcast %47 : vector<1x256xf32> to vector<8x256xf32>
    %49 = arith.addf %46, %48 : vector<8x256xf32>
    %cst_28 = arith.constant 0.000000e+00 : f32
    %50 = vector.broadcast %cst_28 : f32 to vector<8x256xf32>
    %51 = arith.maximumf %49, %50 : vector<8x256xf32>
    %52 = vector.extract_strided_slice %51 {offsets = [0, 0], sizes = [8, 128], strides = [1, 1]} : vector<8x256xf32> to vector<8x128xf32>
    %53 = vector.extract_strided_slice %51 {offsets = [0, 128], sizes = [8, 128], strides = [1, 1]} : vector<8x256xf32> to vector<8x128xf32>
    %54 = arith.maximumf %52, %53 : vector<8x128xf32>
    %c0_29 = arith.constant 0 : index
    %c0_30 = arith.constant 0 : index
    %c0_31 = arith.constant 0 : index
    %55 = vector.load %arg2[%c0_29, %c0_30, %c0_31] : memref<5x128x256xbf16, #tpu.memory_space<vmem>>, vector<1x128x256xbf16>
    %56 = vector.shape_cast %55 : vector<1x128x256xbf16> to vector<128x256xbf16>
    %cst_32 = arith.constant dense<0.000000e+00> : vector<8x256xf32>
    %57 = tpu.matmul %9, %56, %cst_32 {dimension_numbers = #tpu.dot_dimension_numbers<[1], [0], [0], [1], [0, 0, 1, 1], [], []>} : vector<8x128xbf16>, vector<128x256xbf16>, vector<8x256xf32> -> vector<8x256xf32>
    %c1_33 = arith.constant 1 : index
    %c0_34 = arith.constant 0 : index
    %c0_35 = arith.constant 0 : index
    %58 = vector.load %arg2[%c1_33, %c0_34, %c0_35] : memref<5x128x256xbf16, #tpu.memory_space<vmem>>, vector<1x128x256xbf16>
    %59 = vector.shape_cast %58 : vector<1x128x256xbf16> to vector<128x256xbf16>
    %cst_36 = arith.constant dense<0.000000e+00> : vector<8x256xf32>
    %60 = tpu.matmul %10, %59, %cst_36 {dimension_numbers = #tpu.dot_dimension_numbers<[1], [0], [0], [1], [0, 0, 1, 1], [], []>} : vector<8x128xbf16>, vector<128x256xbf16>, vector<8x256xf32> -> vector<8x256xf32>
    %61 = arith.addf %57, %60 : vector<8x256xf32>
    %c2_37 = arith.constant 2 : index
    %c0_38 = arith.constant 0 : index
    %c0_39 = arith.constant 0 : index
    %62 = vector.load %arg2[%c2_37, %c0_38, %c0_39] : memref<5x128x256xbf16, #tpu.memory_space<vmem>>, vector<1x128x256xbf16>
    %63 = vector.shape_cast %62 : vector<1x128x256xbf16> to vector<128x256xbf16>
    %cst_40 = arith.constant dense<0.000000e+00> : vector<8x256xf32>
    %64 = tpu.matmul %11, %63, %cst_40 {dimension_numbers = #tpu.dot_dimension_numbers<[1], [0], [0], [1], [0, 0, 1, 1], [], []>} : vector<8x128xbf16>, vector<128x256xbf16>, vector<8x256xf32> -> vector<8x256xf32>
    %65 = arith.addf %61, %64 : vector<8x256xf32>
    %c3_41 = arith.constant 3 : index
    %c0_42 = arith.constant 0 : index
    %c0_43 = arith.constant 0 : index
    %66 = vector.load %arg2[%c3_41, %c0_42, %c0_43] : memref<5x128x256xbf16, #tpu.memory_space<vmem>>, vector<1x128x256xbf16>
    %67 = vector.shape_cast %66 : vector<1x128x256xbf16> to vector<128x256xbf16>
    %cst_44 = arith.constant dense<0.000000e+00> : vector<8x256xf32>
    %68 = tpu.matmul %15, %67, %cst_44 {dimension_numbers = #tpu.dot_dimension_numbers<[1], [0], [0], [1], [0, 0, 1, 1], [], []>} : vector<8x128xbf16>, vector<128x256xbf16>, vector<8x256xf32> -> vector<8x256xf32>
    %69 = arith.addf %65, %68 : vector<8x256xf32>
    %c4_45 = arith.constant 4 : index
    %c0_46 = arith.constant 0 : index
    %c0_47 = arith.constant 0 : index
    %70 = vector.load %arg2[%c4_45, %c0_46, %c0_47] : memref<5x128x256xbf16, #tpu.memory_space<vmem>>, vector<1x128x256xbf16>
    %71 = vector.shape_cast %70 : vector<1x128x256xbf16> to vector<128x256xbf16>
    %cst_48 = arith.constant dense<0.000000e+00> : vector<8x256xf32>
    %72 = tpu.matmul %19, %71, %cst_48 {dimension_numbers = #tpu.dot_dimension_numbers<[1], [0], [0], [1], [0, 0, 1, 1], [], []>} : vector<8x128xbf16>, vector<128x256xbf16>, vector<8x256xf32> -> vector<8x256xf32>
    %73 = arith.addf %69, %72 : vector<8x256xf32>
    %c0_49 = arith.constant 0 : index
    %c0_50 = arith.constant 0 : index
    %74 = vector.load %arg3[%c0_49, %c0_50] : memref<1x256xf32, #tpu.memory_space<vmem>>, vector<1x256xf32>
    %75 = vector.broadcast %74 : vector<1x256xf32> to vector<8x256xf32>
    %76 = arith.addf %73, %75 : vector<8x256xf32>
    %cst_51 = arith.constant 0.000000e+00 : f32
    %77 = vector.broadcast %cst_51 : f32 to vector<8x256xf32>
    %78 = arith.maximumf %76, %77 : vector<8x256xf32>
    %79 = vector.extract_strided_slice %78 {offsets = [0, 0], sizes = [8, 128], strides = [1, 1]} : vector<8x256xf32> to vector<8x128xf32>
    %80 = vector.extract_strided_slice %78 {offsets = [0, 128], sizes = [8, 128], strides = [1, 1]} : vector<8x256xf32> to vector<8x128xf32>
    %81 = arith.maximumf %79, %80 : vector<8x128xf32>
    %82 = arith.maximumf %54, %81 : vector<8x128xf32>
    %c0_52 = arith.constant 0 : index
    %c0_53 = arith.constant 0 : index
    %c0_54 = arith.constant 0 : index
    %83 = vector.load %arg2[%c0_52, %c0_53, %c0_54] : memref<5x128x256xbf16, #tpu.memory_space<vmem>>, vector<1x128x256xbf16>
    %84 = vector.shape_cast %83 : vector<1x128x256xbf16> to vector<128x256xbf16>
    %cst_55 = arith.constant dense<0.000000e+00> : vector<8x256xf32>
    %85 = tpu.matmul %10, %84, %cst_55 {dimension_numbers = #tpu.dot_dimension_numbers<[1], [0], [0], [1], [0, 0, 1, 1], [], []>} : vector<8x128xbf16>, vector<128x256xbf16>, vector<8x256xf32> -> vector<8x256xf32>
    %c1_56 = arith.constant 1 : index
    %c0_57 = arith.constant 0 : index
    %c0_58 = arith.constant 0 : index
    %86 = vector.load %arg2[%c1_56, %c0_57, %c0_58] : memref<5x128x256xbf16, #tpu.memory_space<vmem>>, vector<1x128x256xbf16>
    %87 = vector.shape_cast %86 : vector<1x128x256xbf16> to vector<128x256xbf16>
    %cst_59 = arith.constant dense<0.000000e+00> : vector<8x256xf32>
    %88 = tpu.matmul %11, %87, %cst_59 {dimension_numbers = #tpu.dot_dimension_numbers<[1], [0], [0], [1], [0, 0, 1, 1], [], []>} : vector<8x128xbf16>, vector<128x256xbf16>, vector<8x256xf32> -> vector<8x256xf32>
    %89 = arith.addf %85, %88 : vector<8x256xf32>
    %c2_60 = arith.constant 2 : index
    %c0_61 = arith.constant 0 : index
    %c0_62 = arith.constant 0 : index
    %90 = vector.load %arg2[%c2_60, %c0_61, %c0_62] : memref<5x128x256xbf16, #tpu.memory_space<vmem>>, vector<1x128x256xbf16>
    %91 = vector.shape_cast %90 : vector<1x128x256xbf16> to vector<128x256xbf16>
    %cst_63 = arith.constant dense<0.000000e+00> : vector<8x256xf32>
    %92 = tpu.matmul %15, %91, %cst_63 {dimension_numbers = #tpu.dot_dimension_numbers<[1], [0], [0], [1], [0, 0, 1, 1], [], []>} : vector<8x128xbf16>, vector<128x256xbf16>, vector<8x256xf32> -> vector<8x256xf32>
    %93 = arith.addf %89, %92 : vector<8x256xf32>
    %c3_64 = arith.constant 3 : index
    %c0_65 = arith.constant 0 : index
    %c0_66 = arith.constant 0 : index
    %94 = vector.load %arg2[%c3_64, %c0_65, %c0_66] : memref<5x128x256xbf16, #tpu.memory_space<vmem>>, vector<1x128x256xbf16>
    %95 = vector.shape_cast %94 : vector<1x128x256xbf16> to vector<128x256xbf16>
    %cst_67 = arith.constant dense<0.000000e+00> : vector<8x256xf32>
    %96 = tpu.matmul %19, %95, %cst_67 {dimension_numbers = #tpu.dot_dimension_numbers<[1], [0], [0], [1], [0, 0, 1, 1], [], []>} : vector<8x128xbf16>, vector<128x256xbf16>, vector<8x256xf32> -> vector<8x256xf32>
    %97 = arith.addf %93, %96 : vector<8x256xf32>
    %c4_68 = arith.constant 4 : index
    %c0_69 = arith.constant 0 : index
    %c0_70 = arith.constant 0 : index
    %98 = vector.load %arg2[%c4_68, %c0_69, %c0_70] : memref<5x128x256xbf16, #tpu.memory_space<vmem>>, vector<1x128x256xbf16>
    %99 = vector.shape_cast %98 : vector<1x128x256xbf16> to vector<128x256xbf16>
    %cst_71 = arith.constant dense<0.000000e+00> : vector<8x256xf32>
    %100 = tpu.matmul %23, %99, %cst_71 {dimension_numbers = #tpu.dot_dimension_numbers<[1], [0], [0], [1], [0, 0, 1, 1], [], []>} : vector<8x128xbf16>, vector<128x256xbf16>, vector<8x256xf32> -> vector<8x256xf32>
    %101 = arith.addf %97, %100 : vector<8x256xf32>
    %c0_72 = arith.constant 0 : index
    %c0_73 = arith.constant 0 : index
    %102 = vector.load %arg3[%c0_72, %c0_73] : memref<1x256xf32, #tpu.memory_space<vmem>>, vector<1x256xf32>
    %103 = vector.broadcast %102 : vector<1x256xf32> to vector<8x256xf32>
    %104 = arith.addf %101, %103 : vector<8x256xf32>
    %cst_74 = arith.constant 0.000000e+00 : f32
    %105 = vector.broadcast %cst_74 : f32 to vector<8x256xf32>
    %106 = arith.maximumf %104, %105 : vector<8x256xf32>
    %107 = vector.extract_strided_slice %106 {offsets = [0, 0], sizes = [8, 128], strides = [1, 1]} : vector<8x256xf32> to vector<8x128xf32>
    %108 = vector.extract_strided_slice %106 {offsets = [0, 128], sizes = [8, 128], strides = [1, 1]} : vector<8x256xf32> to vector<8x128xf32>
    %109 = arith.maximumf %107, %108 : vector<8x128xf32>
    %c0_75 = arith.constant 0 : index
    %c0_76 = arith.constant 0 : index
    %c0_77 = arith.constant 0 : index
    %110 = vector.load %arg2[%c0_75, %c0_76, %c0_77] : memref<5x128x256xbf16, #tpu.memory_space<vmem>>, vector<1x128x256xbf16>
    %111 = vector.shape_cast %110 : vector<1x128x256xbf16> to vector<128x256xbf16>
    %cst_78 = arith.constant dense<0.000000e+00> : vector<8x256xf32>
    %112 = tpu.matmul %11, %111, %cst_78 {dimension_numbers = #tpu.dot_dimension_numbers<[1], [0], [0], [1], [0, 0, 1, 1], [], []>} : vector<8x128xbf16>, vector<128x256xbf16>, vector<8x256xf32> -> vector<8x256xf32>
    %c1_79 = arith.constant 1 : index
    %c0_80 = arith.constant 0 : index
    %c0_81 = arith.constant 0 : index
    %113 = vector.load %arg2[%c1_79, %c0_80, %c0_81] : memref<5x128x256xbf16, #tpu.memory_space<vmem>>, vector<1x128x256xbf16>
    %114 = vector.shape_cast %113 : vector<1x128x256xbf16> to vector<128x256xbf16>
    %cst_82 = arith.constant dense<0.000000e+00> : vector<8x256xf32>
    %115 = tpu.matmul %15, %114, %cst_82 {dimension_numbers = #tpu.dot_dimension_numbers<[1], [0], [0], [1], [0, 0, 1, 1], [], []>} : vector<8x128xbf16>, vector<128x256xbf16>, vector<8x256xf32> -> vector<8x256xf32>
    %116 = arith.addf %112, %115 : vector<8x256xf32>
    %c2_83 = arith.constant 2 : index
    %c0_84 = arith.constant 0 : index
    %c0_85 = arith.constant 0 : index
    %117 = vector.load %arg2[%c2_83, %c0_84, %c0_85] : memref<5x128x256xbf16, #tpu.memory_space<vmem>>, vector<1x128x256xbf16>
    %118 = vector.shape_cast %117 : vector<1x128x256xbf16> to vector<128x256xbf16>
    %cst_86 = arith.constant dense<0.000000e+00> : vector<8x256xf32>
    %119 = tpu.matmul %19, %118, %cst_86 {dimension_numbers = #tpu.dot_dimension_numbers<[1], [0], [0], [1], [0, 0, 1, 1], [], []>} : vector<8x128xbf16>, vector<128x256xbf16>, vector<8x256xf32> -> vector<8x256xf32>
    %120 = arith.addf %116, %119 : vector<8x256xf32>
    %c3_87 = arith.constant 3 : index
    %c0_88 = arith.constant 0 : index
    %c0_89 = arith.constant 0 : index
    %121 = vector.load %arg2[%c3_87, %c0_88, %c0_89] : memref<5x128x256xbf16, #tpu.memory_space<vmem>>, vector<1x128x256xbf16>
    %122 = vector.shape_cast %121 : vector<1x128x256xbf16> to vector<128x256xbf16>
    %cst_90 = arith.constant dense<0.000000e+00> : vector<8x256xf32>
    %123 = tpu.matmul %23, %122, %cst_90 {dimension_numbers = #tpu.dot_dimension_numbers<[1], [0], [0], [1], [0, 0, 1, 1], [], []>} : vector<8x128xbf16>, vector<128x256xbf16>, vector<8x256xf32> -> vector<8x256xf32>
    %124 = arith.addf %120, %123 : vector<8x256xf32>
    %c4_91 = arith.constant 4 : index
    %c0_92 = arith.constant 0 : index
    %c0_93 = arith.constant 0 : index
    %125 = vector.load %arg2[%c4_91, %c0_92, %c0_93] : memref<5x128x256xbf16, #tpu.memory_space<vmem>>, vector<1x128x256xbf16>
    %126 = vector.shape_cast %125 : vector<1x128x256xbf16> to vector<128x256xbf16>
    %cst_94 = arith.constant dense<0.000000e+00> : vector<8x256xf32>
    %127 = tpu.matmul %27, %126, %cst_94 {dimension_numbers = #tpu.dot_dimension_numbers<[1], [0], [0], [1], [0, 0, 1, 1], [], []>} : vector<8x128xbf16>, vector<128x256xbf16>, vector<8x256xf32> -> vector<8x256xf32>
    %128 = arith.addf %124, %127 : vector<8x256xf32>
    %c0_95 = arith.constant 0 : index
    %c0_96 = arith.constant 0 : index
    %129 = vector.load %arg3[%c0_95, %c0_96] : memref<1x256xf32, #tpu.memory_space<vmem>>, vector<1x256xf32>
    %130 = vector.broadcast %129 : vector<1x256xf32> to vector<8x256xf32>
    %131 = arith.addf %128, %130 : vector<8x256xf32>
    %cst_97 = arith.constant 0.000000e+00 : f32
    %132 = vector.broadcast %cst_97 : f32 to vector<8x256xf32>
    %133 = arith.maximumf %131, %132 : vector<8x256xf32>
    %134 = vector.extract_strided_slice %133 {offsets = [0, 0], sizes = [8, 128], strides = [1, 1]} : vector<8x256xf32> to vector<8x128xf32>
    %135 = vector.extract_strided_slice %133 {offsets = [0, 128], sizes = [8, 128], strides = [1, 1]} : vector<8x256xf32> to vector<8x128xf32>
    %136 = arith.maximumf %134, %135 : vector<8x128xf32>
    %137 = arith.maximumf %109, %136 : vector<8x128xf32>
    %138 = arith.truncf %82 : vector<8x128xf32> to vector<8x128xbf16>
    %139 = arith.truncf %137 : vector<8x128xf32> to vector<8x128xbf16>
    %140 = vector.extract_strided_slice %82 {offsets = [1, 0], sizes = [7, 128], strides = [1, 1]} : vector<8x128xf32> to vector<7x128xf32>
    %141 = vector.extract_strided_slice %82 {offsets = [0, 0], sizes = [1, 128], strides = [1, 1]} : vector<8x128xf32> to vector<1x128xf32>
    %142 = tpu.concatenate %140, %141 in 0 : vector<7x128xf32>, vector<1x128xf32> -> vector<8x128xf32>
    %143 = arith.truncf %142 : vector<8x128xf32> to vector<8x128xbf16>
    %144 = vector.extract_strided_slice %137 {offsets = [1, 0], sizes = [7, 128], strides = [1, 1]} : vector<8x128xf32> to vector<7x128xf32>
    %145 = vector.extract_strided_slice %137 {offsets = [0, 0], sizes = [1, 128], strides = [1, 1]} : vector<8x128xf32> to vector<1x128xf32>
    %146 = tpu.concatenate %144, %145 in 0 : vector<7x128xf32>, vector<1x128xf32> -> vector<8x128xf32>
    %147 = arith.truncf %146 : vector<8x128xf32> to vector<8x128xbf16>
    %148 = vector.extract_strided_slice %82 {offsets = [2, 0], sizes = [6, 128], strides = [1, 1]} : vector<8x128xf32> to vector<6x128xf32>
    %149 = vector.extract_strided_slice %82 {offsets = [0, 0], sizes = [2, 128], strides = [1, 1]} : vector<8x128xf32> to vector<2x128xf32>
    %150 = tpu.concatenate %148, %149 in 0 : vector<6x128xf32>, vector<2x128xf32> -> vector<8x128xf32>
    %151 = arith.truncf %150 : vector<8x128xf32> to vector<8x128xbf16>
    %152 = vector.extract_strided_slice %137 {offsets = [2, 0], sizes = [6, 128], strides = [1, 1]} : vector<8x128xf32> to vector<6x128xf32>
    %153 = vector.extract_strided_slice %137 {offsets = [0, 0], sizes = [2, 128], strides = [1, 1]} : vector<8x128xf32> to vector<2x128xf32>
    %154 = tpu.concatenate %152, %153 in 0 : vector<6x128xf32>, vector<2x128xf32> -> vector<8x128xf32>
    %155 = arith.truncf %154 : vector<8x128xf32> to vector<8x128xbf16>
    %c0_98 = arith.constant 0 : index
    %c0_99 = arith.constant 0 : index
    %c0_100 = arith.constant 0 : index
    %156 = vector.load %arg4[%c0_98, %c0_99, %c0_100] : memref<5x128x256xbf16, #tpu.memory_space<vmem>>, vector<1x128x256xbf16>
    %157 = vector.shape_cast %156 : vector<1x128x256xbf16> to vector<128x256xbf16>
    %cst_101 = arith.constant dense<0.000000e+00> : vector<8x256xf32>
    %158 = tpu.matmul %138, %157, %cst_101 {dimension_numbers = #tpu.dot_dimension_numbers<[1], [0], [0], [1], [0, 0, 1, 1], [], []>} : vector<8x128xbf16>, vector<128x256xbf16>, vector<8x256xf32> -> vector<8x256xf32>
    %c1_102 = arith.constant 1 : index
    %c0_103 = arith.constant 0 : index
    %c0_104 = arith.constant 0 : index
    %159 = vector.load %arg4[%c1_102, %c0_103, %c0_104] : memref<5x128x256xbf16, #tpu.memory_space<vmem>>, vector<1x128x256xbf16>
    %160 = vector.shape_cast %159 : vector<1x128x256xbf16> to vector<128x256xbf16>
    %cst_105 = arith.constant dense<0.000000e+00> : vector<8x256xf32>
    %161 = tpu.matmul %139, %160, %cst_105 {dimension_numbers = #tpu.dot_dimension_numbers<[1], [0], [0], [1], [0, 0, 1, 1], [], []>} : vector<8x128xbf16>, vector<128x256xbf16>, vector<8x256xf32> -> vector<8x256xf32>
    %162 = arith.addf %158, %161 : vector<8x256xf32>
    %c2_106 = arith.constant 2 : index
    %c0_107 = arith.constant 0 : index
    %c0_108 = arith.constant 0 : index
    %163 = vector.load %arg4[%c2_106, %c0_107, %c0_108] : memref<5x128x256xbf16, #tpu.memory_space<vmem>>, vector<1x128x256xbf16>
    %164 = vector.shape_cast %163 : vector<1x128x256xbf16> to vector<128x256xbf16>
    %cst_109 = arith.constant dense<0.000000e+00> : vector<8x256xf32>
    %165 = tpu.matmul %143, %164, %cst_109 {dimension_numbers = #tpu.dot_dimension_numbers<[1], [0], [0], [1], [0, 0, 1, 1], [], []>} : vector<8x128xbf16>, vector<128x256xbf16>, vector<8x256xf32> -> vector<8x256xf32>
    %166 = arith.addf %162, %165 : vector<8x256xf32>
    %c3_110 = arith.constant 3 : index
    %c0_111 = arith.constant 0 : index
    %c0_112 = arith.constant 0 : index
    %167 = vector.load %arg4[%c3_110, %c0_111, %c0_112] : memref<5x128x256xbf16, #tpu.memory_space<vmem>>, vector<1x128x256xbf16>
    %168 = vector.shape_cast %167 : vector<1x128x256xbf16> to vector<128x256xbf16>
    %cst_113 = arith.constant dense<0.000000e+00> : vector<8x256xf32>
    %169 = tpu.matmul %147, %168, %cst_113 {dimension_numbers = #tpu.dot_dimension_numbers<[1], [0], [0], [1], [0, 0, 1, 1], [], []>} : vector<8x128xbf16>, vector<128x256xbf16>, vector<8x256xf32> -> vector<8x256xf32>
    %170 = arith.addf %166, %169 : vector<8x256xf32>
    %c4_114 = arith.constant 4 : index
    %c0_115 = arith.constant 0 : index
    %c0_116 = arith.constant 0 : index
    %171 = vector.load %arg4[%c4_114, %c0_115, %c0_116] : memref<5x128x256xbf16, #tpu.memory_space<vmem>>, vector<1x128x256xbf16>
    %172 = vector.shape_cast %171 : vector<1x128x256xbf16> to vector<128x256xbf16>
    %cst_117 = arith.constant dense<0.000000e+00> : vector<8x256xf32>
    %173 = tpu.matmul %151, %172, %cst_117 {dimension_numbers = #tpu.dot_dimension_numbers<[1], [0], [0], [1], [0, 0, 1, 1], [], []>} : vector<8x128xbf16>, vector<128x256xbf16>, vector<8x256xf32> -> vector<8x256xf32>
    %174 = arith.addf %170, %173 : vector<8x256xf32>
    %c0_118 = arith.constant 0 : index
    %c0_119 = arith.constant 0 : index
    %175 = vector.load %arg5[%c0_118, %c0_119] : memref<1x256xf32, #tpu.memory_space<vmem>>, vector<1x256xf32>
    %176 = vector.broadcast %175 : vector<1x256xf32> to vector<8x256xf32>
    %177 = arith.addf %174, %176 : vector<8x256xf32>
    %cst_120 = arith.constant 0.000000e+00 : f32
    %178 = vector.broadcast %cst_120 : f32 to vector<8x256xf32>
    %179 = arith.maximumf %177, %178 : vector<8x256xf32>
    %180 = vector.extract_strided_slice %179 {offsets = [0, 0], sizes = [8, 128], strides = [1, 1]} : vector<8x256xf32> to vector<8x128xf32>
    %181 = vector.extract_strided_slice %179 {offsets = [0, 128], sizes = [8, 128], strides = [1, 1]} : vector<8x256xf32> to vector<8x128xf32>
    %182 = arith.maximumf %180, %181 : vector<8x128xf32>
    %c0_121 = arith.constant 0 : index
    %c0_122 = arith.constant 0 : index
    %c0_123 = arith.constant 0 : index
    %183 = vector.load %arg4[%c0_121, %c0_122, %c0_123] : memref<5x128x256xbf16, #tpu.memory_space<vmem>>, vector<1x128x256xbf16>
    %184 = vector.shape_cast %183 : vector<1x128x256xbf16> to vector<128x256xbf16>
    %cst_124 = arith.constant dense<0.000000e+00> : vector<8x256xf32>
    %185 = tpu.matmul %139, %184, %cst_124 {dimension_numbers = #tpu.dot_dimension_numbers<[1], [0], [0], [1], [0, 0, 1, 1], [], []>} : vector<8x128xbf16>, vector<128x256xbf16>, vector<8x256xf32> -> vector<8x256xf32>
    %c1_125 = arith.constant 1 : index
    %c0_126 = arith.constant 0 : index
    %c0_127 = arith.constant 0 : index
    %186 = vector.load %arg4[%c1_125, %c0_126, %c0_127] : memref<5x128x256xbf16, #tpu.memory_space<vmem>>, vector<1x128x256xbf16>
    %187 = vector.shape_cast %186 : vector<1x128x256xbf16> to vector<128x256xbf16>
    %cst_128 = arith.constant dense<0.000000e+00> : vector<8x256xf32>
    %188 = tpu.matmul %143, %187, %cst_128 {dimension_numbers = #tpu.dot_dimension_numbers<[1], [0], [0], [1], [0, 0, 1, 1], [], []>} : vector<8x128xbf16>, vector<128x256xbf16>, vector<8x256xf32> -> vector<8x256xf32>
    %189 = arith.addf %185, %188 : vector<8x256xf32>
    %c2_129 = arith.constant 2 : index
    %c0_130 = arith.constant 0 : index
    %c0_131 = arith.constant 0 : index
    %190 = vector.load %arg4[%c2_129, %c0_130, %c0_131] : memref<5x128x256xbf16, #tpu.memory_space<vmem>>, vector<1x128x256xbf16>
    %191 = vector.shape_cast %190 : vector<1x128x256xbf16> to vector<128x256xbf16>
    %cst_132 = arith.constant dense<0.000000e+00> : vector<8x256xf32>
    %192 = tpu.matmul %147, %191, %cst_132 {dimension_numbers = #tpu.dot_dimension_numbers<[1], [0], [0], [1], [0, 0, 1, 1], [], []>} : vector<8x128xbf16>, vector<128x256xbf16>, vector<8x256xf32> -> vector<8x256xf32>
    %193 = arith.addf %189, %192 : vector<8x256xf32>
    %c3_133 = arith.constant 3 : index
    %c0_134 = arith.constant 0 : index
    %c0_135 = arith.constant 0 : index
    %194 = vector.load %arg4[%c3_133, %c0_134, %c0_135] : memref<5x128x256xbf16, #tpu.memory_space<vmem>>, vector<1x128x256xbf16>
    %195 = vector.shape_cast %194 : vector<1x128x256xbf16> to vector<128x256xbf16>
    %cst_136 = arith.constant dense<0.000000e+00> : vector<8x256xf32>
    %196 = tpu.matmul %151, %195, %cst_136 {dimension_numbers = #tpu.dot_dimension_numbers<[1], [0], [0], [1], [0, 0, 1, 1], [], []>} : vector<8x128xbf16>, vector<128x256xbf16>, vector<8x256xf32> -> vector<8x256xf32>
    %197 = arith.addf %193, %196 : vector<8x256xf32>
    %c4_137 = arith.constant 4 : index
    %c0_138 = arith.constant 0 : index
    %c0_139 = arith.constant 0 : index
    %198 = vector.load %arg4[%c4_137, %c0_138, %c0_139] : memref<5x128x256xbf16, #tpu.memory_space<vmem>>, vector<1x128x256xbf16>
    %199 = vector.shape_cast %198 : vector<1x128x256xbf16> to vector<128x256xbf16>
    %cst_140 = arith.constant dense<0.000000e+00> : vector<8x256xf32>
    %200 = tpu.matmul %155, %199, %cst_140 {dimension_numbers = #tpu.dot_dimension_numbers<[1], [0], [0], [1], [0, 0, 1, 1], [], []>} : vector<8x128xbf16>, vector<128x256xbf16>, vector<8x256xf32> -> vector<8x256xf32>
    %201 = arith.addf %197, %200 : vector<8x256xf32>
    %c0_141 = arith.constant 0 : index
    %c0_142 = arith.constant 0 : index
    %202 = vector.load %arg5[%c0_141, %c0_142] : memref<1x256xf32, #tpu.memory_space<vmem>>, vector<1x256xf32>
    %203 = vector.broadcast %202 : vector<1x256xf32> to vector<8x256xf32>
    %204 = arith.addf %201, %203 : vector<8x256xf32>
    %cst_143 = arith.constant 0.000000e+00 : f32
    %205 = vector.broadcast %cst_143 : f32 to vector<8x256xf32>
    %206 = arith.maximumf %204, %205 : vector<8x256xf32>
    %207 = vector.extract_strided_slice %206 {offsets = [0, 0], sizes = [8, 128], strides = [1, 1]} : vector<8x256xf32> to vector<8x128xf32>
    %208 = vector.extract_strided_slice %206 {offsets = [0, 128], sizes = [8, 128], strides = [1, 1]} : vector<8x256xf32> to vector<8x128xf32>
    %209 = arith.maximumf %207, %208 : vector<8x128xf32>
    %210 = arith.maximumf %182, %209 : vector<8x128xf32>
    %211 = arith.truncf %210 : vector<8x128xf32> to vector<8x128xbf16>
    %c0_144 = arith.constant 0 : index
    %c0_145 = arith.constant 0 : index
    %c0_146 = arith.constant 0 : index
    %212 = vector.load %arg6[%c0_144, %c0_145, %c0_146] : memref<5x128x128xbf16, #tpu.memory_space<vmem>>, vector<1x128x128xbf16>
    %213 = vector.shape_cast %212 : vector<1x128x128xbf16> to vector<128x128xbf16>
    %cst_147 = arith.constant dense<0.000000e+00> : vector<8x128xf32>
    %214 = tpu.matmul %211, %213, %cst_147 {dimension_numbers = #tpu.dot_dimension_numbers<[1], [0], [0], [1], [0, 0, 1, 1], [], []>} : vector<8x128xbf16>, vector<128x128xbf16>, vector<8x128xf32> -> vector<8x128xf32>
    %215 = vector.extract_strided_slice %210 {offsets = [1, 0], sizes = [7, 128], strides = [1, 1]} : vector<8x128xf32> to vector<7x128xf32>
    %216 = vector.extract_strided_slice %210 {offsets = [0, 0], sizes = [1, 128], strides = [1, 1]} : vector<8x128xf32> to vector<1x128xf32>
    %217 = tpu.concatenate %215, %216 in 0 : vector<7x128xf32>, vector<1x128xf32> -> vector<8x128xf32>
    %218 = arith.truncf %217 : vector<8x128xf32> to vector<8x128xbf16>
    %c1_148 = arith.constant 1 : index
    %c0_149 = arith.constant 0 : index
    %c0_150 = arith.constant 0 : index
    %219 = vector.load %arg6[%c1_148, %c0_149, %c0_150] : memref<5x128x128xbf16, #tpu.memory_space<vmem>>, vector<1x128x128xbf16>
    %220 = vector.shape_cast %219 : vector<1x128x128xbf16> to vector<128x128xbf16>
    %cst_151 = arith.constant dense<0.000000e+00> : vector<8x128xf32>
    %221 = tpu.matmul %218, %220, %cst_151 {dimension_numbers = #tpu.dot_dimension_numbers<[1], [0], [0], [1], [0, 0, 1, 1], [], []>} : vector<8x128xbf16>, vector<128x128xbf16>, vector<8x128xf32> -> vector<8x128xf32>
    %222 = arith.addf %214, %221 : vector<8x128xf32>
    %223 = vector.extract_strided_slice %210 {offsets = [2, 0], sizes = [6, 128], strides = [1, 1]} : vector<8x128xf32> to vector<6x128xf32>
    %224 = vector.extract_strided_slice %210 {offsets = [0, 0], sizes = [2, 128], strides = [1, 1]} : vector<8x128xf32> to vector<2x128xf32>
    %225 = tpu.concatenate %223, %224 in 0 : vector<6x128xf32>, vector<2x128xf32> -> vector<8x128xf32>
    %226 = arith.truncf %225 : vector<8x128xf32> to vector<8x128xbf16>
    %c2_152 = arith.constant 2 : index
    %c0_153 = arith.constant 0 : index
    %c0_154 = arith.constant 0 : index
    %227 = vector.load %arg6[%c2_152, %c0_153, %c0_154] : memref<5x128x128xbf16, #tpu.memory_space<vmem>>, vector<1x128x128xbf16>
    %228 = vector.shape_cast %227 : vector<1x128x128xbf16> to vector<128x128xbf16>
    %cst_155 = arith.constant dense<0.000000e+00> : vector<8x128xf32>
    %229 = tpu.matmul %226, %228, %cst_155 {dimension_numbers = #tpu.dot_dimension_numbers<[1], [0], [0], [1], [0, 0, 1, 1], [], []>} : vector<8x128xbf16>, vector<128x128xbf16>, vector<8x128xf32> -> vector<8x128xf32>
    %230 = arith.addf %222, %229 : vector<8x128xf32>
    %231 = vector.extract_strided_slice %210 {offsets = [3, 0], sizes = [5, 128], strides = [1, 1]} : vector<8x128xf32> to vector<5x128xf32>
    %232 = vector.extract_strided_slice %210 {offsets = [0, 0], sizes = [3, 128], strides = [1, 1]} : vector<8x128xf32> to vector<3x128xf32>
    %233 = tpu.concatenate %231, %232 in 0 : vector<5x128xf32>, vector<3x128xf32> -> vector<8x128xf32>
    %234 = arith.truncf %233 : vector<8x128xf32> to vector<8x128xbf16>
    %c3_156 = arith.constant 3 : index
    %c0_157 = arith.constant 0 : index
    %c0_158 = arith.constant 0 : index
    %235 = vector.load %arg6[%c3_156, %c0_157, %c0_158] : memref<5x128x128xbf16, #tpu.memory_space<vmem>>, vector<1x128x128xbf16>
    %236 = vector.shape_cast %235 : vector<1x128x128xbf16> to vector<128x128xbf16>
    %cst_159 = arith.constant dense<0.000000e+00> : vector<8x128xf32>
    %237 = tpu.matmul %234, %236, %cst_159 {dimension_numbers = #tpu.dot_dimension_numbers<[1], [0], [0], [1], [0, 0, 1, 1], [], []>} : vector<8x128xbf16>, vector<128x128xbf16>, vector<8x128xf32> -> vector<8x128xf32>
    %238 = arith.addf %230, %237 : vector<8x128xf32>
    %239 = vector.extract_strided_slice %210 {offsets = [4, 0], sizes = [4, 128], strides = [1, 1]} : vector<8x128xf32> to vector<4x128xf32>
    %240 = vector.extract_strided_slice %210 {offsets = [0, 0], sizes = [4, 128], strides = [1, 1]} : vector<8x128xf32> to vector<4x128xf32>
    %241 = tpu.concatenate %239, %240 in 0 : vector<4x128xf32>, vector<4x128xf32> -> vector<8x128xf32>
    %242 = arith.truncf %241 : vector<8x128xf32> to vector<8x128xbf16>
    %c4_160 = arith.constant 4 : index
    %c0_161 = arith.constant 0 : index
    %c0_162 = arith.constant 0 : index
    %243 = vector.load %arg6[%c4_160, %c0_161, %c0_162] : memref<5x128x128xbf16, #tpu.memory_space<vmem>>, vector<1x128x128xbf16>
    %244 = vector.shape_cast %243 : vector<1x128x128xbf16> to vector<128x128xbf16>
    %cst_163 = arith.constant dense<0.000000e+00> : vector<8x128xf32>
    %245 = tpu.matmul %242, %244, %cst_163 {dimension_numbers = #tpu.dot_dimension_numbers<[1], [0], [0], [1], [0, 0, 1, 1], [], []>} : vector<8x128xbf16>, vector<128x128xbf16>, vector<8x128xf32> -> vector<8x128xf32>
    %246 = arith.addf %238, %245 : vector<8x128xf32>
    %c0_164 = arith.constant 0 : index
    %c0_165 = arith.constant 0 : index
    %247 = vector.load %arg7[%c0_164, %c0_165] : memref<1x128xf32, #tpu.memory_space<vmem>>, vector<1x128xf32>
    %248 = vector.broadcast %247 : vector<1x128xf32> to vector<8x128xf32>
    %249 = arith.addf %246, %248 : vector<8x128xf32>
    %cst_166 = arith.constant 0.000000e+00 : f32
    %250 = vector.broadcast %cst_166 : f32 to vector<8x128xf32>
    %251 = arith.maximumf %249, %250 : vector<8x128xf32>
    %252 = arith.truncf %251 : vector<8x128xf32> to vector<8x128xbf16>
    %c0_167 = arith.constant 0 : index
    %c0_168 = arith.constant 0 : index
    %253 = vector.load %arg8[%c0_167, %c0_168] : memref<128x128xbf16, #tpu.memory_space<vmem>>, vector<128x128xbf16>
    %cst_169 = arith.constant dense<0.000000e+00> : vector<8x128xf32>
    %254 = tpu.matmul %252, %253, %cst_169 {dimension_numbers = #tpu.dot_dimension_numbers<[1], [0], [0], [1], [0, 0, 1, 1], [], []>} : vector<8x128xbf16>, vector<128x128xbf16>, vector<8x128xf32> -> vector<8x128xf32>
    %c0_170 = arith.constant 0 : index
    %c0_171 = arith.constant 0 : index
    %255 = vector.load %arg9[%c0_170, %c0_171] : memref<1x128xf32, #tpu.memory_space<vmem>>, vector<1x128xf32>
    %256 = vector.broadcast %255 : vector<1x128xf32> to vector<8x128xf32>
    %257 = arith.addf %254, %256 : vector<8x128xf32>
    %cst_172 = arith.constant 0.000000e+00 : f32
    %258 = vector.broadcast %cst_172 : f32 to vector<8x128xf32>
    %259 = arith.maximumf %257, %258 : vector<8x128xf32>
    %260 = arith.truncf %259 : vector<8x128xf32> to vector<8x128xbf16>
    %c0_173 = arith.constant 0 : index
    %c0_174 = arith.constant 0 : index
    %261 = vector.load %arg10[%c0_173, %c0_174] : memref<128x128xbf16, #tpu.memory_space<vmem>>, vector<128x128xbf16>
    %cst_175 = arith.constant dense<0.000000e+00> : vector<8x128xf32>
    %262 = tpu.matmul %260, %261, %cst_175 {dimension_numbers = #tpu.dot_dimension_numbers<[1], [0], [0], [1], [0, 0, 1, 1], [], []>} : vector<8x128xbf16>, vector<128x128xbf16>, vector<8x128xf32> -> vector<8x128xf32>
    %c0_176 = arith.constant 0 : index
    %c0_177 = arith.constant 0 : index
    %263 = vector.load %arg11[%c0_176, %c0_177] : memref<1x128xf32, #tpu.memory_space<vmem>>, vector<1x128xf32>
    %264 = vector.broadcast %263 : vector<1x128xf32> to vector<8x128xf32>
    %265 = arith.addf %262, %264 : vector<8x128xf32>
    %c0_178 = arith.constant 0 : index
    %c0_179 = arith.constant 0 : index
    %266 = vector.load %arg12[%c0_178, %c0_179] : memref<8x128xf32, #tpu.memory_space<vmem>>, vector<8x128xf32>
    tpu.vector_store %arg12[%c0_178, %c0_179], %265 {strides = array<i32>} : memref<8x128xf32, #tpu.memory_space<vmem>>, vector<8x128xf32>,
    return
  }
  func.func @transform_0(%arg0: i32) -> (i32, i32, i32) {
    %c0_i32 = arith.constant 0 : i32
    %c0_i32_0 = arith.constant 0 : i32
    %c0_i32_1 = arith.constant 0 : i32
    return %c0_i32, %arg0, %c0_i32_0 : i32, i32, i32
  }
  func.func @transform_1(%arg0: i32) -> (i32, i32, i32) {
    %c0_i32 = arith.constant 0 : i32
    %c0_i32_0 = arith.constant 0 : i32
    %c0_i32_1 = arith.constant 0 : i32
    %c0_i32_2 = arith.constant 0 : i32
    return %c0_i32, %c0_i32_0, %c0_i32_1 : i32, i32, i32
  }
  func.func @transform_2(%arg0: i32) -> (i32, i32) {
    %c0_i32 = arith.constant 0 : i32
    %c0_i32_0 = arith.constant 0 : i32
    %c0_i32_1 = arith.constant 0 : i32
    return %c0_i32, %c0_i32_0 : i32, i32
  }
  func.func @transform_3(%arg0: i32) -> (i32, i32, i32) {
    %c0_i32 = arith.constant 0 : i32
    %c0_i32_0 = arith.constant 0 : i32
    %c0_i32_1 = arith.constant 0 : i32
    %c0_i32_2 = arith.constant 0 : i32
    return %c0_i32, %c0_i32_0, %c0_i32_1 : i32, i32, i32
  }
  func.func @transform_4(%arg0: i32) -> (i32, i32) {
    %c0_i32 = arith.constant 0 : i32
    %c0_i32_0 = arith.constant 0 : i32
    %c0_i32_1 = arith.constant 0 : i32
    return %c0_i32, %c0_i32_0 : i32, i32
  }
  func.func @transform_5(%arg0: i32) -> (i32, i32, i32) {
    %c0_i32 = arith.constant 0 : i32
    %c0_i32_0 = arith.constant 0 : i32
    %c0_i32_1 = arith.constant 0 : i32
    %c0_i32_2 = arith.constant 0 : i32
    return %c0_i32, %c0_i32_0, %c0_i32_1 : i32, i32, i32
  }
  func.func @transform_6(%arg0: i32) -> (i32, i32) {
    %c0_i32 = arith.constant 0 : i32
    %c0_i32_0 = arith.constant 0 : i32
    %c0_i32_1 = arith.constant 0 : i32
    return %c0_i32, %c0_i32_0 : i32, i32
  }
  func.func @transform_7(%arg0: i32) -> (i32, i32) {
    %c0_i32 = arith.constant 0 : i32
    %c0_i32_0 = arith.constant 0 : i32
    %c0_i32_1 = arith.constant 0 : i32
    return %c0_i32, %c0_i32_0 : i32, i32
  }
  func.func @transform_8(%arg0: i32) -> (i32, i32) {
    %c0_i32 = arith.constant 0 : i32
    %c0_i32_0 = arith.constant 0 : i32
    %c0_i32_1 = arith.constant 0 : i32
    return %c0_i32, %c0_i32_0 : i32, i32
  }
  func.func @transform_9(%arg0: i32) -> (i32, i32) {
    %c0_i32 = arith.constant 0 : i32
    %c0_i32_0 = arith.constant 0 : i32
    %c0_i32_1 = arith.constant 0 : i32
    return %c0_i32, %c0_i32_0 : i32, i32
  }
  func.func @transform_10(%arg0: i32) -> (i32, i32) {
    %c0_i32 = arith.constant 0 : i32
    %c0_i32_0 = arith.constant 0 : i32
    %c0_i32_1 = arith.constant 0 : i32
    return %c0_i32, %c0_i32_0 : i32, i32
  }
  func.func @transform_11(%arg0: i32) -> (i32, i32) {
    %c0_i32 = arith.constant 0 : i32
    %c0_i32_0 = arith.constant 0 : i32
    return %arg0, %c0_i32 : i32, i32
  }
}

</mosaic_0001>

<llo_original>
// kernel: tile.13
$region0: #{tile.13}
  #allocation0 [shape = 's32[1]{0}', space=sflag, size = 0x4, scoped, tag = 'scoped memory for tile.13']
  %s0 = inlined_call_operand.vmem [shape: f32[6], index: 0, kind: input, shape index: {}]
  %s1 = inlined_call_operand.vmem [shape: f32[14,6], index: 1, kind: output, shape index: {}]
  // Predicated region
  $region2: #{tile.13} parent=0 // pred_check
    _
  $region3: #{tile.13} parent=0 // pred_check_branch
    %3 = sbr.rel (0) target = $region5
  $region4: #{tile.13} parent=0 // pred_region
    _
  $region5: #{tile.13} parent=0 // pred_fallthru
    _
  %v4 = vld [vmem:[%s0] ss:$0 sm:$0xff]
  %5 = vst [vmem:[%s1] sm:$0xff] %v4
  %s6 = scalar_lea.vmem %s1, 8
  %7 = vst [vmem:[%s6] sm:$0xff] %v4

// kernel: tile.14
$region0: #{tile.14}
  %s0 = inlined_call_operand.vmem [shape: f32[14,6], index: 0, kind: input, shape index: {}]
  %s1 = inlined_call_operand.vmem [shape: f32[84], index: 1, kind: output, shape index: {}]
  $region1: #{tile.14} parent=0
    #allocation0 [shape = 'u8[4096]{0}', space=vmem, size = 0x1000, scoped, tag = 'scoped mem for output reshape']
    %v2 = vld [vmem:[%s0] sm:$0x1]
    %vm3 = vcmask 48128
    %4 = vst.msk [vmem:[#allocation0] sm:$0x1] %vm3, %v2
    %s5 = scalar_lea.vmem %s0, 13
    %v6 = vld [vmem:[%s5] sm:$0x1]
    %7 = vrot.lane.b32.xlu0 %v6, 78
    %v8 = vpop.permute.xlu0 %7
    %vm9 = vcmask 687728
    %10 = vst.msk [vmem:[#allocation0] sm:$0x1] %vm9, %v8
    %s11 = scalar_lea.vmem %s0, 12
    %v12 = vld [vmem:[%s11] sm:$0x1]
    %13 = vrot.lane.b32.xlu0 %v12, 72
    %v14 = vpop.permute.xlu0 %13
    %vm15 = vcmask 638528
    %16 = vst.msk [vmem:[#allocation0] sm:$0x1] %vm15, %v14
    %s17 = scalar_lea.vmem %s0, 11
    %v18 = vld [vmem:[%s17] sm:$0x1]
    %19 = vrot.lane.b32.xlu0 %v18, 66
    %v20 = vpop.permute.xlu0 %19
    %vm21 = vcmask 589328
    %22 = vst.msk [vmem:[#allocation0] sm:$0x1] %vm21, %v20
    %s23 = scalar_lea.vmem %s0, 10
    %v24 = vld [vmem:[%s23] sm:$0x1]
    %25 = vrot.lane.b32.xlu0 %v24, 60
    %v26 = vpop.permute.xlu0 %25
    %vm27 = vcmask 540128
    %28 = vst.msk [vmem:[#allocation0] sm:$0x1] %vm27, %v26
    %s29 = scalar_lea.vmem %s0, 9
    %v30 = vld [vmem:[%s29] sm:$0x1]
    %31 = vrot.lane.b32.xlu0 %v30, 54
    %v32 = vpop.permute.xlu0 %31
    %vm33 = vcmask 490928
    %34 = vst.msk [vmem:[#allocation0] sm:$0x1] %vm33, %v32
    %s35 = scalar_lea.vmem %s0, 8
    %v36 = vld [vmem:[%s35] sm:$0x1]
    %37 = vrot.lane.b32.xlu0 %v36, 48
    %v38 = vpop.permute.xlu0 %37
    %vm39 = vcmask 441728
    %40 = vst.msk [vmem:[#allocation0] sm:$0x1] %vm39, %v38
    %s41 = scalar_lea.vmem %s0, 7
    %v42 = vld [vmem:[%s41] sm:$0x1]
    %43 = vrot.lane.b32.xlu0 %v42, 42
    %v44 = vpop.permute.xlu0 %43
    %vm45 = vcmask 392528
    %46 = vst.msk [vmem:[#allocation0] sm:$0x1] %vm45, %v44
    %s47 = scalar_lea.vmem %s0, 6
    %v48 = vld [vmem:[%s47] sm:$0x1]
    %49 = vrot.lane.b32.xlu0 %v48, 36
    %v50 = vpop.permute.xlu0 %49
    %vm51 = vcmask 343328
    %52 = vst.msk [vmem:[#allocation0] sm:$0x1] %vm51, %v50
    %s53 = scalar_lea.vmem %s0, 5
    %v54 = vld [vmem:[%s53] sm:$0x1]
    %55 = vrot.lane.b32.xlu0 %v54, 30
    %v56 = vpop.permute.xlu0 %55
    %vm57 = vcmask 294128
    %58 = vst.msk [vmem:[#allocation0] sm:$0x1] %vm57, %v56
    %s59 = scalar_lea.vmem %s0, 4
    %v60 = vld [vmem:[%s59] sm:$0x1]
    %61 = vrot.lane.b32.xlu0 %v60, 24
    %v62 = vpop.permute.xlu0 %61
    %vm63 = vcmask 244928
    %64 = vst.msk [vmem:[#allocation0] sm:$0x1] %vm63, %v62
    %s65 = scalar_lea.vmem %s0, 3
    %v66 = vld [vmem:[%s65] sm:$0x1]
    %67 = vrot.lane.b32.xlu0 %v66, 18
    %v68 = vpop.permute.xlu0 %67
    %vm69 = vcmask 195728
    %70 = vst.msk [vmem:[#allocation0] sm:$0x1] %vm69, %v68
    %s71 = scalar_lea.vmem %s0, 2
    %v72 = vld [vmem:[%s71] sm:$0x1]
    %73 = vrot.lane.b32.xlu0 %v72, 12
    %v74 = vpop.permute.xlu0 %73
    %vm75 = vcmask 146528
    %76 = vst.msk [vmem:[#allocation0] sm:$0x1] %vm75, %v74
    %s77 = scalar_lea.vmem %s0, 1
    %v78 = vld [vmem:[%s77] sm:$0x1]
    %79 = vrot.lane.b32.xlu0 %v78, 6
    %v80 = vpop.permute.xlu0 %79
    %vm81 = vcmask 97328
    %82 = vst.msk [vmem:[#allocation0] sm:$0x1] %vm81, %v80
    %s84 = sshll.u32 1, 1
    %s85 = ssub.s32 %s84, 1
    %v87 = vld [vmem:[#allocation0] sm:%s85]
    %s88 = sshll.u32 1, 1
    %s89 = ssub.s32 %s88, 1
    %90 = vst [vmem:[%s1] sm:%s89] %v87

// kernel: tile.18
$region0: #{tile.18}
  #allocation0 [shape = 's32[1]{0}', space=sflag, size = 0x4, scoped, tag = 'scoped memory for tile.18']
  %s0 = inlined_call_operand.vmem [shape: f32[16], index: 0, kind: input, shape index: {}]
  %s1 = inlined_call_operand.vmem [shape: f32[5,16], index: 1, kind: output, shape index: {}]
  // Predicated region
  $region2: #{tile.18} parent=0 // pred_check
    _
  $region3: #{tile.18} parent=0 // pred_check_branch
    %3 = sbr.rel (0) target = $region5
  $region4: #{tile.18} parent=0 // pred_region
    _
  $region5: #{tile.18} parent=0 // pred_fallthru
    _
  %v4 = vld [vmem:[%s0] ss:$0 sm:$0xff]
  %5 = vst [vmem:[%s1] sm:$0xff] %v4

// kernel: tile.19
$region0: #{tile.19}
  %s0 = inlined_call_operand.vmem [shape: f32[5,16], index: 0, kind: input, shape index: {}]
  %s1 = inlined_call_operand.vmem [shape: f32[80], index: 1, kind: output, shape index: {}]
  $region1: #{tile.19} parent=0
    #allocation0 [shape = 'u8[4096]{0}', space=vmem, size = 0x1000, scoped, tag = 'scoped mem for output reshape']
    %v2 = vld [vmem:[%s0] sm:$0x1]
    %vm3 = vcmask 130048
    %4 = vst.msk [vmem:[#allocation0] sm:$0x1] %vm3, %v2
    %s5 = scalar_lea.vmem %s0, 4
    %v6 = vld [vmem:[%s5] sm:$0x1]
    %7 = vrot.lane.b32.xlu0 %v6, 64
    %v8 = vpop.permute.xlu0 %7
    %vm9 = vcmask 654848
    %10 = vst.msk [vmem:[#allocation0] sm:$0x1] %vm9, %v8
    %s11 = scalar_lea.vmem %s0, 3
    %v12 = vld [vmem:[%s11] sm:$0x1]
    %13 = vrot.lane.b32.xlu0 %v12, 48
    %v14 = vpop.permute.xlu0 %13
    %vm15 = vcmask 523648
    %16 = vst.msk [vmem:[#allocation0] sm:$0x1] %vm15, %v14
    %s17 = scalar_lea.vmem %s0, 2
    %v18 = vld [vmem:[%s17] sm:$0x1]
    %19 = vrot.lane.b32.xlu0 %v18, 32
    %v20 = vpop.permute.xlu0 %19
    %vm21 = vcmask 392448
    %22 = vst.msk [vmem:[#allocation0] sm:$0x1] %vm21, %v20
    %s23 = scalar_lea.vmem %s0, 1
    %v24 = vld [vmem:[%s23] sm:$0x1]
    %25 = vrot.lane.b32.xlu0 %v24, 16
    %v26 = vpop.permute.xlu0 %25
    %vm27 = vcmask 261248
    %28 = vst.msk [vmem:[#allocation0] sm:$0x1] %vm27, %v26
    %s30 = sshll.u32 1, 1
    %s31 = ssub.s32 %s30, 1
    %v33 = vld [vmem:[#allocation0] sm:%s31]
    %s34 = sshll.u32 1, 1
    %s35 = ssub.s32 %s34, 1
    %36 = vst [vmem:[%s1] sm:%s35] %v33

// kernel: mynet_forward.1
$region0: #{mynet_forward.1}
  #allocation0 [shape = 'u32[]', space=smem, size = 0x4, offset = 0x4, fixed_abs, tag = 'smem constant byte address 0x4 - core index']
  #allocation1 [shape = 'u32[144,128]{1,0:T(1,128)}', space=vmem, size = 0x12000, scoped, tag = 'internal scratch']
  %s0 = inlined_call_operand.vmem [shape: f32[4,16,128], index: 0, kind: input, shape index: {}]
  %s1 = inlined_call_operand.vmem [shape: bf16[5,128,256], index: 1, kind: input, shape index: {}]
  %s2 = inlined_call_operand.vmem [shape: f32[1,256], index: 2, kind: input, shape index: {}]
  %s3 = inlined_call_operand.vmem [shape: bf16[5,128,256], index: 3, kind: input, shape index: {}]
  %s4 = inlined_call_operand.vmem [shape: f32[1,256], index: 4, kind: input, shape index: {}]
  %s5 = inlined_call_operand.vmem [shape: bf16[5,128,128], index: 5, kind: input, shape index: {}]
  %s6 = inlined_call_operand.vmem [shape: f32[1,128], index: 6, kind: input, shape index: {}]
  %s7 = inlined_call_operand.vmem [shape: bf16[128,128], index: 7, kind: input, shape index: {}]
  %s8 = inlined_call_operand.vmem [shape: f32[1,128], index: 8, kind: input, shape index: {}]
  %s9 = inlined_call_operand.vmem [shape: bf16[128,128], index: 9, kind: input, shape index: {}]
  %s10 = inlined_call_operand.vmem [shape: f32[1,128], index: 10, kind: input, shape index: {}]
  %s11 = inlined_call_operand.vmem [shape: f32[16,128], index: 11, kind: output, shape index: {}]
  %s12 = sld [smem:[#allocation0]]
  $region115: #{mynet_forward.1} parent=0
    _
  %s14 = ssub.s32 1, %s12
  %s15 = scalar_select 0, %s14, %s12
  $region1: #{mynet_forward.1} parent=0
    #allocation2 [shape = 'u8[32768]{0}', space=vmem, size = 0x8000, scoped, tag = 'input window, operand 0']
    loop: start=0, step=1, limit=4
    $region2: #{mynet_forward.1} parent=1 // loop_pre_header
      _
    $region3: #{mynet_forward.1} parent=1 // loop_header
      %s17 = sphi 0, %s21
      %p18 = scmp.ge.s32.totalorder %s17, 4
      %s27 = sphi 0, %s29
      %s30 = sphi 0, %s27
      %s31 = sphi 0, %s30
      %s47 = sphi 0, %s31
      %s51 = sphi 0, %s51
      %s53 = sphi 0, %s51
      %s54 = sphi 0, %s53
      %s68 = sphi 0, %s54
      %s72 = sphi 0, %s72
      %s74 = sphi 0, %s72
      %s75 = sphi 0, %s74
      %s89 = sphi 0, %s75
      %s93 = sphi 0, %s93
      %s95 = sphi 0, %s93
      %s96 = sphi 0, %s95
      %s110 = sphi 0, %s96
      %s114 = sphi 0, %s114
      %s116 = sphi 0, %s114
      %s117 = sphi 0, %s116
      %s131 = sphi 0, %s117
      %s135 = sphi 0, %s135
      %s137 = sphi 0, %s135
      %s138 = sphi 0, %s137
      %s152 = sphi 0, %s138
      %s156 = sphi 0, %s156
      %s158 = sphi 0, %s156
      %s159 = sphi 0, %s158
      %s173 = sphi 0, %s159
      %s177 = sphi 0, %s177
      %s179 = sphi 0, %s177
      %s180 = sphi 0, %s179
      %s194 = sphi 0, %s180
      %s198 = sphi 0, %s198
      %s200 = sphi 0, %s198
      %s201 = sphi 0, %s200
      %s215 = sphi 0, %s201
      %s219 = sphi 0, %s219
      %s221 = sphi 0, %s219
      %s222 = sphi 0, %s221
      %s236 = sphi 0, %s222
      %s240 = sphi 0, %s240
      %s242 = sphi 0, %s240
      %s243 = sphi 0, %s242
      %s257 = sphi 0, %s243
      %s263 = sphi 0, %s265
      %s266 = sphi 0, %s263
      %s267 = sphi 0, %s266
      %s283 = sphi 0, %s267
    $region4: #{mynet_forward.1} parent=1 // loop_header_branch
      %20 = sbr.rel (%p18) target = $region8
    $region5: #{mynet_forward.1} parent=1 // loop_body
      %s22 = ssub.s32 %s17, 1
      %s23 = ssub.s32 %s17, 2
      %s24 = sadd.s32 %s17, 1
      %s25 = ssub.s32 %s17, %s24
      %p26 = scmp.eq.s32.totalorder %s25, 0
      %s28 = sadd.s32 %s27, 1
      %s29 = scalar_select %p26, %s27, %s28
      %p32 = pneg %p26
      %p33 = scmp.eq.s32.totalorder %s17, 1
      %p34 = por %p32, %p33
      %p35 = scmp.ne.s32.totalorder %s27, %s30
      %p36 = scmp.eq.s32.totalorder %s17, 0
      %p37 = por %p35, %p36
      %p38 = scmp.ne.s32.totalorder %s27, %s30
      %p39 = scmp.eq.s32.totalorder %s22, 1
      %p40 = por %p38, %p39
      %p41 = scmp.ne.s32.totalorder %s30, %s31
      %p42 = scmp.eq.s32.totalorder %s22, 0
      %p43 = por %p41, %p42
      %p44 = scmp.ne.s32.totalorder %s30, %s31
      %p45 = scmp.eq.s32.totalorder %s23, 1
      %p46 = por %p44, %p45
      %p48 = scmp.ne.s32.totalorder %s31, %s47
      %p49 = scmp.eq.s32.totalorder %s23, 0
      %p50 = por %p48, %p49
      %s52 = sadd.s32 %s51, 1
      %p55 = scmp.eq.s32.totalorder %s17, 1
      %p56 = scmp.ne.s32.totalorder %s51, %s53
      %p57 = scmp.eq.s32.totalorder %s17, 0
      %p58 = por %p56, %p57
      %p59 = scmp.ne.s32.totalorder %s51, %s53
      %p60 = scmp.eq.s32.totalorder %s22, 1
      %p61 = por %p59, %p60
      %p62 = scmp.ne.s32.totalorder %s53, %s54
      %p63 = scmp.eq.s32.totalorder %s22, 0
      %p64 = por %p62, %p63
      %p65 = scmp.ne.s32.totalorder %s53, %s54
      %p66 = scmp.eq.s32.totalorder %s23, 1
      %p67 = por %p65, %p66
      %p69 = scmp.ne.s32.totalorder %s54, %s68
      %p70 = scmp.eq.s32.totalorder %s23, 0
      %p71 = por %p69, %p70
      %s73 = sadd.s32 %s72, 1
      %p76 = scmp.eq.s32.totalorder %s17, 1
      %p77 = scmp.ne.s32.totalorder %s72, %s74
      %p78 = scmp.eq.s32.totalorder %s17, 0
      %p79 = por %p77, %p78
      %p80 = scmp.ne.s32.totalorder %s72, %s74
      %p81 = scmp.eq.s32.totalorder %s22, 1
      %p82 = por %p80, %p81
      %p83 = scmp.ne.s32.totalorder %s74, %s75
      %p84 = scmp.eq.s32.totalorder %s22, 0
      %p85 = por %p83, %p84
      %p86 = scmp.ne.s32.totalorder %s74, %s75
      %p87 = scmp.eq.s32.totalorder %s23, 1
      %p88 = por %p86, %p87
      %p90 = scmp.ne.s32.totalorder %s75, %s89
      %p91 = scmp.eq.s32.totalorder %s23, 0
      %p92 = por %p90, %p91
      %s94 = sadd.s32 %s93, 1
      %p97 = scmp.eq.s32.totalorder %s17, 1
      %p98 = scmp.ne.s32.totalorder %s93, %s95
      %p99 = scmp.eq.s32.totalorder %s17, 0
      %p100 = por %p98, %p99
      %p101 = scmp.ne.s32.totalorder %s93, %s95
      %p102 = scmp.eq.s32.totalorder %s22, 1
      %p103 = por %p101, %p102
      %p104 = scmp.ne.s32.totalorder %s95, %s96
      %p105 = scmp.eq.s32.totalorder %s22, 0
      %p106 = por %p104, %p105
      %p107 = scmp.ne.s32.totalorder %s95, %s96
      %p108 = scmp.eq.s32.totalorder %s23, 1
      %p109 = por %p107, %p108
      %p111 = scmp.ne.s32.totalorder %s96, %s110
      %p112 = scmp.eq.s32.totalorder %s23, 0
      %p113 = por %p111, %p112
      %s115 = sadd.s32 %s114, 1
      %p118 = scmp.eq.s32.totalorder %s17, 1
      %p119 = scmp.ne.s32.totalorder %s114, %s116
      %p120 = scmp.eq.s32.totalorder %s17, 0
      %p121 = por %p119, %p120
      %p122 = scmp.ne.s32.totalorder %s114, %s116
      %p123 = scmp.eq.s32.totalorder %s22, 1
      %p124 = por %p122, %p123
      %p125 = scmp.ne.s32.totalorder %s116, %s117
      %p126 = scmp.eq.s32.totalorder %s22, 0
      %p127 = por %p125, %p126
      %p128 = scmp.ne.s32.totalorder %s116, %s117
      %p129 = scmp.eq.s32.totalorder %s23, 1
      %p130 = por %p128, %p129
      %p132 = scmp.ne.s32.totalorder %s117, %s131
      %p133 = scmp.eq.s32.totalorder %s23, 0
      %p134 = por %p132, %p133
      %s136 = sadd.s32 %s135, 1
      %p139 = scmp.eq.s32.totalorder %s17, 1
      %p140 = scmp.ne.s32.totalorder %s135, %s137
      %p141 = scmp.eq.s32.totalorder %s17, 0
      %p142 = por %p140, %p141
      %p143 = scmp.ne.s32.totalorder %s135, %s137
      %p144 = scmp.eq.s32.totalorder %s22, 1
      %p145 = por %p143, %p144
      %p146 = scmp.ne.s32.totalorder %s137, %s138
      %p147 = scmp.eq.s32.totalorder %s22, 0
      %p148 = por %p146, %p147
      %p149 = scmp.ne.s32.totalorder %s137, %s138
      %p150 = scmp.eq.s32.totalorder %s23, 1
      %p151 = por %p149, %p150
      %p153 = scmp.ne.s32.totalorder %s138, %s152
      %p154 = scmp.eq.s32.totalorder %s23, 0
      %p155 = por %p153, %p154
      %s157 = sadd.s32 %s156, 1
      %p160 = scmp.eq.s32.totalorder %s17, 1
      %p161 = scmp.ne.s32.totalorder %s156, %s158
      %p162 = scmp.eq.s32.totalorder %s17, 0
      %p163 = por %p161, %p162
      %p164 = scmp.ne.s32.totalorder %s156, %s158
      %p165 = scmp.eq.s32.totalorder %s22, 1
      %p166 = por %p164, %p165
      %p167 = scmp.ne.s32.totalorder %s158, %s159
      %p168 = scmp.eq.s32.totalorder %s22, 0
      %p169 = por %p167, %p168
      %p170 = scmp.ne.s32.totalorder %s158, %s159
      %p171 = scmp.eq.s32.totalorder %s23, 1
      %p172 = por %p170, %p171
      %p174 = scmp.ne.s32.totalorder %s159, %s173
      %p175 = scmp.eq.s32.totalorder %s23, 0
      %p176 = por %p174, %p175
      %s178 = sadd.s32 %s177, 1
      %p181 = scmp.eq.s32.totalorder %s17, 1
      %p182 = scmp.ne.s32.totalorder %s177, %s179
      %p183 = scmp.eq.s32.totalorder %s17, 0
      %p184 = por %p182, %p183
      %p185 = scmp.ne.s32.totalorder %s177, %s179
      %p186 = scmp.eq.s32.totalorder %s22, 1
      %p187 = por %p185, %p186
      %p188 = scmp.ne.s32.totalorder %s179, %s180
      %p189 = scmp.eq.s32.totalorder %s22, 0
      %p190 = por %p188, %p189
      %p191 = scmp.ne.s32.totalorder %s179, %s180
      %p192 = scmp.eq.s32.totalorder %s23, 1
      %p193 = por %p191, %p192
      %p195 = scmp.ne.s32.totalorder %s180, %s194
      %p196 = scmp.eq.s32.totalorder %s23, 0
      %p197 = por %p195, %p196
      %s199 = sadd.s32 %s198, 1
      %p202 = scmp.eq.s32.totalorder %s17, 1
      %p203 = scmp.ne.s32.totalorder %s198, %s200
      %p204 = scmp.eq.s32.totalorder %s17, 0
      %p205 = por %p203, %p204
      %p206 = scmp.ne.s32.totalorder %s198, %s200
      %p207 = scmp.eq.s32.totalorder %s22, 1
      %p208 = por %p206, %p207
      %p209 = scmp.ne.s32.totalorder %s200, %s201
      %p210 = scmp.eq.s32.totalorder %s22, 0
      %p211 = por %p209, %p210
      %p212 = scmp.ne.s32.totalorder %s200, %s201
      %p213 = scmp.eq.s32.totalorder %s23, 1
      %p214 = por %p212, %p213
      %p216 = scmp.ne.s32.totalorder %s201, %s215
      %p217 = scmp.eq.s32.totalorder %s23, 0
      %p218 = por %p216, %p217
      %s220 = sadd.s32 %s219, 1
      %p223 = scmp.eq.s32.totalorder %s17, 1
      %p224 = scmp.ne.s32.totalorder %s219, %s221
      %p225 = scmp.eq.s32.totalorder %s17, 0
      %p226 = por %p224, %p225
      %p227 = scmp.ne.s32.totalorder %s219, %s221
      %p228 = scmp.eq.s32.totalorder %s22, 1
      %p229 = por %p227, %p228
      %p230 = scmp.ne.s32.totalorder %s221, %s222
      %p231 = scmp.eq.s32.totalorder %s22, 0
      %p232 = por %p230, %p231
      %p233 = scmp.ne.s32.totalorder %s221, %s222
      %p234 = scmp.eq.s32.totalorder %s23, 1
      %p235 = por %p233, %p234
      %p237 = scmp.ne.s32.totalorder %s222, %s236
      %p238 = scmp.eq.s32.totalorder %s23, 0
      %p239 = por %p237, %p238
      %s241 = sadd.s32 %s240, 1
      %p244 = scmp.eq.s32.totalorder %s17, 1
      %p245 = scmp.ne.s32.totalorder %s240, %s242
      %p246 = scmp.eq.s32.totalorder %s17, 0
      %p247 = por %p245, %p246
      %p248 = scmp.ne.s32.totalorder %s240, %s242
      %p249 = scmp.eq.s32.totalorder %s22, 1
      %p250 = por %p248, %p249
      %p251 = scmp.ne.s32.totalorder %s242, %s243
      %p252 = scmp.eq.s32.totalorder %s22, 0
      %p253 = por %p251, %p252
      %p254 = scmp.ne.s32.totalorder %s242, %s243
      %p255 = scmp.eq.s32.totalorder %s23, 1
      %p256 = por %p254, %p255
      %p258 = scmp.ne.s32.totalorder %s243, %s257
      %p259 = scmp.eq.s32.totalorder %s23, 0
      %p260 = por %p258, %p259
      %s261 = ssub.s32 %s17, %s24
      %p262 = scmp.eq.s32.totalorder %s261, 0
      %s264 = sadd.s32 %s263, 1
      %s265 = scalar_select %p262, %s263, %s264
      %p268 = pneg %p262
      %p269 = scmp.eq.s32.totalorder %s17, 1
      %p270 = por %p268, %p269
      %p271 = scmp.ne.s32.totalorder %s263, %s266
      %p272 = scmp.eq.s32.totalorder %s17, 0
      %p273 = por %p271, %p272
      %p274 = scmp.ne.s32.totalorder %s263, %s266
      %p275 = scmp.eq.s32.totalorder %s22, 1
      %p276 = por %p274, %p275
      %p277 = scmp.ne.s32.totalorder %s266, %s267
      %p278 = scmp.eq.s32.totalorder %s22, 0
      %p279 = por %p277, %p278
      %p280 = scmp.ne.s32.totalorder %s266, %s267
      %p281 = scmp.eq.s32.totalorder %s23, 1
      %p282 = por %p280, %p281
      %p284 = scmp.ne.s32.totalorder %s267, %s283
      %p285 = scmp.eq.s32.totalorder %s23, 0
      %p286 = por %p284, %p285
      %p287 = scmp.le.s32.totalorder 1, %s17
      %p288 = scmp.lt.s32.totalorder %s17, 3
      %p289 = pnand %p287, %p288
      %p290 = pneg %p289
      // Predicated region
      $region9: #{mynet_forward.1} parent=5 // pred_check
        _
      $region10: #{mynet_forward.1} parent=5 // pred_check_branch
        %292 = sbr.rel (%p289) target = $region12
      $region11: #{mynet_forward.1} parent=5 // pred_region
        %s293 = ssub.s32 %s17, 1
        // Predicated region
        $region13: #{mynet_forward.1} parent=11 // pred_check
          %p294 = pneg %p64
        $region14: #{mynet_forward.1} parent=11 // pred_check_branch
          %296 = sbr.rel (%p294) target = $region16
        $region15: #{mynet_forward.1} parent=11 // pred_region
          _
        $region16: #{mynet_forward.1} parent=11 // pred_fallthru
          _
        // Predicated region
        $region17: #{mynet_forward.1} parent=11 // pred_check
          %p297 = pneg %p85
        $region18: #{mynet_forward.1} parent=11 // pred_check_branch
          %299 = sbr.rel (%p297) target = $region20
        $region19: #{mynet_forward.1} parent=11 // pred_region
          _
        $region20: #{mynet_forward.1} parent=11 // pred_fallthru
          _
        // Predicated region
        $region21: #{mynet_forward.1} parent=11 // pred_check
          %p300 = pneg %p106
        $region22: #{mynet_forward.1} parent=11 // pred_check_branch
          %302 = sbr.rel (%p300) target = $region24
        $region23: #{mynet_forward.1} parent=11 // pred_region
          _
        $region24: #{mynet_forward.1} parent=11 // pred_fallthru
          _
        // Predicated region
        $region25: #{mynet_forward.1} parent=11 // pred_check
          %p303 = pneg %p127
        $region26: #{mynet_forward.1} parent=11 // pred_check_branch
          %305 = sbr.rel (%p303) target = $region28
        $region27: #{mynet_forward.1} parent=11 // pred_region
          _
        $region28: #{mynet_forward.1} parent=11 // pred_fallthru
          _
        // Predicated region
        $region29: #{mynet_forward.1} parent=11 // pred_check
          %p306 = pneg %p148
        $region30: #{mynet_forward.1} parent=11 // pred_check_branch
          %308 = sbr.rel (%p306) target = $region32
        $region31: #{mynet_forward.1} parent=11 // pred_region
          _
        $region32: #{mynet_forward.1} parent=11 // pred_fallthru
          _
        // Predicated region
        $region33: #{mynet_forward.1} parent=11 // pred_check
          %p309 = pneg %p169
        $region34: #{mynet_forward.1} parent=11 // pred_check_branch
          %311 = sbr.rel (%p309) target = $region36
        $region35: #{mynet_forward.1} parent=11 // pred_region
          _
        $region36: #{mynet_forward.1} parent=11 // pred_fallthru
          _
        // Predicated region
        $region37: #{mynet_forward.1} parent=11 // pred_check
          %p312 = pneg %p190
        $region38: #{mynet_forward.1} parent=11 // pred_check_branch
          %314 = sbr.rel (%p312) target = $region40
        $region39: #{mynet_forward.1} parent=11 // pred_region
          _
        $region40: #{mynet_forward.1} parent=11 // pred_fallthru
          _
        // Predicated region
        $region41: #{mynet_forward.1} parent=11 // pred_check
          %p315 = pneg %p211
        $region42: #{mynet_forward.1} parent=11 // pred_check_branch
          %317 = sbr.rel (%p315) target = $region44
        $region43: #{mynet_forward.1} parent=11 // pred_region
          _
        $region44: #{mynet_forward.1} parent=11 // pred_fallthru
          _
        // Predicated region
        $region45: #{mynet_forward.1} parent=11 // pred_check
          %p318 = pneg %p232
        $region46: #{mynet_forward.1} parent=11 // pred_check_branch
          %320 = sbr.rel (%p318) target = $region48
        $region47: #{mynet_forward.1} parent=11 // pred_region
          _
        $region48: #{mynet_forward.1} parent=11 // pred_fallthru
          _
        // Predicated region
        $region49: #{mynet_forward.1} parent=11 // pred_check
          %p321 = pneg %p253
        $region50: #{mynet_forward.1} parent=11 // pred_check_branch
          %323 = sbr.rel (%p321) target = $region52
        $region51: #{mynet_forward.1} parent=11 // pred_region
          _
        $region52: #{mynet_forward.1} parent=11 // pred_fallthru
          _
      $region12: #{mynet_forward.1} parent=5 // pred_fallthru
        _
      %p324 = scmp.lt.s32.totalorder %s17, 2
      // Predicated region
      $region53: #{mynet_forward.1} parent=5 // pred_check
        %p325 = pneg %p324
      $region54: #{mynet_forward.1} parent=5 // pred_check_branch
        %327 = sbr.rel (%p325) target = $region56
      $region55: #{mynet_forward.1} parent=5 // pred_region
        // Predicated region
        $region57: #{mynet_forward.1} parent=55 // pred_check
          %p328 = pneg %p37
        $region58: #{mynet_forward.1} parent=55 // pred_check_branch
          %330 = sbr.rel (%p328) target = $region60
        $region59: #{mynet_forward.1} parent=55 // pred_region
          %s331 = sand.u32 %s27, 1
          %s332 = sand.u32 %s27, 1
          %s333 = smul.addr %s332, 32
          %s334 = scalar_lea.vmem [#allocation2], %s333
          %s335 = smul.addr %s17, 8
          %s336 = scalar_lea.vmem %s0, %s335
          // Predicated region
          $region61: #{mynet_forward.1} parent=59 // pred_check
            _
          $region62: #{mynet_forward.1} parent=59 // pred_check_branch
            %338 = sbr.rel (0) target = $region64
          $region63: #{mynet_forward.1} parent=59 // pred_region
            // Predicated region
            $region65: #{mynet_forward.1} parent=63 // pred_check
              _
            $region66: #{mynet_forward.1} parent=63 // pred_check_branch
              %340 = sbr.rel (0) target = $region68
            $region67: #{mynet_forward.1} parent=63 // pred_region
              // Predicated region
              $region80: #{mynet_forward.1} parent=67 // pred_check
                _
              $region81: #{mynet_forward.1} parent=67 // pred_check_branch
                %362 = sbr.rel (0) target = $region83
              $region82: #{mynet_forward.1} parent=67 // pred_region
                loop: start=0, step=1, limit=1
                $region84: #{mynet_forward.1} parent=82 // loop_pre_header
                  _
                $region85: #{mynet_forward.1} parent=82 // loop_header
                  %s364 = sphi 0, %s368
                  %p365 = scmp.ge.s32.totalorder %s364, 1
                  %s369 = sphi %s336, %s336
                  %s370 = sphi %s334, %s334
                $region86: #{mynet_forward.1} parent=82 // loop_header_branch
                  %367 = sbr.rel (%p365) target = $region90
                $region87: #{mynet_forward.1} parent=82 // loop_body
                  %v371 = vld [vmem:[%s369] sm:$0xff]
                  %372 = vst [vmem:[%s370] sm:$0xff] %v371
                  %v373 = vld [vmem:[%s369 + $0x10] sm:$0xff]
                  %374 = vst [vmem:[%s370 + $0x8] sm:$0xff] %v373
                  %v375 = vld [vmem:[%s369 + $0x20] sm:$0xff]
                  %376 = vst [vmem:[%s370 + $0x10] sm:$0xff] %v375
                  %v377 = vld [vmem:[%s369 + $0x30] sm:$0xff]
                  %378 = vst [vmem:[%s370 + $0x18] sm:$0xff] %v377
                $region88: #{mynet_forward.1} parent=82 // loop_footer
                  %s368 = sadd.s32 1, %s364
                $region89: #{mynet_forward.1} parent=82 // loop_footer_branch
                  %363 = sbr.rel target = $region85
                $region90: #{mynet_forward.1} parent=82 // loop_exit
                  _
              $region83: #{mynet_forward.1} parent=67 // pred_fallthru
                _
              // Predicated region
              $region91: #{mynet_forward.1} parent=67 // pred_check
                _
              $region92: #{mynet_forward.1} parent=67 // pred_check_branch
                %380 = sbr.rel target = $region94
              $region93: #{mynet_forward.1} parent=67 // pred_region
                _
              $region94: #{mynet_forward.1} parent=67 // pred_fallthru
                _
            $region68: #{mynet_forward.1} parent=63 // pred_fallthru
              _
            // Predicated region
            $region69: #{mynet_forward.1} parent=63 // pred_check
              _
            $region70: #{mynet_forward.1} parent=63 // pred_check_branch
              %342 = sbr.rel target = $region72
            $region71: #{mynet_forward.1} parent=63 // pred_region
              %s344 = ssub.s32 256, 1
              loop: start=0, step=1, limit=1
              $region73: #{mynet_forward.1} parent=71 // loop_pre_header
                _
              $region74: #{mynet_forward.1} parent=71 // loop_header
                %s346 = sphi 0, %s350
                %p347 = scmp.ge.s32.totalorder %s346, 1
                %s351 = sphi %s336, %s336
                %s352 = sphi %s334, %s334
              $region75: #{mynet_forward.1} parent=71 // loop_header_branch
                %349 = sbr.rel (%p347) target = $region79
              $region76: #{mynet_forward.1} parent=71 // loop_body
                %v353 = vld [vmem:[%s351] sm:%s344]
                %354 = vst [vmem:[%s352] sm:%s344] %v353
                %v355 = vld [vmem:[%s351 + $0x10] sm:%s344]
                %356 = vst [vmem:[%s352 + $0x8] sm:%s344] %v355
                %v357 = vld [vmem:[%s351 + $0x20] sm:%s344]
                %358 = vst [vmem:[%s352 + $0x10] sm:%s344] %v357
                %v359 = vld [vmem:[%s351 + $0x30] sm:%s344]
                %360 = vst [vmem:[%s352 + $0x18] sm:%s344] %v359
              $region77: #{mynet_forward.1} parent=71 // loop_footer
                %s350 = sadd.s32 1, %s346
              $region78: #{mynet_forward.1} parent=71 // loop_footer_branch
                %345 = sbr.rel target = $region74
              $region79: #{mynet_forward.1} parent=71 // loop_exit
                _
            $region72: #{mynet_forward.1} parent=63 // pred_fallthru
              _
          $region64: #{mynet_forward.1} parent=59 // pred_fallthru
            _
          %381 = vnop
        $region60: #{mynet_forward.1} parent=55 // pred_fallthru
          _
      $region56: #{mynet_forward.1} parent=5 // pred_fallthru
        _
      %p382 = scmp.le.s32.totalorder 1, %s17
      %p383 = scmp.lt.s32.totalorder %s17, 3
      %p384 = pnand %p382, %p383
      %p385 = pneg %p384
      // Predicated region
      $region95: #{mynet_forward.1} parent=5 // pred_check
        _
      $region96: #{mynet_forward.1} parent=5 // pred_check_branch
        %387 = sbr.rel (%p384) target = $region98
      $region97: #{mynet_forward.1} parent=5 // pred_region
        %s388 = ssub.s32 %s17, 1
        %s389 = sand.u32 %s30, 1
        %s390 = sand.u32 %s30, 1
        %s391 = smul.addr %s390, 32
        %s392 = scalar_lea.vmem [#allocation2], %s391
        // Predicated region
        $region99: #{mynet_forward.1} parent=97 // pred_check
          %p393 = pneg %p43
        $region100: #{mynet_forward.1} parent=97 // pred_check_branch
          %395 = sbr.rel (%p393) target = $region102
        $region101: #{mynet_forward.1} parent=97 // pred_region
          _
        $region102: #{mynet_forward.1} parent=97 // pred_fallthru
          _
        %s396 = sand.u32 %s30, 1
        %s397 = sand.u32 %s30, 1
        %s398 = smul.addr %s397, 32
        %s399 = scalar_lea.vmem [#allocation2], %s398
        %p400 = pneg %p43
        %p401 = pneg %p40
        %p402 = pneg %p64
        %p403 = pneg %p61
        %p404 = pneg %p85
        %p405 = pneg %p82
        %p406 = pneg %p106
        %p407 = pneg %p103
        %p408 = pneg %p127
        %p409 = pneg %p124
        %p410 = pneg %p148
        %p411 = pneg %p145
        %p412 = pneg %p169
        %p413 = pneg %p166
        %p414 = pneg %p190
        %p415 = pneg %p187
        %p416 = pneg %p211
        %p417 = pneg %p208
        %p418 = pneg %p232
        %p419 = pneg %p229
        %p420 = pneg %p253
        %p421 = pneg %p250
        %p422 = pneg %p279
        %p423 = pneg %p276
        %p424 = scmp.lt.s32.totalorder %s22, 1
        %s425 = scalar_select %p424, %s22, 1
        %s426 = smul.addr %s425, 8
        %s427 = scalar_lea.vmem %s11, %s426
        %p428 = scmp.lt.s32.totalorder %s22, 1
        %s429 = scalar_select %p428, %s22, 1
        %s430 = smul.addr %s429, 8
        %s431 = scalar_lea.vmem %s11, %s430
        %v433 = vld [vmem:[%s392] sm:$0xff]
        %s434 = scalar_lea.vmem %s392, 8 [#allocation2]
        %v435 = vld [vmem:[%s434] sm:$0xff]
        %s436 = scalar_lea.vmem %s392, 16 [#allocation2]
        %v437 = vld [vmem:[%s436] sm:$0xff]
        %s438 = scalar_lea.vmem %s392, 24 [#allocation2]
        %v439 = vld [vmem:[%s438] sm:$0xff]
        %v440 = vpack.c.bf16 %v433, %v433
        %v441 = vpack.c.bf16 %v435, %v435
        %v442 = vpack.c.bf16 %v437, %v437
        %v443 = vpack.c.bf16 %v439, %v439
        %v445 = vrot.slane %v433, 1
        %vm447 = vcmask 1046528
        %v448 = vsel %vm447, %v445, %v445
        %v449 = vpack.c.bf16 %v448, %v448
        %v451 = vrot.slane %v435, 1
        %v453 = vsel %vm447, %v451, %v451
        %v454 = vpack.c.bf16 %v453, %v453
        %v456 = vrot.slane %v437, 1
        %v458 = vsel %vm447, %v456, %v456
        %v459 = vpack.c.bf16 %v458, %v458
        %v461 = vrot.slane %v439, 1
        %v463 = vsel %vm447, %v461, %v461
        %v464 = vpack.c.bf16 %v463, %v463
        %v465 = vld [vmem:[%s1] sm:$0xff]
        %v466 = vld [vmem:[%s1 + $0x8] sm:$0xff]
        %v467 = vld [vmem:[%s1 + $0x10] sm:$0xff]
        %v468 = vld [vmem:[%s1 + $0x18] sm:$0xff]
        %v469 = vld [vmem:[%s1 + $0x20] sm:$0xff]
        %v470 = vld [vmem:[%s1 + $0x28] sm:$0xff]
        %v471 = vld [vmem:[%s1 + $0x30] sm:$0xff]
        %v472 = vld [vmem:[%s1 + $0x38] sm:$0xff]
        %v473 = vld [vmem:[%s1 + $0x40] sm:$0xff]
        %v474 = vld [vmem:[%s1 + $0x48] sm:$0xff]
        %v475 = vld [vmem:[%s1 + $0x50] sm:$0xff]
        %v476 = vld [vmem:[%s1 + $0x58] sm:$0xff]
        %v477 = vld [vmem:[%s1 + $0x60] sm:$0xff]
        %v478 = vld [vmem:[%s1 + $0x68] sm:$0xff]
        %v479 = vld [vmem:[%s1 + $0x70] sm:$0xff]
        %v480 = vld [vmem:[%s1 + $0x78] sm:$0xff]
        %s481 = scalar_lea.vmem %s1, 128
        %v482 = vld [vmem:[%s481] sm:$0xff]
        %v483 = vld [vmem:[%s481 + $0x8] sm:$0xff]
        %v484 = vld [vmem:[%s481 + $0x10] sm:$0xff]
        %v485 = vld [vmem:[%s481 + $0x18] sm:$0xff]
        %v486 = vld [vmem:[%s481 + $0x20] sm:$0xff]
        %v487 = vld [vmem:[%s481 + $0x28] sm:$0xff]
        %v488 = vld [vmem:[%s481 + $0x30] sm:$0xff]
        %v489 = vld [vmem:[%s481 + $0x38] sm:$0xff]
        %v490 = vld [vmem:[%s481 + $0x40] sm:$0xff]
        %v491 = vld [vmem:[%s481 + $0x48] sm:$0xff]
        %v492 = vld [vmem:[%s481 + $0x50] sm:$0xff]
        %v493 = vld [vmem:[%s481 + $0x58] sm:$0xff]
        %v494 = vld [vmem:[%s481 + $0x60] sm:$0xff]
        %v495 = vld [vmem:[%s481 + $0x68] sm:$0xff]
        %v496 = vld [vmem:[%s481 + $0x70] sm:$0xff]
        %v497 = vld [vmem:[%s481 + $0x78] sm:$0xff]
        %v514 = vunpack.c.l.b16 %v482
        %v515 = vunpack.c.h.b16 %v482
        %v516 = vunpack.c.l.b16 %v483
        %v517 = vunpack.c.h.b16 %v483
        %v518 = vunpack.c.l.b16 %v484
        %v519 = vunpack.c.h.b16 %v484
        %v520 = vunpack.c.l.b16 %v485
        %v521 = vunpack.c.h.b16 %v485
        %v522 = vunpack.c.l.b16 %v486
        %v523 = vunpack.c.h.b16 %v486
        %v524 = vunpack.c.l.b16 %v487
        %v525 = vunpack.c.h.b16 %v487
        %v526 = vunpack.c.l.b16 %v488
        %v527 = vunpack.c.h.b16 %v488
        %v528 = vunpack.c.l.b16 %v489
        %v529 = vunpack.c.h.b16 %v489
        %v530 = vunpack.c.l.b16 %v490
        %v531 = vunpack.c.h.b16 %v490
        %v532 = vunpack.c.l.b16 %v491
        %v533 = vunpack.c.h.b16 %v491
        %v534 = vunpack.c.l.b16 %v492
        %v535 = vunpack.c.h.b16 %v492
        %v536 = vunpack.c.l.b16 %v493
        %v537 = vunpack.c.h.b16 %v493
        %v538 = vunpack.c.l.b16 %v494
        %v539 = vunpack.c.h.b16 %v494
        %v540 = vunpack.c.l.b16 %v495
        %v541 = vunpack.c.h.b16 %v495
        %v542 = vunpack.c.l.b16 %v496
        %v543 = vunpack.c.h.b16 %v496
        %v544 = vunpack.c.l.b16 %v497
        %v545 = vunpack.c.h.b16 %v497
        %v546 = vpack.c.b16 %v516, %v514
        %v547 = vpack.c.b16 %v517, %v515
        %v548 = vpack.c.b16 %v520, %v518
        %v549 = vpack.c.b16 %v521, %v519
        %v550 = vpack.c.b16 %v524, %v522
        %v551 = vpack.c.b16 %v525, %v523
        %v552 = vpack.c.b16 %v528, %v526
        %v553 = vpack.c.b16 %v529, %v527
        %v554 = vpack.c.b16 %v532, %v530
        %v555 = vpack.c.b16 %v533, %v531
        %v556 = vpack.c.b16 %v536, %v534
        %v557 = vpack.c.b16 %v537, %v535
        %v558 = vpack.c.b16 %v540, %v538
        %v559 = vpack.c.b16 %v541, %v539
        %v560 = vpack.c.b16 %v544, %v542
        %v561 = vpack.c.b16 %v545, %v543
        %578 = vmatprep.subr.bf16.mxu0 %v561
        %579 = vmatpush1.bf16.msra.mxu0 %v560
        %580 = vmatprep.subr.bf16.mxu0 %v559
        %581 = vmatpush1.bf16.msra.mxu0 %v558
        %582 = vmatprep.subr.bf16.mxu0 %v557
        %583 = vmatpush1.bf16.msra.mxu0 %v556
        %584 = vmatprep.subr.bf16.mxu0 %v555
        %585 = vmatpush1.bf16.msra.mxu0 %v554
        %586 = vmatprep.subr.bf16.mxu0 %v553
        %587 = vmatpush1.bf16.msra.mxu0 %v552
        %588 = vmatprep.subr.bf16.mxu0 %v551
        %589 = vmatpush1.bf16.msra.mxu0 %v550
        %590 = vmatprep.subr.bf16.mxu0 %v549
        %591 = vmatpush1.bf16.msra.mxu0 %v548
        %592 = vmatprep.subr.bf16.mxu0 %v547
        %593 = vmatpush1.bf16.msra.mxu0 %v546
        %594 = vmatprep.subr.bf16.mxu0 0
        %595 = vmatpush2.bf16.msra.mxu0 0
        %596 = vmatprep.subr.bf16.mxu0 0
        %597 = vmatpush2.bf16.msra.mxu0 0
        %598 = vmatprep.subr.bf16.mxu0 0
        %599 = vmatpush2.bf16.msra.mxu0 0
        %600 = vmatprep.subr.bf16.mxu0 0
        %601 = vmatpush2.bf16.msra.mxu0 0
        %602 = vmatprep.subr.bf16.mxu0 0
        %603 = vmatpush2.bf16.msra.mxu0 0
        %604 = vmatprep.subr.bf16.mxu0 0
        %605 = vmatpush2.bf16.msra.mxu0 0
        %606 = vmatprep.subr.bf16.mxu0 0
        %607 = vmatpush2.bf16.msra.mxu0 0
        %608 = vmatprep.subr.bf16.mxu0 0
        %609 = vmatpush2.bf16.msra.mxu0 0
        %610 = vmatprep.mubr.bf16.mxu0 0
        %611 = vmatmul.mubr.bf16.gmra.mxu0 %v441
        %v612 = vpop.f32.mrf.mxu0
        %v613 = vadd.f32 0.0, %v612
        %v614 = vpop.f32.mrf.mxu0
        %v615 = vadd.f32 0.0, %v614
        %v616 = vpop.f32.mrf.mxu0
        %v617 = vpop.f32.mrf.mxu0
        %618 = vdwg.mxu0
        %v635 = vunpack.c.l.b16 %v465
        %v636 = vunpack.c.h.b16 %v465
        %v637 = vunpack.c.l.b16 %v466
        %v638 = vunpack.c.h.b16 %v466
        %v639 = vunpack.c.l.b16 %v467
        %v640 = vunpack.c.h.b16 %v467
        %v641 = vunpack.c.l.b16 %v468
        %v642 = vunpack.c.h.b16 %v468
        %v643 = vunpack.c.l.b16 %v469
        %v644 = vunpack.c.h.b16 %v469
        %v645 = vunpack.c.l.b16 %v470
        %v646 = vunpack.c.h.b16 %v470
        %v647 = vunpack.c.l.b16 %v471
        %v648 = vunpack.c.h.b16 %v471
        %v649 = vunpack.c.l.b16 %v472
        %v650 = vunpack.c.h.b16 %v472
        %v651 = vunpack.c.l.b16 %v473
        %v652 = vunpack.c.h.b16 %v473
        %v653 = vunpack.c.l.b16 %v474
        %v654 = vunpack.c.h.b16 %v474
        %v655 = vunpack.c.l.b16 %v475
        %v656 = vunpack.c.h.b16 %v475
        %v657 = vunpack.c.l.b16 %v476
        %v658 = vunpack.c.h.b16 %v476
        %v659 = vunpack.c.l.b16 %v477
        %v660 = vunpack.c.h.b16 %v477
        %v661 = vunpack.c.l.b16 %v478
        %v662 = vunpack.c.h.b16 %v478
        %v663 = vunpack.c.l.b16 %v479
        %v664 = vunpack.c.h.b16 %v479
        %v665 = vunpack.c.l.b16 %v480
        %v666 = vunpack.c.h.b16 %v480
        %v667 = vpack.c.b16 %v637, %v635
        %v668 = vpack.c.b16 %v638, %v636
        %v669 = vpack.c.b16 %v641, %v639
        %v670 = vpack.c.b16 %v642, %v640
        %v671 = vpack.c.b16 %v645, %v643
        %v672 = vpack.c.b16 %v646, %v644
        %v673 = vpack.c.b16 %v649, %v647
        %v674 = vpack.c.b16 %v650, %v648
        %v675 = vpack.c.b16 %v653, %v651
        %v676 = vpack.c.b16 %v654, %v652
        %v677 = vpack.c.b16 %v657, %v655
        %v678 = vpack.c.b16 %v658, %v656
        %v679 = vpack.c.b16 %v661, %v659
        %v680 = vpack.c.b16 %v662, %v660
        %v681 = vpack.c.b16 %v665, %v663
        %v682 = vpack.c.b16 %v666, %v664
        %699 = vmatprep.subr.bf16.mxu0 %v682
        %700 = vmatpush1.bf16.msra.mxu0 %v681
        %701 = vmatprep.subr.bf16.mxu0 %v680
        %702 = vmatpush1.bf16.msra.mxu0 %v679
        %703 = vmatprep.subr.bf16.mxu0 %v678
        %704 = vmatpush1.bf16.msra.mxu0 %v677
        %705 = vmatprep.subr.bf16.mxu0 %v676
        %706 = vmatpush1.bf16.msra.mxu0 %v675
        %707 = vmatprep.subr.bf16.mxu0 %v674
        %708 = vmatpush1.bf16.msra.mxu0 %v673
        %709 = vmatprep.subr.bf16.mxu0 %v672
        %710 = vmatpush1.bf16.msra.mxu0 %v671
        %711 = vmatprep.subr.bf16.mxu0 %v670
        %712 = vmatpush1.bf16.msra.mxu0 %v669
        %713 = vmatprep.subr.bf16.mxu0 %v668
        %714 = vmatpush1.bf16.msra.mxu0 %v667
        %715 = vmatprep.subr.bf16.mxu0 0
        %716 = vmatpush2.bf16.msra.mxu0 0
        %717 = vmatprep.subr.bf16.mxu0 0
        %718 = vmatpush2.bf16.msra.mxu0 0
        %719 = vmatprep.subr.bf16.mxu0 0
        %720 = vmatpush2.bf16.msra.mxu0 0
        %721 = vmatprep.subr.bf16.mxu0 0
        %722 = vmatpush2.bf16.msra.mxu0 0
        %723 = vmatprep.subr.bf16.mxu0 0
        %724 = vmatpush2.bf16.msra.mxu0 0
        %725 = vmatprep.subr.bf16.mxu0 0
        %726 = vmatpush2.bf16.msra.mxu0 0
        %727 = vmatprep.subr.bf16.mxu0 0
        %728 = vmatpush2.bf16.msra.mxu0 0
        %729 = vmatprep.subr.bf16.mxu0 0
        %730 = vmatpush2.bf16.msra.mxu0 0
        %731 = vmatprep.mubr.bf16.mxu0 0
        %732 = vmatmul.mubr.bf16.gmra.mxu0 %v440
        %v733 = vpop.f32.mrf.mxu0
        %v734 = vadd.f32 %v613, %v733
        %v735 = vpop.f32.mrf.mxu0
        %v736 = vadd.f32 %v615, %v735
        %v737 = vpop.f32.mrf.mxu0
        %v738 = vpop.f32.mrf.mxu0
        %739 = vdwg.mxu0
        %s740 = scalar_lea.vmem %s1, 256
        %v741 = vld [vmem:[%s740] sm:$0xff]
        %v742 = vld [vmem:[%s740 + $0x8] sm:$0xff]
        %v743 = vld [vmem:[%s740 + $0x10] sm:$0xff]
        %v744 = vld [vmem:[%s740 + $0x18] sm:$0xff]
        %v745 = vld [vmem:[%s740 + $0x20] sm:$0xff]
        %v746 = vld [vmem:[%s740 + $0x28] sm:$0xff]
        %v747 = vld [vmem:[%s740 + $0x30] sm:$0xff]
        %v748 = vld [vmem:[%s740 + $0x38] sm:$0xff]
        %v749 = vld [vmem:[%s740 + $0x40] sm:$0xff]
        %v750 = vld [vmem:[%s740 + $0x48] sm:$0xff]
        %v751 = vld [vmem:[%s740 + $0x50] sm:$0xff]
        %v752 = vld [vmem:[%s740 + $0x58] sm:$0xff]
        %v753 = vld [vmem:[%s740 + $0x60] sm:$0xff]
        %v754 = vld [vmem:[%s740 + $0x68] sm:$0xff]
        %v755 = vld [vmem:[%s740 + $0x70] sm:$0xff]
        %v756 = vld [vmem:[%s740 + $0x78] sm:$0xff]
        %v773 = vunpack.c.l.b16 %v741
        %v774 = vunpack.c.h.b16 %v741
        %v775 = vunpack.c.l.b16 %v742
        %v776 = vunpack.c.h.b16 %v742
        %v777 = vunpack.c.l.b16 %v743
        %v778 = vunpack.c.h.b16 %v743
        %v779 = vunpack.c.l.b16 %v744
        %v780 = vunpack.c.h.b16 %v744
        %v781 = vunpack.c.l.b16 %v745
        %v782 = vunpack.c.h.b16 %v745
        %v783 = vunpack.c.l.b16 %v746
        %v784 = vunpack.c.h.b16 %v746
        %v785 = vunpack.c.l.b16 %v747
        %v786 = vunpack.c.h.b16 %v747
        %v787 = vunpack.c.l.b16 %v748
        %v788 = vunpack.c.h.b16 %v748
        %v789 = vunpack.c.l.b16 %v749
        %v790 = vunpack.c.h.b16 %v749
        %v791 = vunpack.c.l.b16 %v750
        %v792 = vunpack.c.h.b16 %v750
        %v793 = vunpack.c.l.b16 %v751
        %v794 = vunpack.c.h.b16 %v751
        %v795 = vunpack.c.l.b16 %v752
        %v796 = vunpack.c.h.b16 %v752
        %v797 = vunpack.c.l.b16 %v753
        %v798 = vunpack.c.h.b16 %v753
        %v799 = vunpack.c.l.b16 %v754
        %v800 = vunpack.c.h.b16 %v754
        %v801 = vunpack.c.l.b16 %v755
        %v802 = vunpack.c.h.b16 %v755
        %v803 = vunpack.c.l.b16 %v756
        %v804 = vunpack.c.h.b16 %v756
        %v805 = vpack.c.b16 %v775, %v773
        %v806 = vpack.c.b16 %v776, %v774
        %v807 = vpack.c.b16 %v779, %v777
        %v808 = vpack.c.b16 %v780, %v778
        %v809 = vpack.c.b16 %v783, %v781
        %v810 = vpack.c.b16 %v784, %v782
        %v811 = vpack.c.b16 %v787, %v785
        %v812 = vpack.c.b16 %v788, %v786
        %v813 = vpack.c.b16 %v791, %v789
        %v814 = vpack.c.b16 %v792, %v790
        %v815 = vpack.c.b16 %v795, %v793
        %v816 = vpack.c.b16 %v796, %v794
        %v817 = vpack.c.b16 %v799, %v797
        %v818 = vpack.c.b16 %v800, %v798
        %v819 = vpack.c.b16 %v803, %v801
        %v820 = vpack.c.b16 %v804, %v802
        %837 = vmatprep.subr.bf16.mxu0 %v820
        %838 = vmatpush1.bf16.msra.mxu0 %v819
        %839 = vmatprep.subr.bf16.mxu0 %v818
        %840 = vmatpush1.bf16.msra.mxu0 %v817
        %841 = vmatprep.subr.bf16.mxu0 %v816
        %842 = vmatpush1.bf16.msra.mxu0 %v815
        %843 = vmatprep.subr.bf16.mxu0 %v814
        %844 = vmatpush1.bf16.msra.mxu0 %v813
        %845 = vmatprep.subr.bf16.mxu0 %v812
        %846 = vmatpush1.bf16.msra.mxu0 %v811
        %847 = vmatprep.subr.bf16.mxu0 %v810
        %848 = vmatpush1.bf16.msra.mxu0 %v809
        %849 = vmatprep.subr.bf16.mxu0 %v808
        %850 = vmatpush1.bf16.msra.mxu0 %v807
        %851 = vmatprep.subr.bf16.mxu0 %v806
        %852 = vmatpush1.bf16.msra.mxu0 %v805
        %853 = vmatprep.subr.bf16.mxu0 0
        %854 = vmatpush2.bf16.msra.mxu0 0
        %855 = vmatprep.subr.bf16.mxu0 0
        %856 = vmatpush2.bf16.msra.mxu0 0
        %857 = vmatprep.subr.bf16.mxu0 0
        %858 = vmatpush2.bf16.msra.mxu0 0
        %859 = vmatprep.subr.bf16.mxu0 0
        %860 = vmatpush2.bf16.msra.mxu0 0
        %861 = vmatprep.subr.bf16.mxu0 0
        %862 = vmatpush2.bf16.msra.mxu0 0
        %863 = vmatprep.subr.bf16.mxu0 0
        %864 = vmatpush2.bf16.msra.mxu0 0
        %865 = vmatprep.subr.bf16.mxu0 0
        %866 = vmatpush2.bf16.msra.mxu0 0
        %867 = vmatprep.subr.bf16.mxu0 0
        %868 = vmatpush2.bf16.msra.mxu0 0
        %869 = vmatprep.mubr.bf16.mxu0 0
        %870 = vmatmul.mubr.bf16.gmra.mxu0 %v442
        %v871 = vpop.f32.mrf.mxu0
        %v872 = vadd.f32 0.0, %v871
        %v873 = vpop.f32.mrf.mxu0
        %v874 = vadd.f32 0.0, %v873
        %v875 = vpop.f32.mrf.mxu0
        %v876 = vpop.f32.mrf.mxu0
        %877 = vdwg.mxu0
        %v878 = vadd.f32 %v734, %v872
        %v879 = vadd.f32 %v736, %v874
        %s880 = scalar_lea.vmem %s1, 384
        %v881 = vld [vmem:[%s880] sm:$0xff]
        %v882 = vld [vmem:[%s880 + $0x8] sm:$0xff]
        %v883 = vld [vmem:[%s880 + $0x10] sm:$0xff]
        %v884 = vld [vmem:[%s880 + $0x18] sm:$0xff]
        %v885 = vld [vmem:[%s880 + $0x20] sm:$0xff]
        %v886 = vld [vmem:[%s880 + $0x28] sm:$0xff]
        %v887 = vld [vmem:[%s880 + $0x30] sm:$0xff]
        %v888 = vld [vmem:[%s880 + $0x38] sm:$0xff]
        %v889 = vld [vmem:[%s880 + $0x40] sm:$0xff]
        %v890 = vld [vmem:[%s880 + $0x48] sm:$0xff]
        %v891 = vld [vmem:[%s880 + $0x50] sm:$0xff]
        %v892 = vld [vmem:[%s880 + $0x58] sm:$0xff]
        %v893 = vld [vmem:[%s880 + $0x60] sm:$0xff]
        %v894 = vld [vmem:[%s880 + $0x68] sm:$0xff]
        %v895 = vld [vmem:[%s880 + $0x70] sm:$0xff]
        %v896 = vld [vmem:[%s880 + $0x78] sm:$0xff]
        %v913 = vunpack.c.l.b16 %v881
        %v914 = vunpack.c.h.b16 %v881
        %v915 = vunpack.c.l.b16 %v882
        %v916 = vunpack.c.h.b16 %v882
        %v917 = vunpack.c.l.b16 %v883
        %v918 = vunpack.c.h.b16 %v883
        %v919 = vunpack.c.l.b16 %v884
        %v920 = vunpack.c.h.b16 %v884
        %v921 = vunpack.c.l.b16 %v885
        %v922 = vunpack.c.h.b16 %v885
        %v923 = vunpack.c.l.b16 %v886
        %v924 = vunpack.c.h.b16 %v886
        %v925 = vunpack.c.l.b16 %v887
        %v926 = vunpack.c.h.b16 %v887
        %v927 = vunpack.c.l.b16 %v888
        %v928 = vunpack.c.h.b16 %v888
        %v929 = vunpack.c.l.b16 %v889
        %v930 = vunpack.c.h.b16 %v889
        %v931 = vunpack.c.l.b16 %v890
        %v932 = vunpack.c.h.b16 %v890
        %v933 = vunpack.c.l.b16 %v891
        %v934 = vunpack.c.h.b16 %v891
        %v935 = vunpack.c.l.b16 %v892
        %v936 = vunpack.c.h.b16 %v892
        %v937 = vunpack.c.l.b16 %v893
        %v938 = vunpack.c.h.b16 %v893
        %v939 = vunpack.c.l.b16 %v894
        %v940 = vunpack.c.h.b16 %v894
        %v941 = vunpack.c.l.b16 %v895
        %v942 = vunpack.c.h.b16 %v895
        %v943 = vunpack.c.l.b16 %v896
        %v944 = vunpack.c.h.b16 %v896
        %v945 = vpack.c.b16 %v915, %v913
        %v946 = vpack.c.b16 %v916, %v914
        %v947 = vpack.c.b16 %v919, %v917
        %v948 = vpack.c.b16 %v920, %v918
        %v949 = vpack.c.b16 %v923, %v921
        %v950 = vpack.c.b16 %v924, %v922
        %v951 = vpack.c.b16 %v927, %v925
        %v952 = vpack.c.b16 %v928, %v926
        %v953 = vpack.c.b16 %v931, %v929
        %v954 = vpack.c.b16 %v932, %v930
        %v955 = vpack.c.b16 %v935, %v933
        %v956 = vpack.c.b16 %v936, %v934
        %v957 = vpack.c.b16 %v939, %v937
        %v958 = vpack.c.b16 %v940, %v938
        %v959 = vpack.c.b16 %v943, %v941
        %v960 = vpack.c.b16 %v944, %v942
        %977 = vmatprep.subr.bf16.mxu0 %v960
        %978 = vmatpush1.bf16.msra.mxu0 %v959
        %979 = vmatprep.subr.bf16.mxu0 %v958
        %980 = vmatpush1.bf16.msra.mxu0 %v957
        %981 = vmatprep.subr.bf16.mxu0 %v956
        %982 = vmatpush1.bf16.msra.mxu0 %v955
        %983 = vmatprep.subr.bf16.mxu0 %v954
        %984 = vmatpush1.bf16.msra.mxu0 %v953
        %985 = vmatprep.subr.bf16.mxu0 %v952
        %986 = vmatpush1.bf16.msra.mxu0 %v951
        %987 = vmatprep.subr.bf16.mxu0 %v950
        %988 = vmatpush1.bf16.msra.mxu0 %v949
        %989 = vmatprep.subr.bf16.mxu0 %v948
        %990 = vmatpush1.bf16.msra.mxu0 %v947
        %991 = vmatprep.subr.bf16.mxu0 %v946
        %992 = vmatpush1.bf16.msra.mxu0 %v945
        %993 = vmatprep.subr.bf16.mxu0 0
        %994 = vmatpush2.bf16.msra.mxu0 0
        %995 = vmatprep.subr.bf16.mxu0 0
        %996 = vmatpush2.bf16.msra.mxu0 0
        %997 = vmatprep.subr.bf16.mxu0 0
        %998 = vmatpush2.bf16.msra.mxu0 0
        %999 = vmatprep.subr.bf16.mxu0 0
        %1000 = vmatpush2.bf16.msra.mxu0 0
        %1001 = vmatprep.subr.bf16.mxu0 0
        %1002 = vmatpush2.bf16.msra.mxu0 0
        %1003 = vmatprep.subr.bf16.mxu0 0
        %1004 = vmatpush2.bf16.msra.mxu0 0
        %1005 = vmatprep.subr.bf16.mxu0 0
        %1006 = vmatpush2.bf16.msra.mxu0 0
        %1007 = vmatprep.subr.bf16.mxu0 0
        %1008 = vmatpush2.bf16.msra.mxu0 0
        %1009 = vmatprep.mubr.bf16.mxu0 0
        %1010 = vmatmul.mubr.bf16.gmra.mxu0 %v443
        %v1011 = vpop.f32.mrf.mxu0
        %v1012 = vadd.f32 0.0, %v1011
        %v1013 = vpop.f32.mrf.mxu0
        %v1014 = vadd.f32 0.0, %v1013
        %v1015 = vpop.f32.mrf.mxu0
        %v1016 = vpop.f32.mrf.mxu0
        %1017 = vdwg.mxu0
        %v1018 = vadd.f32 %v878, %v1012
        %v1019 = vadd.f32 %v879, %v1014
        %s1020 = scalar_lea.vmem %s1, 512
        %v1021 = vld [vmem:[%s1020] sm:$0xff]
        %v1022 = vld [vmem:[%s1020 + $0x8] sm:$0xff]
        %v1023 = vld [vmem:[%s1020 + $0x10] sm:$0xff]
        %v1024 = vld [vmem:[%s1020 + $0x18] sm:$0xff]
        %v1025 = vld [vmem:[%s1020 + $0x20] sm:$0xff]
        %v1026 = vld [vmem:[%s1020 + $0x28] sm:$0xff]
        %v1027 = vld [vmem:[%s1020 + $0x30] sm:$0xff]
        %v1028 = vld [vmem:[%s1020 + $0x38] sm:$0xff]
        %v1029 = vld [vmem:[%s1020 + $0x40] sm:$0xff]
        %v1030 = vld [vmem:[%s1020 + $0x48] sm:$0xff]
        %v1031 = vld [vmem:[%s1020 + $0x50] sm:$0xff]
        %v1032 = vld [vmem:[%s1020 + $0x58] sm:$0xff]
        %v1033 = vld [vmem:[%s1020 + $0x60] sm:$0xff]
        %v1034 = vld [vmem:[%s1020 + $0x68] sm:$0xff]
        %v1035 = vld [vmem:[%s1020 + $0x70] sm:$0xff]
        %v1036 = vld [vmem:[%s1020 + $0x78] sm:$0xff]
        %v1053 = vunpack.c.l.b16 %v1021
        %v1054 = vunpack.c.h.b16 %v1021
        %v1055 = vunpack.c.l.b16 %v1022
        %v1056 = vunpack.c.h.b16 %v1022
        %v1057 = vunpack.c.l.b16 %v1023
        %v1058 = vunpack.c.h.b16 %v1023
        %v1059 = vunpack.c.l.b16 %v1024
        %v1060 = vunpack.c.h.b16 %v1024
        %v1061 = vunpack.c.l.b16 %v1025
        %v1062 = vunpack.c.h.b16 %v1025
        %v1063 = vunpack.c.l.b16 %v1026
        %v1064 = vunpack.c.h.b16 %v1026
        %v1065 = vunpack.c.l.b16 %v1027
        %v1066 = vunpack.c.h.b16 %v1027
        %v1067 = vunpack.c.l.b16 %v1028
        %v1068 = vunpack.c.h.b16 %v1028
        %v1069 = vunpack.c.l.b16 %v1029
        %v1070 = vunpack.c.h.b16 %v1029
        %v1071 = vunpack.c.l.b16 %v1030
        %v1072 = vunpack.c.h.b16 %v1030
        %v1073 = vunpack.c.l.b16 %v1031
        %v1074 = vunpack.c.h.b16 %v1031
        %v1075 = vunpack.c.l.b16 %v1032
        %v1076 = vunpack.c.h.b16 %v1032
        %v1077 = vunpack.c.l.b16 %v1033
        %v1078 = vunpack.c.h.b16 %v1033
        %v1079 = vunpack.c.l.b16 %v1034
        %v1080 = vunpack.c.h.b16 %v1034
        %v1081 = vunpack.c.l.b16 %v1035
        %v1082 = vunpack.c.h.b16 %v1035
        %v1083 = vunpack.c.l.b16 %v1036
        %v1084 = vunpack.c.h.b16 %v1036
        %v1085 = vpack.c.b16 %v1055, %v1053
        %v1086 = vpack.c.b16 %v1056, %v1054
        %v1087 = vpack.c.b16 %v1059, %v1057
        %v1088 = vpack.c.b16 %v1060, %v1058
        %v1089 = vpack.c.b16 %v1063, %v1061
        %v1090 = vpack.c.b16 %v1064, %v1062
        %v1091 = vpack.c.b16 %v1067, %v1065
        %v1092 = vpack.c.b16 %v1068, %v1066
        %v1093 = vpack.c.b16 %v1071, %v1069
        %v1094 = vpack.c.b16 %v1072, %v1070
        %v1095 = vpack.c.b16 %v1075, %v1073
        %v1096 = vpack.c.b16 %v1076, %v1074
        %v1097 = vpack.c.b16 %v1079, %v1077
        %v1098 = vpack.c.b16 %v1080, %v1078
        %v1099 = vpack.c.b16 %v1083, %v1081
        %v1100 = vpack.c.b16 %v1084, %v1082
        %1117 = vmatprep.subr.bf16.mxu0 %v1100
        %1118 = vmatpush1.bf16.msra.mxu0 %v1099
        %1119 = vmatprep.subr.bf16.mxu0 %v1098
        %1120 = vmatpush1.bf16.msra.mxu0 %v1097
        %1121 = vmatprep.subr.bf16.mxu0 %v1096
        %1122 = vmatpush1.bf16.msra.mxu0 %v1095
        %1123 = vmatprep.subr.bf16.mxu0 %v1094
        %1124 = vmatpush1.bf16.msra.mxu0 %v1093
        %1125 = vmatprep.subr.bf16.mxu0 %v1092
        %1126 = vmatpush1.bf16.msra.mxu0 %v1091
        %1127 = vmatprep.subr.bf16.mxu0 %v1090
        %1128 = vmatpush1.bf16.msra.mxu0 %v1089
        %1129 = vmatprep.subr.bf16.mxu0 %v1088
        %1130 = vmatpush1.bf16.msra.mxu0 %v1087
        %1131 = vmatprep.subr.bf16.mxu0 %v1086
        %1132 = vmatpush1.bf16.msra.mxu0 %v1085
        %1133 = vmatprep.subr.bf16.mxu0 0
        %1134 = vmatpush2.bf16.msra.mxu0 0
        %1135 = vmatprep.subr.bf16.mxu0 0
        %1136 = vmatpush2.bf16.msra.mxu0 0
        %1137 = vmatprep.subr.bf16.mxu0 0
        %1138 = vmatpush2.bf16.msra.mxu0 0
        %1139 = vmatprep.subr.bf16.mxu0 0
        %1140 = vmatpush2.bf16.msra.mxu0 0
        %1141 = vmatprep.subr.bf16.mxu0 0
        %1142 = vmatpush2.bf16.msra.mxu0 0
        %1143 = vmatprep.subr.bf16.mxu0 0
        %1144 = vmatpush2.bf16.msra.mxu0 0
        %1145 = vmatprep.subr.bf16.mxu0 0
        %1146 = vmatpush2.bf16.msra.mxu0 0
        %1147 = vmatprep.subr.bf16.mxu0 0
        %1148 = vmatpush2.bf16.msra.mxu0 0
        %1149 = vmatprep.mubr.bf16.mxu0 0
        %1150 = vmatmul.mubr.bf16.gmra.mxu0 %v449
        %v1151 = vpop.f32.mrf.mxu0
        %v1152 = vadd.f32 0.0, %v1151
        %v1153 = vpop.f32.mrf.mxu0
        %v1154 = vadd.f32 0.0, %v1153
        %v1155 = vpop.f32.mrf.mxu0
        %v1156 = vpop.f32.mrf.mxu0
        %1157 = vdwg.mxu0
        %v1158 = vadd.f32 %v1018, %v1152
        %v1159 = vadd.f32 %v1019, %v1154
        %v1160 = vld [vmem:[%s2] sm:$0x3]
        %v1162 = vlaneseq
        %v1163 = vshrl.u32 %v1162, 7
        %v1164 = vsub.s32 0, %v1163
        %v1165 = vrot.slane %v1160, %v1164
        %v1166 = vlaneseq
        %v1167 = vshrl.u32 %v1166, 7
        %v1168 = vsub.s32 1, %v1167
        %v1169 = vrot.slane %v1160, %v1168
        %v1172 = vadd.f32 %v1158, %v1165
        %v1173 = vadd.f32 %v1159, %v1169
        %v1174 = vmax.f32 %v1172, 0.0
        %v1175 = vmax.f32 %v1173, 0.0
        %v1176 = vmax.f32 %v1174, %v1175
        %1177 = vmatprep.subr.bf16.mxu0 %v561
        %1178 = vmatpush1.bf16.msra.mxu0 %v560
        %1179 = vmatprep.subr.bf16.mxu0 %v559
        %1180 = vmatpush1.bf16.msra.mxu0 %v558
        %1181 = vmatprep.subr.bf16.mxu0 %v557
        %1182 = vmatpush1.bf16.msra.mxu0 %v556
        %1183 = vmatprep.subr.bf16.mxu0 %v555
        %1184 = vmatpush1.bf16.msra.mxu0 %v554
        %1185 = vmatprep.subr.bf16.mxu0 %v553
        %1186 = vmatpush1.bf16.msra.mxu0 %v552
        %1187 = vmatprep.subr.bf16.mxu0 %v551
        %1188 = vmatpush1.bf16.msra.mxu0 %v550
        %1189 = vmatprep.subr.bf16.mxu0 %v549
        %1190 = vmatpush1.bf16.msra.mxu0 %v548
        %1191 = vmatprep.subr.bf16.mxu0 %v547
        %1192 = vmatpush1.bf16.msra.mxu0 %v546
        %1193 = vmatprep.subr.bf16.mxu0 0
        %1194 = vmatpush2.bf16.msra.mxu0 0
        %1195 = vmatprep.subr.bf16.mxu0 0
        %1196 = vmatpush2.bf16.msra.mxu0 0
        %1197 = vmatprep.subr.bf16.mxu0 0
        %1198 = vmatpush2.bf16.msra.mxu0 0
        %1199 = vmatprep.subr.bf16.mxu0 0
        %1200 = vmatpush2.bf16.msra.mxu0 0
        %1201 = vmatprep.subr.bf16.mxu0 0
        %1202 = vmatpush2.bf16.msra.mxu0 0
        %1203 = vmatprep.subr.bf16.mxu0 0
        %1204 = vmatpush2.bf16.msra.mxu0 0
        %1205 = vmatprep.subr.bf16.mxu0 0
        %1206 = vmatpush2.bf16.msra.mxu0 0
        %1207 = vmatprep.subr.bf16.mxu0 0
        %1208 = vmatpush2.bf16.msra.mxu0 0
        %1209 = vmatprep.mubr.bf16.mxu0 0
        %1210 = vmatmul.mubr.bf16.gmra.mxu0 %v442
        %v1211 = vpop.f32.mrf.mxu0
        %v1212 = vadd.f32 0.0, %v1211
        %v1213 = vpop.f32.mrf.mxu0
        %v1214 = vadd.f32 0.0, %v1213
        %v1215 = vpop.f32.mrf.mxu0
        %v1216 = vpop.f32.mrf.mxu0
        %1217 = vdwg.mxu0
        %1218 = vmatprep.subr.bf16.mxu0 %v682
        %1219 = vmatpush1.bf16.msra.mxu0 %v681
        %1220 = vmatprep.subr.bf16.mxu0 %v680
        %1221 = vmatpush1.bf16.msra.mxu0 %v679
        %1222 = vmatprep.subr.bf16.mxu0 %v678
        %1223 = vmatpush1.bf16.msra.mxu0 %v677
        %1224 = vmatprep.subr.bf16.mxu0 %v676
        %1225 = vmatpush1.bf16.msra.mxu0 %v675
        %1226 = vmatprep.subr.bf16.mxu0 %v674
        %1227 = vmatpush1.bf16.msra.mxu0 %v673
        %1228 = vmatprep.subr.bf16.mxu0 %v672
        %1229 = vmatpush1.bf16.msra.mxu0 %v671
        %1230 = vmatprep.subr.bf16.mxu0 %v670
        %1231 = vmatpush1.bf16.msra.mxu0 %v669
        %1232 = vmatprep.subr.bf16.mxu0 %v668
        %1233 = vmatpush1.bf16.msra.mxu0 %v667
        %1234 = vmatprep.subr.bf16.mxu0 0
        %1235 = vmatpush2.bf16.msra.mxu0 0
        %1236 = vmatprep.subr.bf16.mxu0 0
        %1237 = vmatpush2.bf16.msra.mxu0 0
        %1238 = vmatprep.subr.bf16.mxu0 0
        %1239 = vmatpush2.bf16.msra.mxu0 0
        %1240 = vmatprep.subr.bf16.mxu0 0
        %1241 = vmatpush2.bf16.msra.mxu0 0
        %1242 = vmatprep.subr.bf16.mxu0 0
        %1243 = vmatpush2.bf16.msra.mxu0 0
        %1244 = vmatprep.subr.bf16.mxu0 0
        %1245 = vmatpush2.bf16.msra.mxu0 0
        %1246 = vmatprep.subr.bf16.mxu0 0
        %1247 = vmatpush2.bf16.msra.mxu0 0
        %1248 = vmatprep.subr.bf16.mxu0 0
        %1249 = vmatpush2.bf16.msra.mxu0 0
        %1250 = vmatprep.mubr.bf16.mxu0 0
        %1251 = vmatmul.mubr.bf16.gmra.mxu0 %v441
        %v1252 = vpop.f32.mrf.mxu0
        %v1253 = vadd.f32 %v1212, %v1252
        %v1254 = vpop.f32.mrf.mxu0
        %v1255 = vadd.f32 %v1214, %v1254
        %v1256 = vpop.f32.mrf.mxu0
        %v1257 = vpop.f32.mrf.mxu0
        %1258 = vdwg.mxu0
        %1259 = vmatprep.subr.bf16.mxu0 %v820
        %1260 = vmatpush1.bf16.msra.mxu0 %v819
        %1261 = vmatprep.subr.bf16.mxu0 %v818
        %1262 = vmatpush1.bf16.msra.mxu0 %v817
        %1263 = vmatprep.subr.bf16.mxu0 %v816
        %1264 = vmatpush1.bf16.msra.mxu0 %v815
        %1265 = vmatprep.subr.bf16.mxu0 %v814
        %1266 = vmatpush1.bf16.msra.mxu0 %v813
        %1267 = vmatprep.subr.bf16.mxu0 %v812
        %1268 = vmatpush1.bf16.msra.mxu0 %v811
        %1269 = vmatprep.subr.bf16.mxu0 %v810
        %1270 = vmatpush1.bf16.msra.mxu0 %v809
        %1271 = vmatprep.subr.bf16.mxu0 %v808
        %1272 = vmatpush1.bf16.msra.mxu0 %v807
        %1273 = vmatprep.subr.bf16.mxu0 %v806
        %1274 = vmatpush1.bf16.msra.mxu0 %v805
        %1275 = vmatprep.subr.bf16.mxu0 0
        %1276 = vmatpush2.bf16.msra.mxu0 0
        %1277 = vmatprep.subr.bf16.mxu0 0
        %1278 = vmatpush2.bf16.msra.mxu0 0
        %1279 = vmatprep.subr.bf16.mxu0 0
        %1280 = vmatpush2.bf16.msra.mxu0 0
        %1281 = vmatprep.subr.bf16.mxu0 0
        %1282 = vmatpush2.bf16.msra.mxu0 0
        %1283 = vmatprep.subr.bf16.mxu0 0
        %1284 = vmatpush2.bf16.msra.mxu0 0
        %1285 = vmatprep.subr.bf16.mxu0 0
        %1286 = vmatpush2.bf16.msra.mxu0 0
        %1287 = vmatprep.subr.bf16.mxu0 0
        %1288 = vmatpush2.bf16.msra.mxu0 0
        %1289 = vmatprep.subr.bf16.mxu0 0
        %1290 = vmatpush2.bf16.msra.mxu0 0
        %1291 = vmatprep.mubr.bf16.mxu0 0
        %1292 = vmatmul.mubr.bf16.gmra.mxu0 %v443
        %v1293 = vpop.f32.mrf.mxu0
        %v1294 = vadd.f32 0.0, %v1293
        %v1295 = vpop.f32.mrf.mxu0
        %v1296 = vadd.f32 0.0, %v1295
        %v1297 = vpop.f32.mrf.mxu0
        %v1298 = vpop.f32.mrf.mxu0
        %1299 = vdwg.mxu0
        %v1300 = vadd.f32 %v1253, %v1294
        %v1301 = vadd.f32 %v1255, %v1296
        %1302 = vmatprep.subr.bf16.mxu0 %v960
        %1303 = vmatpush1.bf16.msra.mxu0 %v959
        %1304 = vmatprep.subr.bf16.mxu0 %v958
        %1305 = vmatpush1.bf16.msra.mxu0 %v957
        %1306 = vmatprep.subr.bf16.mxu0 %v956
        %1307 = vmatpush1.bf16.msra.mxu0 %v955
        %1308 = vmatprep.subr.bf16.mxu0 %v954
        %1309 = vmatpush1.bf16.msra.mxu0 %v953
        %1310 = vmatprep.subr.bf16.mxu0 %v952
        %1311 = vmatpush1.bf16.msra.mxu0 %v951
        %1312 = vmatprep.subr.bf16.mxu0 %v950
        %1313 = vmatpush1.bf16.msra.mxu0 %v949
        %1314 = vmatprep.subr.bf16.mxu0 %v948
        %1315 = vmatpush1.bf16.msra.mxu0 %v947
        %1316 = vmatprep.subr.bf16.mxu0 %v946
        %1317 = vmatpush1.bf16.msra.mxu0 %v945
        %1318 = vmatprep.subr.bf16.mxu0 0
        %1319 = vmatpush2.bf16.msra.mxu0 0
        %1320 = vmatprep.subr.bf16.mxu0 0
        %1321 = vmatpush2.bf16.msra.mxu0 0
        %1322 = vmatprep.subr.bf16.mxu0 0
        %1323 = vmatpush2.bf16.msra.mxu0 0
        %1324 = vmatprep.subr.bf16.mxu0 0
        %1325 = vmatpush2.bf16.msra.mxu0 0
        %1326 = vmatprep.subr.bf16.mxu0 0
        %1327 = vmatpush2.bf16.msra.mxu0 0
        %1328 = vmatprep.subr.bf16.mxu0 0
        %1329 = vmatpush2.bf16.msra.mxu0 0
        %1330 = vmatprep.subr.bf16.mxu0 0
        %1331 = vmatpush2.bf16.msra.mxu0 0
        %1332 = vmatprep.subr.bf16.mxu0 0
        %1333 = vmatpush2.bf16.msra.mxu0 0
        %1334 = vmatprep.mubr.bf16.mxu0 0
        %1335 = vmatmul.mubr.bf16.gmra.mxu0 %v449
        %v1336 = vpop.f32.mrf.mxu0
        %v1337 = vadd.f32 0.0, %v1336
        %v1338 = vpop.f32.mrf.mxu0
        %v1339 = vadd.f32 0.0, %v1338
        %v1340 = vpop.f32.mrf.mxu0
        %v1341 = vpop.f32.mrf.mxu0
        %1342 = vdwg.mxu0
        %v1343 = vadd.f32 %v1300, %v1337
        %v1344 = vadd.f32 %v1301, %v1339
        %1345 = vmatprep.subr.bf16.mxu0 %v1100
        %1346 = vmatpush1.bf16.msra.mxu0 %v1099
        %1347 = vmatprep.subr.bf16.mxu0 %v1098
        %1348 = vmatpush1.bf16.msra.mxu0 %v1097
        %1349 = vmatprep.subr.bf16.mxu0 %v1096
        %1350 = vmatpush1.bf16.msra.mxu0 %v1095
        %1351 = vmatprep.subr.bf16.mxu0 %v1094
        %1352 = vmatpush1.bf16.msra.mxu0 %v1093
        %1353 = vmatprep.subr.bf16.mxu0 %v1092
        %1354 = vmatpush1.bf16.msra.mxu0 %v1091
        %1355 = vmatprep.subr.bf16.mxu0 %v1090
        %1356 = vmatpush1.bf16.msra.mxu0 %v1089
        %1357 = vmatprep.subr.bf16.mxu0 %v1088
        %1358 = vmatpush1.bf16.msra.mxu0 %v1087
        %1359 = vmatprep.subr.bf16.mxu0 %v1086
        %1360 = vmatpush1.bf16.msra.mxu0 %v1085
        %1361 = vmatprep.subr.bf16.mxu0 0
        %1362 = vmatpush2.bf16.msra.mxu0 0
        %1363 = vmatprep.subr.bf16.mxu0 0
        %1364 = vmatpush2.bf16.msra.mxu0 0
        %1365 = vmatprep.subr.bf16.mxu0 0
        %1366 = vmatpush2.bf16.msra.mxu0 0
        %1367 = vmatprep.subr.bf16.mxu0 0
        %1368 = vmatpush2.bf16.msra.mxu0 0
        %1369 = vmatprep.subr.bf16.mxu0 0
        %1370 = vmatpush2.bf16.msra.mxu0 0
        %1371 = vmatprep.subr.bf16.mxu0 0
        %1372 = vmatpush2.bf16.msra.mxu0 0
        %1373 = vmatprep.subr.bf16.mxu0 0
        %1374 = vmatpush2.bf16.msra.mxu0 0
        %1375 = vmatprep.subr.bf16.mxu0 0
        %1376 = vmatpush2.bf16.msra.mxu0 0
        %1377 = vmatprep.mubr.bf16.mxu0 0
        %1378 = vmatmul.mubr.bf16.gmra.mxu0 %v454
        %v1379 = vpop.f32.mrf.mxu0
        %v1380 = vadd.f32 0.0, %v1379
        %v1381 = vpop.f32.mrf.mxu0
        %v1382 = vadd.f32 0.0, %v1381
        %v1383 = vpop.f32.mrf.mxu0
        %v1384 = vpop.f32.mrf.mxu0
        %1385 = vdwg.mxu0
        %v1386 = vadd.f32 %v1343, %v1380
        %v1387 = vadd.f32 %v1344, %v1382
        %v1388 = vadd.f32 %v1386, %v1165
        %v1389 = vadd.f32 %v1387, %v1169
        %v1390 = vmax.f32 %v1388, 0.0
        %v1391 = vmax.f32 %v1389, 0.0
        %v1392 = vmax.f32 %v1390, %v1391
        %v1393 = vmax.f32 %v1176, %v1392
        %1394 = vmatprep.subr.bf16.mxu0 %v561
        %1395 = vmatpush1.bf16.msra.mxu0 %v560
        %1396 = vmatprep.subr.bf16.mxu0 %v559
        %1397 = vmatpush1.bf16.msra.mxu0 %v558
        %1398 = vmatprep.subr.bf16.mxu0 %v557
        %1399 = vmatpush1.bf16.msra.mxu0 %v556
        %1400 = vmatprep.subr.bf16.mxu0 %v555
        %1401 = vmatpush1.bf16.msra.mxu0 %v554
        %1402 = vmatprep.subr.bf16.mxu0 %v553
        %1403 = vmatpush1.bf16.msra.mxu0 %v552
        %1404 = vmatprep.subr.bf16.mxu0 %v551
        %1405 = vmatpush1.bf16.msra.mxu0 %v550
        %1406 = vmatprep.subr.bf16.mxu0 %v549
        %1407 = vmatpush1.bf16.msra.mxu0 %v548
        %1408 = vmatprep.subr.bf16.mxu0 %v547
        %1409 = vmatpush1.bf16.msra.mxu0 %v546
        %1410 = vmatprep.subr.bf16.mxu0 0
        %1411 = vmatpush2.bf16.msra.mxu0 0
        %1412 = vmatprep.subr.bf16.mxu0 0
        %1413 = vmatpush2.bf16.msra.mxu0 0
        %1414 = vmatprep.subr.bf16.mxu0 0
        %1415 = vmatpush2.bf16.msra.mxu0 0
        %1416 = vmatprep.subr.bf16.mxu0 0
        %1417 = vmatpush2.bf16.msra.mxu0 0
        %1418 = vmatprep.subr.bf16.mxu0 0
        %1419 = vmatpush2.bf16.msra.mxu0 0
        %1420 = vmatprep.subr.bf16.mxu0 0
        %1421 = vmatpush2.bf16.msra.mxu0 0
        %1422 = vmatprep.subr.bf16.mxu0 0
        %1423 = vmatpush2.bf16.msra.mxu0 0
        %1424 = vmatprep.subr.bf16.mxu0 0
        %1425 = vmatpush2.bf16.msra.mxu0 0
        %1426 = vmatprep.mubr.bf16.mxu0 0
        %1427 = vmatmul.mubr.bf16.gmra.mxu0 %v443
        %v1428 = vpop.f32.mrf.mxu0
        %v1429 = vadd.f32 0.0, %v1428
        %v1430 = vpop.f32.mrf.mxu0
        %v1431 = vadd.f32 0.0, %v1430
        %v1432 = vpop.f32.mrf.mxu0
        %v1433 = vpop.f32.mrf.mxu0
        %1434 = vdwg.mxu0
        %1435 = vmatprep.subr.bf16.mxu0 %v682
        %1436 = vmatpush1.bf16.msra.mxu0 %v681
        %1437 = vmatprep.subr.bf16.mxu0 %v680
        %1438 = vmatpush1.bf16.msra.mxu0 %v679
        %1439 = vmatprep.subr.bf16.mxu0 %v678
        %1440 = vmatpush1.bf16.msra.mxu0 %v677
        %1441 = vmatprep.subr.bf16.mxu0 %v676
        %1442 = vmatpush1.bf16.msra.mxu0 %v675
        %1443 = vmatprep.subr.bf16.mxu0 %v674
        %1444 = vmatpush1.bf16.msra.mxu0 %v673
        %1445 = vmatprep.subr.bf16.mxu0 %v672
        %1446 = vmatpush1.bf16.msra.mxu0 %v671
        %1447 = vmatprep.subr.bf16.mxu0 %v670
        %1448 = vmatpush1.bf16.msra.mxu0 %v669
        %1449 = vmatprep.subr.bf16.mxu0 %v668
        %1450 = vmatpush1.bf16.msra.mxu0 %v667
        %1451 = vmatprep.subr.bf16.mxu0 0
        %1452 = vmatpush2.bf16.msra.mxu0 0
        %1453 = vmatprep.subr.bf16.mxu0 0
        %1454 = vmatpush2.bf16.msra.mxu0 0
        %1455 = vmatprep.subr.bf16.mxu0 0
        %1456 = vmatpush2.bf16.msra.mxu0 0
        %1457 = vmatprep.subr.bf16.mxu0 0
        %1458 = vmatpush2.bf16.msra.mxu0 0
        %1459 = vmatprep.subr.bf16.mxu0 0
        %1460 = vmatpush2.bf16.msra.mxu0 0
        %1461 = vmatprep.subr.bf16.mxu0 0
        %1462 = vmatpush2.bf16.msra.mxu0 0
        %1463 = vmatprep.subr.bf16.mxu0 0
        %1464 = vmatpush2.bf16.msra.mxu0 0
        %1465 = vmatprep.subr.bf16.mxu0 0
        %1466 = vmatpush2.bf16.msra.mxu0 0
        %1467 = vmatprep.mubr.bf16.mxu0 0
        %1468 = vmatmul.mubr.bf16.gmra.mxu0 %v442
        %v1469 = vpop.f32.mrf.mxu0
        %v1470 = vadd.f32 %v1429, %v1469
        %v1471 = vpop.f32.mrf.mxu0
        %v1472 = vadd.f32 %v1431, %v1471
        %v1473 = vpop.f32.mrf.mxu0
        %v1474 = vpop.f32.mrf.mxu0
        %1475 = vdwg.mxu0
        %1476 = vmatprep.subr.bf16.mxu0 %v820
        %1477 = vmatpush1.bf16.msra.mxu0 %v819
        %1478 = vmatprep.subr.bf16.mxu0 %v818
        %1479 = vmatpush1.bf16.msra.mxu0 %v817
        %1480 = vmatprep.subr.bf16.mxu0 %v816
        %1481 = vmatpush1.bf16.msra.mxu0 %v815
        %1482 = vmatprep.subr.bf16.mxu0 %v814
        %1483 = vmatpush1.bf16.msra.mxu0 %v813
        %1484 = vmatprep.subr.bf16.mxu0 %v812
        %1485 = vmatpush1.bf16.msra.mxu0 %v811
        %1486 = vmatprep.subr.bf16.mxu0 %v810
        %1487 = vmatpush1.bf16.msra.mxu0 %v809
        %1488 = vmatprep.subr.bf16.mxu0 %v808
        %1489 = vmatpush1.bf16.msra.mxu0 %v807
        %1490 = vmatprep.subr.bf16.mxu0 %v806
        %1491 = vmatpush1.bf16.msra.mxu0 %v805
        %1492 = vmatprep.subr.bf16.mxu0 0
        %1493 = vmatpush2.bf16.msra.mxu0 0
        %1494 = vmatprep.subr.bf16.mxu0 0
        %1495 = vmatpush2.bf16.msra.mxu0 0
        %1496 = vmatprep.subr.bf16.mxu0 0
        %1497 = vmatpush2.bf16.msra.mxu0 0
        %1498 = vmatprep.subr.bf16.mxu0 0
        %1499 = vmatpush2.bf16.msra.mxu0 0
        %1500 = vmatprep.subr.bf16.mxu0 0
        %1501 = vmatpush2.bf16.msra.mxu0 0
        %1502 = vmatprep.subr.bf16.mxu0 0
        %1503 = vmatpush2.bf16.msra.mxu0 0
        %1504 = vmatprep.subr.bf16.mxu0 0
        %1505 = vmatpush2.bf16.msra.mxu0 0
        %1506 = vmatprep.subr.bf16.mxu0 0
        %1507 = vmatpush2.bf16.msra.mxu0 0
        %1508 = vmatprep.mubr.bf16.mxu0 0
        %1509 = vmatmul.mubr.bf16.gmra.mxu0 %v449
        %v1510 = vpop.f32.mrf.mxu0
        %v1511 = vadd.f32 0.0, %v1510
        %v1512 = vpop.f32.mrf.mxu0
        %v1513 = vadd.f32 0.0, %v1512
        %v1514 = vpop.f32.mrf.mxu0
        %v1515 = vpop.f32.mrf.mxu0
        %1516 = vdwg.mxu0
        %v1517 = vadd.f32 %v1470, %v1511
        %v1518 = vadd.f32 %v1472, %v1513
        %1519 = vmatprep.subr.bf16.mxu0 %v960
        %1520 = vmatpush1.bf16.msra.mxu0 %v959
        %1521 = vmatprep.subr.bf16.mxu0 %v958
        %1522 = vmatpush1.bf16.msra.mxu0 %v957
        %1523 = vmatprep.subr.bf16.mxu0 %v956
        %1524 = vmatpush1.bf16.msra.mxu0 %v955
        %1525 = vmatprep.subr.bf16.mxu0 %v954
        %1526 = vmatpush1.bf16.msra.mxu0 %v953
        %1527 = vmatprep.subr.bf16.mxu0 %v952
        %1528 = vmatpush1.bf16.msra.mxu0 %v951
        %1529 = vmatprep.subr.bf16.mxu0 %v950
        %1530 = vmatpush1.bf16.msra.mxu0 %v949
        %1531 = vmatprep.subr.bf16.mxu0 %v948
        %1532 = vmatpush1.bf16.msra.mxu0 %v947
        %1533 = vmatprep.subr.bf16.mxu0 %v946
        %1534 = vmatpush1.bf16.msra.mxu0 %v945
        %1535 = vmatprep.subr.bf16.mxu0 0
        %1536 = vmatpush2.bf16.msra.mxu0 0
        %1537 = vmatprep.subr.bf16.mxu0 0
        %1538 = vmatpush2.bf16.msra.mxu0 0
        %1539 = vmatprep.subr.bf16.mxu0 0
        %1540 = vmatpush2.bf16.msra.mxu0 0
        %1541 = vmatprep.subr.bf16.mxu0 0
        %1542 = vmatpush2.bf16.msra.mxu0 0
        %1543 = vmatprep.subr.bf16.mxu0 0
        %1544 = vmatpush2.bf16.msra.mxu0 0
        %1545 = vmatprep.subr.bf16.mxu0 0
        %1546 = vmatpush2.bf16.msra.mxu0 0
        %1547 = vmatprep.subr.bf16.mxu0 0
        %1548 = vmatpush2.bf16.msra.mxu0 0
        %1549 = vmatprep.subr.bf16.mxu0 0
        %1550 = vmatpush2.bf16.msra.mxu0 0
        %1551 = vmatprep.mubr.bf16.mxu0 0
        %1552 = vmatmul.mubr.bf16.gmra.mxu0 %v454
        %v1553 = vpop.f32.mrf.mxu0
        %v1554 = vadd.f32 0.0, %v1553
        %v1555 = vpop.f32.mrf.mxu0
        %v1556 = vadd.f32 0.0, %v1555
        %v1557 = vpop.f32.mrf.mxu0
        %v1558 = vpop.f32.mrf.mxu0
        %1559 = vdwg.mxu0
        %v1560 = vadd.f32 %v1517, %v1554
        %v1561 = vadd.f32 %v1518, %v1556
        %1562 = vmatprep.subr.bf16.mxu0 %v1100
        %1563 = vmatpush1.bf16.msra.mxu0 %v1099
        %1564 = vmatprep.subr.bf16.mxu0 %v1098
        %1565 = vmatpush1.bf16.msra.mxu0 %v1097
        %1566 = vmatprep.subr.bf16.mxu0 %v1096
        %1567 = vmatpush1.bf16.msra.mxu0 %v1095
        %1568 = vmatprep.subr.bf16.mxu0 %v1094
        %1569 = vmatpush1.bf16.msra.mxu0 %v1093
        %1570 = vmatprep.subr.bf16.mxu0 %v1092
        %1571 = vmatpush1.bf16.msra.mxu0 %v1091
        %1572 = vmatprep.subr.bf16.mxu0 %v1090
        %1573 = vmatpush1.bf16.msra.mxu0 %v1089
        %1574 = vmatprep.subr.bf16.mxu0 %v1088
        %1575 = vmatpush1.bf16.msra.mxu0 %v1087
        %1576 = vmatprep.subr.bf16.mxu0 %v1086
        %1577 = vmatpush1.bf16.msra.mxu0 %v1085
        %1578 = vmatprep.subr.bf16.mxu0 0
        %1579 = vmatpush2.bf16.msra.mxu0 0
        %1580 = vmatprep.subr.bf16.mxu0 0
        %1581 = vmatpush2.bf16.msra.mxu0 0
        %1582 = vmatprep.subr.bf16.mxu0 0
        %1583 = vmatpush2.bf16.msra.mxu0 0
        %1584 = vmatprep.subr.bf16.mxu0 0
        %1585 = vmatpush2.bf16.msra.mxu0 0
        %1586 = vmatprep.subr.bf16.mxu0 0
        %1587 = vmatpush2.bf16.msra.mxu0 0
        %1588 = vmatprep.subr.bf16.mxu0 0
        %1589 = vmatpush2.bf16.msra.mxu0 0
        %1590 = vmatprep.subr.bf16.mxu0 0
        %1591 = vmatpush2.bf16.msra.mxu0 0
        %1592 = vmatprep.subr.bf16.mxu0 0
        %1593 = vmatpush2.bf16.msra.mxu0 0
        %1594 = vmatprep.mubr.bf16.mxu0 0
        %1595 = vmatmul.mubr.bf16.gmra.mxu0 %v459
        %v1596 = vpop.f32.mrf.mxu0
        %v1597 = vadd.f32 0.0, %v1596
        %v1598 = vpop.f32.mrf.mxu0
        %v1599 = vadd.f32 0.0, %v1598
        %v1600 = vpop.f32.mrf.mxu0
        %v1601 = vpop.f32.mrf.mxu0
        %1602 = vdwg.mxu0
        %v1603 = vadd.f32 %v1560, %v1597
        %v1604 = vadd.f32 %v1561, %v1599
        %v1605 = vadd.f32 %v1603, %v1165
        %v1606 = vadd.f32 %v1604, %v1169
        %v1607 = vmax.f32 %v1605, 0.0
        %v1608 = vmax.f32 %v1606, 0.0
        %v1609 = vmax.f32 %v1607, %v1608
        %1610 = vmatprep.subr.bf16.mxu0 %v561
        %1611 = vmatpush1.bf16.msra.mxu0 %v560
        %1612 = vmatprep.subr.bf16.mxu0 %v559
        %1613 = vmatpush1.bf16.msra.mxu0 %v558
        %1614 = vmatprep.subr.bf16.mxu0 %v557
        %1615 = vmatpush1.bf16.msra.mxu0 %v556
        %1616 = vmatprep.subr.bf16.mxu0 %v555
        %1617 = vmatpush1.bf16.msra.mxu0 %v554
        %1618 = vmatprep.subr.bf16.mxu0 %v553
        %1619 = vmatpush1.bf16.msra.mxu0 %v552
        %1620 = vmatprep.subr.bf16.mxu0 %v551
        %1621 = vmatpush1.bf16.msra.mxu0 %v550
        %1622 = vmatprep.subr.bf16.mxu0 %v549
        %1623 = vmatpush1.bf16.msra.mxu0 %v548
        %1624 = vmatprep.subr.bf16.mxu0 %v547
        %1625 = vmatpush1.bf16.msra.mxu0 %v546
        %1626 = vmatprep.subr.bf16.mxu0 0
        %1627 = vmatpush2.bf16.msra.mxu0 0
        %1628 = vmatprep.subr.bf16.mxu0 0
        %1629 = vmatpush2.bf16.msra.mxu0 0
        %1630 = vmatprep.subr.bf16.mxu0 0
        %1631 = vmatpush2.bf16.msra.mxu0 0
        %1632 = vmatprep.subr.bf16.mxu0 0
        %1633 = vmatpush2.bf16.msra.mxu0 0
        %1634 = vmatprep.subr.bf16.mxu0 0
        %1635 = vmatpush2.bf16.msra.mxu0 0
        %1636 = vmatprep.subr.bf16.mxu0 0
        %1637 = vmatpush2.bf16.msra.mxu0 0
        %1638 = vmatprep.subr.bf16.mxu0 0
        %1639 = vmatpush2.bf16.msra.mxu0 0
        %1640 = vmatprep.subr.bf16.mxu0 0
        %1641 = vmatpush2.bf16.msra.mxu0 0
        %1642 = vmatprep.mubr.bf16.mxu0 0
        %1643 = vmatmul.mubr.bf16.gmra.mxu0 %v449
        %v1644 = vpop.f32.mrf.mxu0
        %v1645 = vadd.f32 0.0, %v1644
        %v1646 = vpop.f32.mrf.mxu0
        %v1647 = vadd.f32 0.0, %v1646
        %v1648 = vpop.f32.mrf.mxu0
        %v1649 = vpop.f32.mrf.mxu0
        %1650 = vdwg.mxu0
        %1651 = vmatprep.subr.bf16.mxu0 %v682
        %1652 = vmatpush1.bf16.msra.mxu0 %v681
        %1653 = vmatprep.subr.bf16.mxu0 %v680
        %1654 = vmatpush1.bf16.msra.mxu0 %v679
        %1655 = vmatprep.subr.bf16.mxu0 %v678
        %1656 = vmatpush1.bf16.msra.mxu0 %v677
        %1657 = vmatprep.subr.bf16.mxu0 %v676
        %1658 = vmatpush1.bf16.msra.mxu0 %v675
        %1659 = vmatprep.subr.bf16.mxu0 %v674
        %1660 = vmatpush1.bf16.msra.mxu0 %v673
        %1661 = vmatprep.subr.bf16.mxu0 %v672
        %1662 = vmatpush1.bf16.msra.mxu0 %v671
        %1663 = vmatprep.subr.bf16.mxu0 %v670
        %1664 = vmatpush1.bf16.msra.mxu0 %v669
        %1665 = vmatprep.subr.bf16.mxu0 %v668
        %1666 = vmatpush1.bf16.msra.mxu0 %v667
        %1667 = vmatprep.subr.bf16.mxu0 0
        %1668 = vmatpush2.bf16.msra.mxu0 0
        %1669 = vmatprep.subr.bf16.mxu0 0
        %1670 = vmatpush2.bf16.msra.mxu0 0
        %1671 = vmatprep.subr.bf16.mxu0 0
        %1672 = vmatpush2.bf16.msra.mxu0 0
        %1673 = vmatprep.subr.bf16.mxu0 0
        %1674 = vmatpush2.bf16.msra.mxu0 0
        %1675 = vmatprep.subr.bf16.mxu0 0
        %1676 = vmatpush2.bf16.msra.mxu0 0
        %1677 = vmatprep.subr.bf16.mxu0 0
        %1678 = vmatpush2.bf16.msra.mxu0 0
        %1679 = vmatprep.subr.bf16.mxu0 0
        %1680 = vmatpush2.bf16.msra.mxu0 0
        %1681 = vmatprep.subr.bf16.mxu0 0
        %1682 = vmatpush2.bf16.msra.mxu0 0
        %1683 = vmatprep.mubr.bf16.mxu0 0
        %1684 = vmatmul.mubr.bf16.gmra.mxu0 %v443
        %v1685 = vpop.f32.mrf.mxu0
        %v1686 = vadd.f32 %v1645, %v1685
        %v1687 = vpop.f32.mrf.mxu0
        %v1688 = vadd.f32 %v1647, %v1687
        %v1689 = vpop.f32.mrf.mxu0
        %v1690 = vpop.f32.mrf.mxu0
        %1691 = vdwg.mxu0
        %1692 = vmatprep.subr.bf16.mxu0 %v820
        %1693 = vmatpush1.bf16.msra.mxu0 %v819
        %1694 = vmatprep.subr.bf16.mxu0 %v818
        %1695 = vmatpush1.bf16.msra.mxu0 %v817
        %1696 = vmatprep.subr.bf16.mxu0 %v816
        %1697 = vmatpush1.bf16.msra.mxu0 %v815
        %1698 = vmatprep.subr.bf16.mxu0 %v814
        %1699 = vmatpush1.bf16.msra.mxu0 %v813
        %1700 = vmatprep.subr.bf16.mxu0 %v812
        %1701 = vmatpush1.bf16.msra.mxu0 %v811
        %1702 = vmatprep.subr.bf16.mxu0 %v810
        %1703 = vmatpush1.bf16.msra.mxu0 %v809
        %1704 = vmatprep.subr.bf16.mxu0 %v808
        %1705 = vmatpush1.bf16.msra.mxu0 %v807
        %1706 = vmatprep.subr.bf16.mxu0 %v806
        %1707 = vmatpush1.bf16.msra.mxu0 %v805
        %1708 = vmatprep.subr.bf16.mxu0 0
        %1709 = vmatpush2.bf16.msra.mxu0 0
        %1710 = vmatprep.subr.bf16.mxu0 0
        %1711 = vmatpush2.bf16.msra.mxu0 0
        %1712 = vmatprep.subr.bf16.mxu0 0
        %1713 = vmatpush2.bf16.msra.mxu0 0
        %1714 = vmatprep.subr.bf16.mxu0 0
        %1715 = vmatpush2.bf16.msra.mxu0 0
        %1716 = vmatprep.subr.bf16.mxu0 0
        %1717 = vmatpush2.bf16.msra.mxu0 0
        %1718 = vmatprep.subr.bf16.mxu0 0
        %1719 = vmatpush2.bf16.msra.mxu0 0
        %1720 = vmatprep.subr.bf16.mxu0 0
        %1721 = vmatpush2.bf16.msra.mxu0 0
        %1722 = vmatprep.subr.bf16.mxu0 0
        %1723 = vmatpush2.bf16.msra.mxu0 0
        %1724 = vmatprep.mubr.bf16.mxu0 0
        %1725 = vmatmul.mubr.bf16.gmra.mxu0 %v454
        %v1726 = vpop.f32.mrf.mxu0
        %v1727 = vadd.f32 0.0, %v1726
        %v1728 = vpop.f32.mrf.mxu0
        %v1729 = vadd.f32 0.0, %v1728
        %v1730 = vpop.f32.mrf.mxu0
        %v1731 = vpop.f32.mrf.mxu0
        %1732 = vdwg.mxu0
        %v1733 = vadd.f32 %v1686, %v1727
        %v1734 = vadd.f32 %v1688, %v1729
        %1735 = vmatprep.subr.bf16.mxu0 %v960
        %1736 = vmatpush1.bf16.msra.mxu0 %v959
        %1737 = vmatprep.subr.bf16.mxu0 %v958
        %1738 = vmatpush1.bf16.msra.mxu0 %v957
        %1739 = vmatprep.subr.bf16.mxu0 %v956
        %1740 = vmatpush1.bf16.msra.mxu0 %v955
        %1741 = vmatprep.subr.bf16.mxu0 %v954
        %1742 = vmatpush1.bf16.msra.mxu0 %v953
        %1743 = vmatprep.subr.bf16.mxu0 %v952
        %1744 = vmatpush1.bf16.msra.mxu0 %v951
        %1745 = vmatprep.subr.bf16.mxu0 %v950
        %1746 = vmatpush1.bf16.msra.mxu0 %v949
        %1747 = vmatprep.subr.bf16.mxu0 %v948
        %1748 = vmatpush1.bf16.msra.mxu0 %v947
        %1749 = vmatprep.subr.bf16.mxu0 %v946
        %1750 = vmatpush1.bf16.msra.mxu0 %v945
        %1751 = vmatprep.subr.bf16.mxu0 0
        %1752 = vmatpush2.bf16.msra.mxu0 0
        %1753 = vmatprep.subr.bf16.mxu0 0
        %1754 = vmatpush2.bf16.msra.mxu0 0
        %1755 = vmatprep.subr.bf16.mxu0 0
        %1756 = vmatpush2.bf16.msra.mxu0 0
        %1757 = vmatprep.subr.bf16.mxu0 0
        %1758 = vmatpush2.bf16.msra.mxu0 0
        %1759 = vmatprep.subr.bf16.mxu0 0
        %1760 = vmatpush2.bf16.msra.mxu0 0
        %1761 = vmatprep.subr.bf16.mxu0 0
        %1762 = vmatpush2.bf16.msra.mxu0 0
        %1763 = vmatprep.subr.bf16.mxu0 0
        %1764 = vmatpush2.bf16.msra.mxu0 0
        %1765 = vmatprep.subr.bf16.mxu0 0
        %1766 = vmatpush2.bf16.msra.mxu0 0
        %1767 = vmatprep.mubr.bf16.mxu0 0
        %1768 = vmatmul.mubr.bf16.gmra.mxu0 %v459
        %v1769 = vpop.f32.mrf.mxu0
        %v1770 = vadd.f32 0.0, %v1769
        %v1771 = vpop.f32.mrf.mxu0
        %v1772 = vadd.f32 0.0, %v1771
        %v1773 = vpop.f32.mrf.mxu0
        %v1774 = vpop.f32.mrf.mxu0
        %1775 = vdwg.mxu0
        %v1776 = vadd.f32 %v1733, %v1770
        %v1777 = vadd.f32 %v1734, %v1772
        %1778 = vmatprep.subr.bf16.mxu0 %v1100
        %1779 = vmatpush1.bf16.msra.mxu0 %v1099
        %1780 = vmatprep.subr.bf16.mxu0 %v1098
        %1781 = vmatpush1.bf16.msra.mxu0 %v1097
        %1782 = vmatprep.subr.bf16.mxu0 %v1096
        %1783 = vmatpush1.bf16.msra.mxu0 %v1095
        %1784 = vmatprep.subr.bf16.mxu0 %v1094
        %1785 = vmatpush1.bf16.msra.mxu0 %v1093
        %1786 = vmatprep.subr.bf16.mxu0 %v1092
        %1787 = vmatpush1.bf16.msra.mxu0 %v1091
        %1788 = vmatprep.subr.bf16.mxu0 %v1090
        %1789 = vmatpush1.bf16.msra.mxu0 %v1089
        %1790 = vmatprep.subr.bf16.mxu0 %v1088
        %1791 = vmatpush1.bf16.msra.mxu0 %v1087
        %1792 = vmatprep.subr.bf16.mxu0 %v1086
        %1793 = vmatpush1.bf16.msra.mxu0 %v1085
        %1794 = vmatprep.subr.bf16.mxu0 0
        %1795 = vmatpush2.bf16.msra.mxu0 0
        %1796 = vmatprep.subr.bf16.mxu0 0
        %1797 = vmatpush2.bf16.msra.mxu0 0
        %1798 = vmatprep.subr.bf16.mxu0 0
        %1799 = vmatpush2.bf16.msra.mxu0 0
        %1800 = vmatprep.subr.bf16.mxu0 0
        %1801 = vmatpush2.bf16.msra.mxu0 0
        %1802 = vmatprep.subr.bf16.mxu0 0
        %1803 = vmatpush2.bf16.msra.mxu0 0
        %1804 = vmatprep.subr.bf16.mxu0 0
        %1805 = vmatpush2.bf16.msra.mxu0 0
        %1806 = vmatprep.subr.bf16.mxu0 0
        %1807 = vmatpush2.bf16.msra.mxu0 0
        %1808 = vmatprep.subr.bf16.mxu0 0
        %1809 = vmatpush2.bf16.msra.mxu0 0
        %1810 = vmatprep.mubr.bf16.mxu0 0
        %1811 = vmatmul.mubr.bf16.gmra.mxu0 %v464
        %v1812 = vpop.f32.mrf.mxu0
        %v1813 = vadd.f32 0.0, %v1812
        %v1814 = vpop.f32.mrf.mxu0
        %v1815 = vadd.f32 0.0, %v1814
        %v1816 = vpop.f32.mrf.mxu0
        %v1817 = vpop.f32.mrf.mxu0
        %1818 = vdwg.mxu0
        %v1819 = vadd.f32 %v1776, %v1813
        %v1820 = vadd.f32 %v1777, %v1815
        %v1821 = vadd.f32 %v1819, %v1165
        %v1822 = vadd.f32 %v1820, %v1169
        %v1823 = vmax.f32 %v1821, 0.0
        %v1824 = vmax.f32 %v1822, 0.0
        %v1825 = vmax.f32 %v1823, %v1824
        %v1826 = vmax.f32 %v1609, %v1825
        %v1827 = vpack.c.bf16 %v1393, %v1393
        %v1828 = vpack.c.bf16 %v1826, %v1826
        %v1830 = vrot.slane %v1393, 1
        %v1832 = vsel %vm447, %v1830, %v1830
        %v1833 = vpack.c.bf16 %v1832, %v1832
        %v1835 = vrot.slane %v1826, 1
        %v1837 = vsel %vm447, %v1835, %v1835
        %v1838 = vpack.c.bf16 %v1837, %v1837
        %v1839 = vrot.slane %v1393, 2
        %vm1841 = vcmask 1045504
        %v1842 = vsel %vm1841, %v1839, %v1839
        %v1843 = vpack.c.bf16 %v1842, %v1842
        %v1844 = vrot.slane %v1826, 2
        %v1846 = vsel %vm1841, %v1844, %v1844
        %v1847 = vpack.c.bf16 %v1846, %v1846
        %v1848 = vld [vmem:[%s3] sm:$0xff]
        %v1849 = vld [vmem:[%s3 + $0x8] sm:$0xff]
        %v1850 = vld [vmem:[%s3 + $0x10] sm:$0xff]
        %v1851 = vld [vmem:[%s3 + $0x18] sm:$0xff]
        %v1852 = vld [vmem:[%s3 + $0x20] sm:$0xff]
        %v1853 = vld [vmem:[%s3 + $0x28] sm:$0xff]
        %v1854 = vld [vmem:[%s3 + $0x30] sm:$0xff]
        %v1855 = vld [vmem:[%s3 + $0x38] sm:$0xff]
        %v1856 = vld [vmem:[%s3 + $0x40] sm:$0xff]
        %v1857 = vld [vmem:[%s3 + $0x48] sm:$0xff]
        %v1858 = vld [vmem:[%s3 + $0x50] sm:$0xff]
        %v1859 = vld [vmem:[%s3 + $0x58] sm:$0xff]
        %v1860 = vld [vmem:[%s3 + $0x60] sm:$0xff]
        %v1861 = vld [vmem:[%s3 + $0x68] sm:$0xff]
        %v1862 = vld [vmem:[%s3 + $0x70] sm:$0xff]
        %v1863 = vld [vmem:[%s3 + $0x78] sm:$0xff]
        %s1864 = scalar_lea.vmem %s3, 128
        %v1865 = vld [vmem:[%s1864] sm:$0xff]
        %v1866 = vld [vmem:[%s1864 + $0x8] sm:$0xff]
        %v1867 = vld [vmem:[%s1864 + $0x10] sm:$0xff]
        %v1868 = vld [vmem:[%s1864 + $0x18] sm:$0xff]
        %v1869 = vld [vmem:[%s1864 + $0x20] sm:$0xff]
        %v1870 = vld [vmem:[%s1864 + $0x28] sm:$0xff]
        %v1871 = vld [vmem:[%s1864 + $0x30] sm:$0xff]
        %v1872 = vld [vmem:[%s1864 + $0x38] sm:$0xff]
        %v1873 = vld [vmem:[%s1864 + $0x40] sm:$0xff]
        %v1874 = vld [vmem:[%s1864 + $0x48] sm:$0xff]
        %v1875 = vld [vmem:[%s1864 + $0x50] sm:$0xff]
        %v1876 = vld [vmem:[%s1864 + $0x58] sm:$0xff]
        %v1877 = vld [vmem:[%s1864 + $0x60] sm:$0xff]
        %v1878 = vld [vmem:[%s1864 + $0x68] sm:$0xff]
        %v1879 = vld [vmem:[%s1864 + $0x70] sm:$0xff]
        %v1880 = vld [vmem:[%s1864 + $0x78] sm:$0xff]
        %v1897 = vunpack.c.l.b16 %v1865
        %v1898 = vunpack.c.h.b16 %v1865
        %v1899 = vunpack.c.l.b16 %v1866
        %v1900 = vunpack.c.h.b16 %v1866
        %v1901 = vunpack.c.l.b16 %v1867
        %v1902 = vunpack.c.h.b16 %v1867
        %v1903 = vunpack.c.l.b16 %v1868
        %v1904 = vunpack.c.h.b16 %v1868
        %v1905 = vunpack.c.l.b16 %v1869
        %v1906 = vunpack.c.h.b16 %v1869
        %v1907 = vunpack.c.l.b16 %v1870
        %v1908 = vunpack.c.h.b16 %v1870
        %v1909 = vunpack.c.l.b16 %v1871
        %v1910 = vunpack.c.h.b16 %v1871
        %v1911 = vunpack.c.l.b16 %v1872
        %v1912 = vunpack.c.h.b16 %v1872
        %v1913 = vunpack.c.l.b16 %v1873
        %v1914 = vunpack.c.h.b16 %v1873
        %v1915 = vunpack.c.l.b16 %v1874
        %v1916 = vunpack.c.h.b16 %v1874
        %v1917 = vunpack.c.l.b16 %v1875
        %v1918 = vunpack.c.h.b16 %v1875
        %v1919 = vunpack.c.l.b16 %v1876
        %v1920 = vunpack.c.h.b16 %v1876
        %v1921 = vunpack.c.l.b16 %v1877
        %v1922 = vunpack.c.h.b16 %v1877
        %v1923 = vunpack.c.l.b16 %v1878
        %v1924 = vunpack.c.h.b16 %v1878
        %v1925 = vunpack.c.l.b16 %v1879
        %v1926 = vunpack.c.h.b16 %v1879
        %v1927 = vunpack.c.l.b16 %v1880
        %v1928 = vunpack.c.h.b16 %v1880
        %v1929 = vpack.c.b16 %v1899, %v1897
        %v1930 = vpack.c.b16 %v1900, %v1898
        %v1931 = vpack.c.b16 %v1903, %v1901
        %v1932 = vpack.c.b16 %v1904, %v1902
        %v1933 = vpack.c.b16 %v1907, %v1905
        %v1934 = vpack.c.b16 %v1908, %v1906
        %v1935 = vpack.c.b16 %v1911, %v1909
        %v1936 = vpack.c.b16 %v1912, %v1910
        %v1937 = vpack.c.b16 %v1915, %v1913
        %v1938 = vpack.c.b16 %v1916, %v1914
        %v1939 = vpack.c.b16 %v1919, %v1917
        %v1940 = vpack.c.b16 %v1920, %v1918
        %v1941 = vpack.c.b16 %v1923, %v1921
        %v1942 = vpack.c.b16 %v1924, %v1922
        %v1943 = vpack.c.b16 %v1927, %v1925
        %v1944 = vpack.c.b16 %v1928, %v1926
        %1961 = vmatprep.subr.bf16.mxu0 %v1944
        %1962 = vmatpush1.bf16.msra.mxu0 %v1943
        %1963 = vmatprep.subr.bf16.mxu0 %v1942
        %1964 = vmatpush1.bf16.msra.mxu0 %v1941
        %1965 = vmatprep.subr.bf16.mxu0 %v1940
        %1966 = vmatpush1.bf16.msra.mxu0 %v1939
        %1967 = vmatprep.subr.bf16.mxu0 %v1938
        %1968 = vmatpush1.bf16.msra.mxu0 %v1937
        %1969 = vmatprep.subr.bf16.mxu0 %v1936
        %1970 = vmatpush1.bf16.msra.mxu0 %v1935
        %1971 = vmatprep.subr.bf16.mxu0 %v1934
        %1972 = vmatpush1.bf16.msra.mxu0 %v1933
        %1973 = vmatprep.subr.bf16.mxu0 %v1932
        %1974 = vmatpush1.bf16.msra.mxu0 %v1931
        %1975 = vmatprep.subr.bf16.mxu0 %v1930
        %1976 = vmatpush1.bf16.msra.mxu0 %v1929
        %1977 = vmatprep.subr.bf16.mxu0 0
        %1978 = vmatpush2.bf16.msra.mxu0 0
        %1979 = vmatprep.subr.bf16.mxu0 0
        %1980 = vmatpush2.bf16.msra.mxu0 0
        %1981 = vmatprep.subr.bf16.mxu0 0
        %1982 = vmatpush2.bf16.msra.mxu0 0
        %1983 = vmatprep.subr.bf16.mxu0 0
        %1984 = vmatpush2.bf16.msra.mxu0 0
        %1985 = vmatprep.subr.bf16.mxu0 0
        %1986 = vmatpush2.bf16.msra.mxu0 0
        %1987 = vmatprep.subr.bf16.mxu0 0
        %1988 = vmatpush2.bf16.msra.mxu0 0
        %1989 = vmatprep.subr.bf16.mxu0 0
        %1990 = vmatpush2.bf16.msra.mxu0 0
        %1991 = vmatprep.subr.bf16.mxu0 0
        %1992 = vmatpush2.bf16.msra.mxu0 0
        %1993 = vmatprep.mubr.bf16.mxu0 0
        %1994 = vmatmul.mubr.bf16.gmra.mxu0 %v1828
        %v1995 = vpop.f32.mrf.mxu0
        %v1996 = vadd.f32 0.0, %v1995
        %v1997 = vpop.f32.mrf.mxu0
        %v1998 = vadd.f32 0.0, %v1997
        %v1999 = vpop.f32.mrf.mxu0
        %v2000 = vpop.f32.mrf.mxu0
        %2001 = vdwg.mxu0
        %v2018 = vunpack.c.l.b16 %v1848
        %v2019 = vunpack.c.h.b16 %v1848
        %v2020 = vunpack.c.l.b16 %v1849
        %v2021 = vunpack.c.h.b16 %v1849
        %v2022 = vunpack.c.l.b16 %v1850
        %v2023 = vunpack.c.h.b16 %v1850
        %v2024 = vunpack.c.l.b16 %v1851
        %v2025 = vunpack.c.h.b16 %v1851
        %v2026 = vunpack.c.l.b16 %v1852
        %v2027 = vunpack.c.h.b16 %v1852
        %v2028 = vunpack.c.l.b16 %v1853
        %v2029 = vunpack.c.h.b16 %v1853
        %v2030 = vunpack.c.l.b16 %v1854
        %v2031 = vunpack.c.h.b16 %v1854
        %v2032 = vunpack.c.l.b16 %v1855
        %v2033 = vunpack.c.h.b16 %v1855
        %v2034 = vunpack.c.l.b16 %v1856
        %v2035 = vunpack.c.h.b16 %v1856
        %v2036 = vunpack.c.l.b16 %v1857
        %v2037 = vunpack.c.h.b16 %v1857
        %v2038 = vunpack.c.l.b16 %v1858
        %v2039 = vunpack.c.h.b16 %v1858
        %v2040 = vunpack.c.l.b16 %v1859
        %v2041 = vunpack.c.h.b16 %v1859
        %v2042 = vunpack.c.l.b16 %v1860
        %v2043 = vunpack.c.h.b16 %v1860
        %v2044 = vunpack.c.l.b16 %v1861
        %v2045 = vunpack.c.h.b16 %v1861
        %v2046 = vunpack.c.l.b16 %v1862
        %v2047 = vunpack.c.h.b16 %v1862
        %v2048 = vunpack.c.l.b16 %v1863
        %v2049 = vunpack.c.h.b16 %v1863
        %v2050 = vpack.c.b16 %v2020, %v2018
        %v2051 = vpack.c.b16 %v2021, %v2019
        %v2052 = vpack.c.b16 %v2024, %v2022
        %v2053 = vpack.c.b16 %v2025, %v2023
        %v2054 = vpack.c.b16 %v2028, %v2026
        %v2055 = vpack.c.b16 %v2029, %v2027
        %v2056 = vpack.c.b16 %v2032, %v2030
        %v2057 = vpack.c.b16 %v2033, %v2031
        %v2058 = vpack.c.b16 %v2036, %v2034
        %v2059 = vpack.c.b16 %v2037, %v2035
        %v2060 = vpack.c.b16 %v2040, %v2038
        %v2061 = vpack.c.b16 %v2041, %v2039
        %v2062 = vpack.c.b16 %v2044, %v2042
        %v2063 = vpack.c.b16 %v2045, %v2043
        %v2064 = vpack.c.b16 %v2048, %v2046
        %v2065 = vpack.c.b16 %v2049, %v2047
        %2082 = vmatprep.subr.bf16.mxu0 %v2065
        %2083 = vmatpush1.bf16.msra.mxu0 %v2064
        %2084 = vmatprep.subr.bf16.mxu0 %v2063
        %2085 = vmatpush1.bf16.msra.mxu0 %v2062
        %2086 = vmatprep.subr.bf16.mxu0 %v2061
        %2087 = vmatpush1.bf16.msra.mxu0 %v2060
        %2088 = vmatprep.subr.bf16.mxu0 %v2059
        %2089 = vmatpush1.bf16.msra.mxu0 %v2058
        %2090 = vmatprep.subr.bf16.mxu0 %v2057
        %2091 = vmatpush1.bf16.msra.mxu0 %v2056
        %2092 = vmatprep.subr.bf16.mxu0 %v2055
        %2093 = vmatpush1.bf16.msra.mxu0 %v2054
        %2094 = vmatprep.subr.bf16.mxu0 %v2053
        %2095 = vmatpush1.bf16.msra.mxu0 %v2052
        %2096 = vmatprep.subr.bf16.mxu0 %v2051
        %2097 = vmatpush1.bf16.msra.mxu0 %v2050
        %2098 = vmatprep.subr.bf16.mxu0 0
        %2099 = vmatpush2.bf16.msra.mxu0 0
        %2100 = vmatprep.subr.bf16.mxu0 0
        %2101 = vmatpush2.bf16.msra.mxu0 0
        %2102 = vmatprep.subr.bf16.mxu0 0
        %2103 = vmatpush2.bf16.msra.mxu0 0
        %2104 = vmatprep.subr.bf16.mxu0 0
        %2105 = vmatpush2.bf16.msra.mxu0 0
        %2106 = vmatprep.subr.bf16.mxu0 0
        %2107 = vmatpush2.bf16.msra.mxu0 0
        %2108 = vmatprep.subr.bf16.mxu0 0
        %2109 = vmatpush2.bf16.msra.mxu0 0
        %2110 = vmatprep.subr.bf16.mxu0 0
        %2111 = vmatpush2.bf16.msra.mxu0 0
        %2112 = vmatprep.subr.bf16.mxu0 0
        %2113 = vmatpush2.bf16.msra.mxu0 0
        %2114 = vmatprep.mubr.bf16.mxu0 0
        %2115 = vmatmul.mubr.bf16.gmra.mxu0 %v1827
        %v2116 = vpop.f32.mrf.mxu0
        %v2117 = vadd.f32 %v1996, %v2116
        %v2118 = vpop.f32.mrf.mxu0
        %v2119 = vadd.f32 %v1998, %v2118
        %v2120 = vpop.f32.mrf.mxu0
        %v2121 = vpop.f32.mrf.mxu0
        %2122 = vdwg.mxu0
        %s2123 = scalar_lea.vmem %s3, 256
        %v2124 = vld [vmem:[%s2123] sm:$0xff]
        %v2125 = vld [vmem:[%s2123 + $0x8] sm:$0xff]
        %v2126 = vld [vmem:[%s2123 + $0x10] sm:$0xff]
        %v2127 = vld [vmem:[%s2123 + $0x18] sm:$0xff]
        %v2128 = vld [vmem:[%s2123 + $0x20] sm:$0xff]
        %v2129 = vld [vmem:[%s2123 + $0x28] sm:$0xff]
        %v2130 = vld [vmem:[%s2123 + $0x30] sm:$0xff]
        %v2131 = vld [vmem:[%s2123 + $0x38] sm:$0xff]
        %v2132 = vld [vmem:[%s2123 + $0x40] sm:$0xff]
        %v2133 = vld [vmem:[%s2123 + $0x48] sm:$0xff]
        %v2134 = vld [vmem:[%s2123 + $0x50] sm:$0xff]
        %v2135 = vld [vmem:[%s2123 + $0x58] sm:$0xff]
        %v2136 = vld [vmem:[%s2123 + $0x60] sm:$0xff]
        %v2137 = vld [vmem:[%s2123 + $0x68] sm:$0xff]
        %v2138 = vld [vmem:[%s2123 + $0x70] sm:$0xff]
        %v2139 = vld [vmem:[%s2123 + $0x78] sm:$0xff]
        %v2156 = vunpack.c.l.b16 %v2124
        %v2157 = vunpack.c.h.b16 %v2124
        %v2158 = vunpack.c.l.b16 %v2125
        %v2159 = vunpack.c.h.b16 %v2125
        %v2160 = vunpack.c.l.b16 %v2126
        %v2161 = vunpack.c.h.b16 %v2126
        %v2162 = vunpack.c.l.b16 %v2127
        %v2163 = vunpack.c.h.b16 %v2127
        %v2164 = vunpack.c.l.b16 %v2128
        %v2165 = vunpack.c.h.b16 %v2128
        %v2166 = vunpack.c.l.b16 %v2129
        %v2167 = vunpack.c.h.b16 %v2129
        %v2168 = vunpack.c.l.b16 %v2130
        %v2169 = vunpack.c.h.b16 %v2130
        %v2170 = vunpack.c.l.b16 %v2131
        %v2171 = vunpack.c.h.b16 %v2131
        %v2172 = vunpack.c.l.b16 %v2132
        %v2173 = vunpack.c.h.b16 %v2132
        %v2174 = vunpack.c.l.b16 %v2133
        %v2175 = vunpack.c.h.b16 %v2133
        %v2176 = vunpack.c.l.b16 %v2134
        %v2177 = vunpack.c.h.b16 %v2134
        %v2178 = vunpack.c.l.b16 %v2135
        %v2179 = vunpack.c.h.b16 %v2135
        %v2180 = vunpack.c.l.b16 %v2136
        %v2181 = vunpack.c.h.b16 %v2136
        %v2182 = vunpack.c.l.b16 %v2137
        %v2183 = vunpack.c.h.b16 %v2137
        %v2184 = vunpack.c.l.b16 %v2138
        %v2185 = vunpack.c.h.b16 %v2138
        %v2186 = vunpack.c.l.b16 %v2139
        %v2187 = vunpack.c.h.b16 %v2139
        %v2188 = vpack.c.b16 %v2158, %v2156
        %v2189 = vpack.c.b16 %v2159, %v2157
        %v2190 = vpack.c.b16 %v2162, %v2160
        %v2191 = vpack.c.b16 %v2163, %v2161
        %v2192 = vpack.c.b16 %v2166, %v2164
        %v2193 = vpack.c.b16 %v2167, %v2165
        %v2194 = vpack.c.b16 %v2170, %v2168
        %v2195 = vpack.c.b16 %v2171, %v2169
        %v2196 = vpack.c.b16 %v2174, %v2172
        %v2197 = vpack.c.b16 %v2175, %v2173
        %v2198 = vpack.c.b16 %v2178, %v2176
        %v2199 = vpack.c.b16 %v2179, %v2177
        %v2200 = vpack.c.b16 %v2182, %v2180
        %v2201 = vpack.c.b16 %v2183, %v2181
        %v2202 = vpack.c.b16 %v2186, %v2184
        %v2203 = vpack.c.b16 %v2187, %v2185
        %2220 = vmatprep.subr.bf16.mxu0 %v2203
        %2221 = vmatpush1.bf16.msra.mxu0 %v2202
        %2222 = vmatprep.subr.bf16.mxu0 %v2201
        %2223 = vmatpush1.bf16.msra.mxu0 %v2200
        %2224 = vmatprep.subr.bf16.mxu0 %v2199
        %2225 = vmatpush1.bf16.msra.mxu0 %v2198
        %2226 = vmatprep.subr.bf16.mxu0 %v2197
        %2227 = vmatpush1.bf16.msra.mxu0 %v2196
        %2228 = vmatprep.subr.bf16.mxu0 %v2195
        %2229 = vmatpush1.bf16.msra.mxu0 %v2194
        %2230 = vmatprep.subr.bf16.mxu0 %v2193
        %2231 = vmatpush1.bf16.msra.mxu0 %v2192
        %2232 = vmatprep.subr.bf16.mxu0 %v2191
        %2233 = vmatpush1.bf16.msra.mxu0 %v2190
        %2234 = vmatprep.subr.bf16.mxu0 %v2189
        %2235 = vmatpush1.bf16.msra.mxu0 %v2188
        %2236 = vmatprep.subr.bf16.mxu0 0
        %2237 = vmatpush2.bf16.msra.mxu0 0
        %2238 = vmatprep.subr.bf16.mxu0 0
        %2239 = vmatpush2.bf16.msra.mxu0 0
        %2240 = vmatprep.subr.bf16.mxu0 0
        %2241 = vmatpush2.bf16.msra.mxu0 0
        %2242 = vmatprep.subr.bf16.mxu0 0
        %2243 = vmatpush2.bf16.msra.mxu0 0
        %2244 = vmatprep.subr.bf16.mxu0 0
        %2245 = vmatpush2.bf16.msra.mxu0 0
        %2246 = vmatprep.subr.bf16.mxu0 0
        %2247 = vmatpush2.bf16.msra.mxu0 0
        %2248 = vmatprep.subr.bf16.mxu0 0
        %2249 = vmatpush2.bf16.msra.mxu0 0
        %2250 = vmatprep.subr.bf16.mxu0 0
        %2251 = vmatpush2.bf16.msra.mxu0 0
        %2252 = vmatprep.mubr.bf16.mxu0 0
        %2253 = vmatmul.mubr.bf16.gmra.mxu0 %v1833
        %v2254 = vpop.f32.mrf.mxu0
        %v2255 = vadd.f32 0.0, %v2254
        %v2256 = vpop.f32.mrf.mxu0
        %v2257 = vadd.f32 0.0, %v2256
        %v2258 = vpop.f32.mrf.mxu0
        %v2259 = vpop.f32.mrf.mxu0
        %2260 = vdwg.mxu0
        %v2261 = vadd.f32 %v2117, %v2255
        %v2262 = vadd.f32 %v2119, %v2257
        %s2263 = scalar_lea.vmem %s3, 384
        %v2264 = vld [vmem:[%s2263] sm:$0xff]
        %v2265 = vld [vmem:[%s2263 + $0x8] sm:$0xff]
        %v2266 = vld [vmem:[%s2263 + $0x10] sm:$0xff]
        %v2267 = vld [vmem:[%s2263 + $0x18] sm:$0xff]
        %v2268 = vld [vmem:[%s2263 + $0x20] sm:$0xff]
        %v2269 = vld [vmem:[%s2263 + $0x28] sm:$0xff]
        %v2270 = vld [vmem:[%s2263 + $0x30] sm:$0xff]
        %v2271 = vld [vmem:[%s2263 + $0x38] sm:$0xff]
        %v2272 = vld [vmem:[%s2263 + $0x40] sm:$0xff]
        %v2273 = vld [vmem:[%s2263 + $0x48] sm:$0xff]
        %v2274 = vld [vmem:[%s2263 + $0x50] sm:$0xff]
        %v2275 = vld [vmem:[%s2263 + $0x58] sm:$0xff]
        %v2276 = vld [vmem:[%s2263 + $0x60] sm:$0xff]
        %v2277 = vld [vmem:[%s2263 + $0x68] sm:$0xff]
        %v2278 = vld [vmem:[%s2263 + $0x70] sm:$0xff]
        %v2279 = vld [vmem:[%s2263 + $0x78] sm:$0xff]
        %v2296 = vunpack.c.l.b16 %v2264
        %v2297 = vunpack.c.h.b16 %v2264
        %v2298 = vunpack.c.l.b16 %v2265
        %v2299 = vunpack.c.h.b16 %v2265
        %v2300 = vunpack.c.l.b16 %v2266
        %v2301 = vunpack.c.h.b16 %v2266
        %v2302 = vunpack.c.l.b16 %v2267
        %v2303 = vunpack.c.h.b16 %v2267
        %v2304 = vunpack.c.l.b16 %v2268
        %v2305 = vunpack.c.h.b16 %v2268
        %v2306 = vunpack.c.l.b16 %v2269
        %v2307 = vunpack.c.h.b16 %v2269
        %v2308 = vunpack.c.l.b16 %v2270
        %v2309 = vunpack.c.h.b16 %v2270
        %v2310 = vunpack.c.l.b16 %v2271
        %v2311 = vunpack.c.h.b16 %v2271
        %v2312 = vunpack.c.l.b16 %v2272
        %v2313 = vunpack.c.h.b16 %v2272
        %v2314 = vunpack.c.l.b16 %v2273
        %v2315 = vunpack.c.h.b16 %v2273
        %v2316 = vunpack.c.l.b16 %v2274
        %v2317 = vunpack.c.h.b16 %v2274
        %v2318 = vunpack.c.l.b16 %v2275
        %v2319 = vunpack.c.h.b16 %v2275
        %v2320 = vunpack.c.l.b16 %v2276
        %v2321 = vunpack.c.h.b16 %v2276
        %v2322 = vunpack.c.l.b16 %v2277
        %v2323 = vunpack.c.h.b16 %v2277
        %v2324 = vunpack.c.l.b16 %v2278
        %v2325 = vunpack.c.h.b16 %v2278
        %v2326 = vunpack.c.l.b16 %v2279
        %v2327 = vunpack.c.h.b16 %v2279
        %v2328 = vpack.c.b16 %v2298, %v2296
        %v2329 = vpack.c.b16 %v2299, %v2297
        %v2330 = vpack.c.b16 %v2302, %v2300
        %v2331 = vpack.c.b16 %v2303, %v2301
        %v2332 = vpack.c.b16 %v2306, %v2304
        %v2333 = vpack.c.b16 %v2307, %v2305
        %v2334 = vpack.c.b16 %v2310, %v2308
        %v2335 = vpack.c.b16 %v2311, %v2309
        %v2336 = vpack.c.b16 %v2314, %v2312
        %v2337 = vpack.c.b16 %v2315, %v2313
        %v2338 = vpack.c.b16 %v2318, %v2316
        %v2339 = vpack.c.b16 %v2319, %v2317
        %v2340 = vpack.c.b16 %v2322, %v2320
        %v2341 = vpack.c.b16 %v2323, %v2321
        %v2342 = vpack.c.b16 %v2326, %v2324
        %v2343 = vpack.c.b16 %v2327, %v2325
        %2360 = vmatprep.subr.bf16.mxu0 %v2343
        %2361 = vmatpush1.bf16.msra.mxu0 %v2342
        %2362 = vmatprep.subr.bf16.mxu0 %v2341
        %2363 = vmatpush1.bf16.msra.mxu0 %v2340
        %2364 = vmatprep.subr.bf16.mxu0 %v2339
        %2365 = vmatpush1.bf16.msra.mxu0 %v2338
        %2366 = vmatprep.subr.bf16.mxu0 %v2337
        %2367 = vmatpush1.bf16.msra.mxu0 %v2336
        %2368 = vmatprep.subr.bf16.mxu0 %v2335
        %2369 = vmatpush1.bf16.msra.mxu0 %v2334
        %2370 = vmatprep.subr.bf16.mxu0 %v2333
        %2371 = vmatpush1.bf16.msra.mxu0 %v2332
        %2372 = vmatprep.subr.bf16.mxu0 %v2331
        %2373 = vmatpush1.bf16.msra.mxu0 %v2330
        %2374 = vmatprep.subr.bf16.mxu0 %v2329
        %2375 = vmatpush1.bf16.msra.mxu0 %v2328
        %2376 = vmatprep.subr.bf16.mxu0 0
        %2377 = vmatpush2.bf16.msra.mxu0 0
        %2378 = vmatprep.subr.bf16.mxu0 0
        %2379 = vmatpush2.bf16.msra.mxu0 0
        %2380 = vmatprep.subr.bf16.mxu0 0
        %2381 = vmatpush2.bf16.msra.mxu0 0
        %2382 = vmatprep.subr.bf16.mxu0 0
        %2383 = vmatpush2.bf16.msra.mxu0 0
        %2384 = vmatprep.subr.bf16.mxu0 0
        %2385 = vmatpush2.bf16.msra.mxu0 0
        %2386 = vmatprep.subr.bf16.mxu0 0
        %2387 = vmatpush2.bf16.msra.mxu0 0
        %2388 = vmatprep.subr.bf16.mxu0 0
        %2389 = vmatpush2.bf16.msra.mxu0 0
        %2390 = vmatprep.subr.bf16.mxu0 0
        %2391 = vmatpush2.bf16.msra.mxu0 0
        %2392 = vmatprep.mubr.bf16.mxu0 0
        %2393 = vmatmul.mubr.bf16.gmra.mxu0 %v1838
        %v2394 = vpop.f32.mrf.mxu0
        %v2395 = vadd.f32 0.0, %v2394
        %v2396 = vpop.f32.mrf.mxu0
        %v2397 = vadd.f32 0.0, %v2396
        %v2398 = vpop.f32.mrf.mxu0
        %v2399 = vpop.f32.mrf.mxu0
        %2400 = vdwg.mxu0
        %v2401 = vadd.f32 %v2261, %v2395
        %v2402 = vadd.f32 %v2262, %v2397
        %s2403 = scalar_lea.vmem %s3, 512
        %v2404 = vld [vmem:[%s2403] sm:$0xff]
        %v2405 = vld [vmem:[%s2403 + $0x8] sm:$0xff]
        %v2406 = vld [vmem:[%s2403 + $0x10] sm:$0xff]
        %v2407 = vld [vmem:[%s2403 + $0x18] sm:$0xff]
        %v2408 = vld [vmem:[%s2403 + $0x20] sm:$0xff]
        %v2409 = vld [vmem:[%s2403 + $0x28] sm:$0xff]
        %v2410 = vld [vmem:[%s2403 + $0x30] sm:$0xff]
        %v2411 = vld [vmem:[%s2403 + $0x38] sm:$0xff]
        %v2412 = vld [vmem:[%s2403 + $0x40] sm:$0xff]
        %v2413 = vld [vmem:[%s2403 + $0x48] sm:$0xff]
        %v2414 = vld [vmem:[%s2403 + $0x50] sm:$0xff]
        %v2415 = vld [vmem:[%s2403 + $0x58] sm:$0xff]
        %v2416 = vld [vmem:[%s2403 + $0x60] sm:$0xff]
        %v2417 = vld [vmem:[%s2403 + $0x68] sm:$0xff]
        %v2418 = vld [vmem:[%s2403 + $0x70] sm:$0xff]
        %v2419 = vld [vmem:[%s2403 + $0x78] sm:$0xff]
        %v2436 = vunpack.c.l.b16 %v2404
        %v2437 = vunpack.c.h.b16 %v2404
        %v2438 = vunpack.c.l.b16 %v2405
        %v2439 = vunpack.c.h.b16 %v2405
        %v2440 = vunpack.c.l.b16 %v2406
        %v2441 = vunpack.c.h.b16 %v2406
        %v2442 = vunpack.c.l.b16 %v2407
        %v2443 = vunpack.c.h.b16 %v2407
        %v2444 = vunpack.c.l.b16 %v2408
        %v2445 = vunpack.c.h.b16 %v2408
        %v2446 = vunpack.c.l.b16 %v2409
        %v2447 = vunpack.c.h.b16 %v2409
        %v2448 = vunpack.c.l.b16 %v2410
        %v2449 = vunpack.c.h.b16 %v2410
        %v2450 = vunpack.c.l.b16 %v2411
        %v2451 = vunpack.c.h.b16 %v2411
        %v2452 = vunpack.c.l.b16 %v2412
        %v2453 = vunpack.c.h.b16 %v2412
        %v2454 = vunpack.c.l.b16 %v2413
        %v2455 = vunpack.c.h.b16 %v2413
        %v2456 = vunpack.c.l.b16 %v2414
        %v2457 = vunpack.c.h.b16 %v2414
        %v2458 = vunpack.c.l.b16 %v2415
        %v2459 = vunpack.c.h.b16 %v2415
        %v2460 = vunpack.c.l.b16 %v2416
        %v2461 = vunpack.c.h.b16 %v2416
        %v2462 = vunpack.c.l.b16 %v2417
        %v2463 = vunpack.c.h.b16 %v2417
        %v2464 = vunpack.c.l.b16 %v2418
        %v2465 = vunpack.c.h.b16 %v2418
        %v2466 = vunpack.c.l.b16 %v2419
        %v2467 = vunpack.c.h.b16 %v2419
        %v2468 = vpack.c.b16 %v2438, %v2436
        %v2469 = vpack.c.b16 %v2439, %v2437
        %v2470 = vpack.c.b16 %v2442, %v2440
        %v2471 = vpack.c.b16 %v2443, %v2441
        %v2472 = vpack.c.b16 %v2446, %v2444
        %v2473 = vpack.c.b16 %v2447, %v2445
        %v2474 = vpack.c.b16 %v2450, %v2448
        %v2475 = vpack.c.b16 %v2451, %v2449
        %v2476 = vpack.c.b16 %v2454, %v2452
        %v2477 = vpack.c.b16 %v2455, %v2453
        %v2478 = vpack.c.b16 %v2458, %v2456
        %v2479 = vpack.c.b16 %v2459, %v2457
        %v2480 = vpack.c.b16 %v2462, %v2460
        %v2481 = vpack.c.b16 %v2463, %v2461
        %v2482 = vpack.c.b16 %v2466, %v2464
        %v2483 = vpack.c.b16 %v2467, %v2465
        %2500 = vmatprep.subr.bf16.mxu0 %v2483
        %2501 = vmatpush1.bf16.msra.mxu0 %v2482
        %2502 = vmatprep.subr.bf16.mxu0 %v2481
        %2503 = vmatpush1.bf16.msra.mxu0 %v2480
        %2504 = vmatprep.subr.bf16.mxu0 %v2479
        %2505 = vmatpush1.bf16.msra.mxu0 %v2478
        %2506 = vmatprep.subr.bf16.mxu0 %v2477
        %2507 = vmatpush1.bf16.msra.mxu0 %v2476
        %2508 = vmatprep.subr.bf16.mxu0 %v2475
        %2509 = vmatpush1.bf16.msra.mxu0 %v2474
        %2510 = vmatprep.subr.bf16.mxu0 %v2473
        %2511 = vmatpush1.bf16.msra.mxu0 %v2472
        %2512 = vmatprep.subr.bf16.mxu0 %v2471
        %2513 = vmatpush1.bf16.msra.mxu0 %v2470
        %2514 = vmatprep.subr.bf16.mxu0 %v2469
        %2515 = vmatpush1.bf16.msra.mxu0 %v2468
        %2516 = vmatprep.subr.bf16.mxu0 0
        %2517 = vmatpush2.bf16.msra.mxu0 0
        %2518 = vmatprep.subr.bf16.mxu0 0
        %2519 = vmatpush2.bf16.msra.mxu0 0
        %2520 = vmatprep.subr.bf16.mxu0 0
        %2521 = vmatpush2.bf16.msra.mxu0 0
        %2522 = vmatprep.subr.bf16.mxu0 0
        %2523 = vmatpush2.bf16.msra.mxu0 0
        %2524 = vmatprep.subr.bf16.mxu0 0
        %2525 = vmatpush2.bf16.msra.mxu0 0
        %2526 = vmatprep.subr.bf16.mxu0 0
        %2527 = vmatpush2.bf16.msra.mxu0 0
        %2528 = vmatprep.subr.bf16.mxu0 0
        %2529 = vmatpush2.bf16.msra.mxu0 0
        %2530 = vmatprep.subr.bf16.mxu0 0
        %2531 = vmatpush2.bf16.msra.mxu0 0
        %2532 = vmatprep.mubr.bf16.mxu0 0
        %2533 = vmatmul.mubr.bf16.gmra.mxu0 %v1843
        %v2534 = vpop.f32.mrf.mxu0
        %v2535 = vadd.f32 0.0, %v2534
        %v2536 = vpop.f32.mrf.mxu0
        %v2537 = vadd.f32 0.0, %v2536
        %v2538 = vpop.f32.mrf.mxu0
        %v2539 = vpop.f32.mrf.mxu0
        %2540 = vdwg.mxu0
        %v2541 = vadd.f32 %v2401, %v2535
        %v2542 = vadd.f32 %v2402, %v2537
        %v2543 = vld [vmem:[%s4] sm:$0x3]
        %v2545 = vlaneseq
        %v2546 = vshrl.u32 %v2545, 7
        %v2547 = vsub.s32 0, %v2546
        %v2548 = vrot.slane %v2543, %v2547
        %v2549 = vlaneseq
        %v2550 = vshrl.u32 %v2549, 7
        %v2551 = vsub.s32 1, %v2550
        %v2552 = vrot.slane %v2543, %v2551
        %v2555 = vadd.f32 %v2541, %v2548
        %v2556 = vadd.f32 %v2542, %v2552
        %v2557 = vmax.f32 %v2555, 0.0
        %v2558 = vmax.f32 %v2556, 0.0
        %v2559 = vmax.f32 %v2557, %v2558
        %2560 = vmatprep.subr.bf16.mxu0 %v1944
        %2561 = vmatpush1.bf16.msra.mxu0 %v1943
        %2562 = vmatprep.subr.bf16.mxu0 %v1942
        %2563 = vmatpush1.bf16.msra.mxu0 %v1941
        %2564 = vmatprep.subr.bf16.mxu0 %v1940
        %2565 = vmatpush1.bf16.msra.mxu0 %v1939
        %2566 = vmatprep.subr.bf16.mxu0 %v1938
        %2567 = vmatpush1.bf16.msra.mxu0 %v1937
        %2568 = vmatprep.subr.bf16.mxu0 %v1936
        %2569 = vmatpush1.bf16.msra.mxu0 %v1935
        %2570 = vmatprep.subr.bf16.mxu0 %v1934
        %2571 = vmatpush1.bf16.msra.mxu0 %v1933
        %2572 = vmatprep.subr.bf16.mxu0 %v1932
        %2573 = vmatpush1.bf16.msra.mxu0 %v1931
        %2574 = vmatprep.subr.bf16.mxu0 %v1930
        %2575 = vmatpush1.bf16.msra.mxu0 %v1929
        %2576 = vmatprep.subr.bf16.mxu0 0
        %2577 = vmatpush2.bf16.msra.mxu0 0
        %2578 = vmatprep.subr.bf16.mxu0 0
        %2579 = vmatpush2.bf16.msra.mxu0 0
        %2580 = vmatprep.subr.bf16.mxu0 0
        %2581 = vmatpush2.bf16.msra.mxu0 0
        %2582 = vmatprep.subr.bf16.mxu0 0
        %2583 = vmatpush2.bf16.msra.mxu0 0
        %2584 = vmatprep.subr.bf16.mxu0 0
        %2585 = vmatpush2.bf16.msra.mxu0 0
        %2586 = vmatprep.subr.bf16.mxu0 0
        %2587 = vmatpush2.bf16.msra.mxu0 0
        %2588 = vmatprep.subr.bf16.mxu0 0
        %2589 = vmatpush2.bf16.msra.mxu0 0
        %2590 = vmatprep.subr.bf16.mxu0 0
        %2591 = vmatpush2.bf16.msra.mxu0 0
        %2592 = vmatprep.mubr.bf16.mxu0 0
        %2593 = vmatmul.mubr.bf16.gmra.mxu0 %v1833
        %v2594 = vpop.f32.mrf.mxu0
        %v2595 = vadd.f32 0.0, %v2594
        %v2596 = vpop.f32.mrf.mxu0
        %v2597 = vadd.f32 0.0, %v2596
        %v2598 = vpop.f32.mrf.mxu0
        %v2599 = vpop.f32.mrf.mxu0
        %2600 = vdwg.mxu0
        %2601 = vmatprep.subr.bf16.mxu0 %v2065
        %2602 = vmatpush1.bf16.msra.mxu0 %v2064
        %2603 = vmatprep.subr.bf16.mxu0 %v2063
        %2604 = vmatpush1.bf16.msra.mxu0 %v2062
        %2605 = vmatprep.subr.bf16.mxu0 %v2061
        %2606 = vmatpush1.bf16.msra.mxu0 %v2060
        %2607 = vmatprep.subr.bf16.mxu0 %v2059
        %2608 = vmatpush1.bf16.msra.mxu0 %v2058
        %2609 = vmatprep.subr.bf16.mxu0 %v2057
        %2610 = vmatpush1.bf16.msra.mxu0 %v2056
        %2611 = vmatprep.subr.bf16.mxu0 %v2055
        %2612 = vmatpush1.bf16.msra.mxu0 %v2054
        %2613 = vmatprep.subr.bf16.mxu0 %v2053
        %2614 = vmatpush1.bf16.msra.mxu0 %v2052
        %2615 = vmatprep.subr.bf16.mxu0 %v2051
        %2616 = vmatpush1.bf16.msra.mxu0 %v2050
        %2617 = vmatprep.subr.bf16.mxu0 0
        %2618 = vmatpush2.bf16.msra.mxu0 0
        %2619 = vmatprep.subr.bf16.mxu0 0
        %2620 = vmatpush2.bf16.msra.mxu0 0
        %2621 = vmatprep.subr.bf16.mxu0 0
        %2622 = vmatpush2.bf16.msra.mxu0 0
        %2623 = vmatprep.subr.bf16.mxu0 0
        %2624 = vmatpush2.bf16.msra.mxu0 0
        %2625 = vmatprep.subr.bf16.mxu0 0
        %2626 = vmatpush2.bf16.msra.mxu0 0
        %2627 = vmatprep.subr.bf16.mxu0 0
        %2628 = vmatpush2.bf16.msra.mxu0 0
        %2629 = vmatprep.subr.bf16.mxu0 0
        %2630 = vmatpush2.bf16.msra.mxu0 0
        %2631 = vmatprep.subr.bf16.mxu0 0
        %2632 = vmatpush2.bf16.msra.mxu0 0
        %2633 = vmatprep.mubr.bf16.mxu0 0
        %2634 = vmatmul.mubr.bf16.gmra.mxu0 %v1828
        %v2635 = vpop.f32.mrf.mxu0
        %v2636 = vadd.f32 %v2595, %v2635
        %v2637 = vpop.f32.mrf.mxu0
        %v2638 = vadd.f32 %v2597, %v2637
        %v2639 = vpop.f32.mrf.mxu0
        %v2640 = vpop.f32.mrf.mxu0
        %2641 = vdwg.mxu0
        %2642 = vmatprep.subr.bf16.mxu0 %v2203
        %2643 = vmatpush1.bf16.msra.mxu0 %v2202
        %2644 = vmatprep.subr.bf16.mxu0 %v2201
        %2645 = vmatpush1.bf16.msra.mxu0 %v2200
        %2646 = vmatprep.subr.bf16.mxu0 %v2199
        %2647 = vmatpush1.bf16.msra.mxu0 %v2198
        %2648 = vmatprep.subr.bf16.mxu0 %v2197
        %2649 = vmatpush1.bf16.msra.mxu0 %v2196
        %2650 = vmatprep.subr.bf16.mxu0 %v2195
        %2651 = vmatpush1.bf16.msra.mxu0 %v2194
        %2652 = vmatprep.subr.bf16.mxu0 %v2193
        %2653 = vmatpush1.bf16.msra.mxu0 %v2192
        %2654 = vmatprep.subr.bf16.mxu0 %v2191
        %2655 = vmatpush1.bf16.msra.mxu0 %v2190
        %2656 = vmatprep.subr.bf16.mxu0 %v2189
        %2657 = vmatpush1.bf16.msra.mxu0 %v2188
        %2658 = vmatprep.subr.bf16.mxu0 0
        %2659 = vmatpush2.bf16.msra.mxu0 0
        %2660 = vmatprep.subr.bf16.mxu0 0
        %2661 = vmatpush2.bf16.msra.mxu0 0
        %2662 = vmatprep.subr.bf16.mxu0 0
        %2663 = vmatpush2.bf16.msra.mxu0 0
        %2664 = vmatprep.subr.bf16.mxu0 0
        %2665 = vmatpush2.bf16.msra.mxu0 0
        %2666 = vmatprep.subr.bf16.mxu0 0
        %2667 = vmatpush2.bf16.msra.mxu0 0
        %2668 = vmatprep.subr.bf16.mxu0 0
        %2669 = vmatpush2.bf16.msra.mxu0 0
        %2670 = vmatprep.subr.bf16.mxu0 0
        %2671 = vmatpush2.bf16.msra.mxu0 0
        %2672 = vmatprep.subr.bf16.mxu0 0
        %2673 = vmatpush2.bf16.msra.mxu0 0
        %2674 = vmatprep.mubr.bf16.mxu0 0
        %2675 = vmatmul.mubr.bf16.gmra.mxu0 %v1838
        %v2676 = vpop.f32.mrf.mxu0
        %v2677 = vadd.f32 0.0, %v2676
        %v2678 = vpop.f32.mrf.mxu0
        %v2679 = vadd.f32 0.0, %v2678
        %v2680 = vpop.f32.mrf.mxu0
        %v2681 = vpop.f32.mrf.mxu0
        %2682 = vdwg.mxu0
        %v2683 = vadd.f32 %v2636, %v2677
        %v2684 = vadd.f32 %v2638, %v2679
        %2685 = vmatprep.subr.bf16.mxu0 %v2343
        %2686 = vmatpush1.bf16.msra.mxu0 %v2342
        %2687 = vmatprep.subr.bf16.mxu0 %v2341
        %2688 = vmatpush1.bf16.msra.mxu0 %v2340
        %2689 = vmatprep.subr.bf16.mxu0 %v2339
        %2690 = vmatpush1.bf16.msra.mxu0 %v2338
        %2691 = vmatprep.subr.bf16.mxu0 %v2337
        %2692 = vmatpush1.bf16.msra.mxu0 %v2336
        %2693 = vmatprep.subr.bf16.mxu0 %v2335
        %2694 = vmatpush1.bf16.msra.mxu0 %v2334
        %2695 = vmatprep.subr.bf16.mxu0 %v2333
        %2696 = vmatpush1.bf16.msra.mxu0 %v2332
        %2697 = vmatprep.subr.bf16.mxu0 %v2331
        %2698 = vmatpush1.bf16.msra.mxu0 %v2330
        %2699 = vmatprep.subr.bf16.mxu0 %v2329
        %2700 = vmatpush1.bf16.msra.mxu0 %v2328
        %2701 = vmatprep.subr.bf16.mxu0 0
        %2702 = vmatpush2.bf16.msra.mxu0 0
        %2703 = vmatprep.subr.bf16.mxu0 0
        %2704 = vmatpush2.bf16.msra.mxu0 0
        %2705 = vmatprep.subr.bf16.mxu0 0
        %2706 = vmatpush2.bf16.msra.mxu0 0
        %2707 = vmatprep.subr.bf16.mxu0 0
        %2708 = vmatpush2.bf16.msra.mxu0 0
        %2709 = vmatprep.subr.bf16.mxu0 0
        %2710 = vmatpush2.bf16.msra.mxu0 0
        %2711 = vmatprep.subr.bf16.mxu0 0
        %2712 = vmatpush2.bf16.msra.mxu0 0
        %2713 = vmatprep.subr.bf16.mxu0 0
        %2714 = vmatpush2.bf16.msra.mxu0 0
        %2715 = vmatprep.subr.bf16.mxu0 0
        %2716 = vmatpush2.bf16.msra.mxu0 0
        %2717 = vmatprep.mubr.bf16.mxu0 0
        %2718 = vmatmul.mubr.bf16.gmra.mxu0 %v1843
        %v2719 = vpop.f32.mrf.mxu0
        %v2720 = vadd.f32 0.0, %v2719
        %v2721 = vpop.f32.mrf.mxu0
        %v2722 = vadd.f32 0.0, %v2721
        %v2723 = vpop.f32.mrf.mxu0
        %v2724 = vpop.f32.mrf.mxu0
        %2725 = vdwg.mxu0
        %v2726 = vadd.f32 %v2683, %v2720
        %v2727 = vadd.f32 %v2684, %v2722
        %2728 = vmatprep.subr.bf16.mxu0 %v2483
        %2729 = vmatpush1.bf16.msra.mxu0 %v2482
        %2730 = vmatprep.subr.bf16.mxu0 %v2481
        %2731 = vmatpush1.bf16.msra.mxu0 %v2480
        %2732 = vmatprep.subr.bf16.mxu0 %v2479
        %2733 = vmatpush1.bf16.msra.mxu0 %v2478
        %2734 = vmatprep.subr.bf16.mxu0 %v2477
        %2735 = vmatpush1.bf16.msra.mxu0 %v2476
        %2736 = vmatprep.subr.bf16.mxu0 %v2475
        %2737 = vmatpush1.bf16.msra.mxu0 %v2474
        %2738 = vmatprep.subr.bf16.mxu0 %v2473
        %2739 = vmatpush1.bf16.msra.mxu0 %v2472
        %2740 = vmatprep.subr.bf16.mxu0 %v2471
        %2741 = vmatpush1.bf16.msra.mxu0 %v2470
        %2742 = vmatprep.subr.bf16.mxu0 %v2469
        %2743 = vmatpush1.bf16.msra.mxu0 %v2468
        %2744 = vmatprep.subr.bf16.mxu0 0
        %2745 = vmatpush2.bf16.msra.mxu0 0
        %2746 = vmatprep.subr.bf16.mxu0 0
        %2747 = vmatpush2.bf16.msra.mxu0 0
        %2748 = vmatprep.subr.bf16.mxu0 0
        %2749 = vmatpush2.bf16.msra.mxu0 0
        %2750 = vmatprep.subr.bf16.mxu0 0
        %2751 = vmatpush2.bf16.msra.mxu0 0
        %2752 = vmatprep.subr.bf16.mxu0 0
        %2753 = vmatpush2.bf16.msra.mxu0 0
        %2754 = vmatprep.subr.bf16.mxu0 0
        %2755 = vmatpush2.bf16.msra.mxu0 0
        %2756 = vmatprep.subr.bf16.mxu0 0
        %2757 = vmatpush2.bf16.msra.mxu0 0
        %2758 = vmatprep.subr.bf16.mxu0 0
        %2759 = vmatpush2.bf16.msra.mxu0 0
        %2760 = vmatprep.mubr.bf16.mxu0 0
        %2761 = vmatmul.mubr.bf16.gmra.mxu0 %v1847
        %v2762 = vpop.f32.mrf.mxu0
        %v2763 = vadd.f32 0.0, %v2762
        %v2764 = vpop.f32.mrf.mxu0
        %v2765 = vadd.f32 0.0, %v2764
        %v2766 = vpop.f32.mrf.mxu0
        %v2767 = vpop.f32.mrf.mxu0
        %2768 = vdwg.mxu0
        %v2769 = vadd.f32 %v2726, %v2763
        %v2770 = vadd.f32 %v2727, %v2765
        %v2771 = vadd.f32 %v2769, %v2548
        %v2772 = vadd.f32 %v2770, %v2552
        %v2773 = vmax.f32 %v2771, 0.0
        %v2774 = vmax.f32 %v2772, 0.0
        %v2775 = vmax.f32 %v2773, %v2774
        %v2776 = vmax.f32 %v2559, %v2775
        %v2777 = vpack.c.bf16 %v2776, %v2776
        %v2778 = vld [vmem:[%s5] sm:$0xf]
        %v2779 = vld [vmem:[%s5 + $0x4] sm:$0xf]
        %v2780 = vld [vmem:[%s5 + $0x8] sm:$0xf]
        %v2781 = vld [vmem:[%s5 + $0xc] sm:$0xf]
        %v2782 = vld [vmem:[%s5 + $0x10] sm:$0xf]
        %v2783 = vld [vmem:[%s5 + $0x14] sm:$0xf]
        %v2784 = vld [vmem:[%s5 + $0x18] sm:$0xf]
        %v2785 = vld [vmem:[%s5 + $0x1c] sm:$0xf]
        %v2786 = vld [vmem:[%s5 + $0x20] sm:$0xf]
        %v2787 = vld [vmem:[%s5 + $0x24] sm:$0xf]
        %v2788 = vld [vmem:[%s5 + $0x28] sm:$0xf]
        %v2789 = vld [vmem:[%s5 + $0x2c] sm:$0xf]
        %v2790 = vld [vmem:[%s5 + $0x30] sm:$0xf]
        %v2791 = vld [vmem:[%s5 + $0x34] sm:$0xf]
        %v2792 = vld [vmem:[%s5 + $0x38] sm:$0xf]
        %v2793 = vld [vmem:[%s5 + $0x3c] sm:$0xf]
        %v2795 = vrot.slane %v2776, 1
        %v2797 = vsel %vm447, %v2795, %v2795
        %v2798 = vpack.c.bf16 %v2797, %v2797
        %s2799 = scalar_lea.vmem %s5, 64
        %v2800 = vld [vmem:[%s2799] sm:$0xf]
        %v2801 = vld [vmem:[%s2799 + $0x4] sm:$0xf]
        %v2802 = vld [vmem:[%s2799 + $0x8] sm:$0xf]
        %v2803 = vld [vmem:[%s2799 + $0xc] sm:$0xf]
        %v2804 = vld [vmem:[%s2799 + $0x10] sm:$0xf]
        %v2805 = vld [vmem:[%s2799 + $0x14] sm:$0xf]
        %v2806 = vld [vmem:[%s2799 + $0x18] sm:$0xf]
        %v2807 = vld [vmem:[%s2799 + $0x1c] sm:$0xf]
        %v2808 = vld [vmem:[%s2799 + $0x20] sm:$0xf]
        %v2809 = vld [vmem:[%s2799 + $0x24] sm:$0xf]
        %v2810 = vld [vmem:[%s2799 + $0x28] sm:$0xf]
        %v2811 = vld [vmem:[%s2799 + $0x2c] sm:$0xf]
        %v2812 = vld [vmem:[%s2799 + $0x30] sm:$0xf]
        %v2813 = vld [vmem:[%s2799 + $0x34] sm:$0xf]
        %v2814 = vld [vmem:[%s2799 + $0x38] sm:$0xf]
        %v2815 = vld [vmem:[%s2799 + $0x3c] sm:$0xf]
        %v2832 = vunpack.c.l.b16 %v2800
        %v2833 = vunpack.c.l.b16 %v2801
        %v2834 = vunpack.c.l.b16 %v2802
        %v2835 = vunpack.c.l.b16 %v2803
        %v2836 = vunpack.c.l.b16 %v2804
        %v2837 = vunpack.c.l.b16 %v2805
        %v2838 = vunpack.c.l.b16 %v2806
        %v2839 = vunpack.c.l.b16 %v2807
        %v2840 = vunpack.c.l.b16 %v2808
        %v2841 = vunpack.c.l.b16 %v2809
        %v2842 = vunpack.c.l.b16 %v2810
        %v2843 = vunpack.c.l.b16 %v2811
        %v2844 = vunpack.c.l.b16 %v2812
        %v2845 = vunpack.c.l.b16 %v2813
        %v2846 = vunpack.c.l.b16 %v2814
        %v2847 = vunpack.c.l.b16 %v2815
        %v2848 = vpack.c.b16 %v2833, %v2832
        %v2849 = vpack.c.b16 %v2835, %v2834
        %v2850 = vpack.c.b16 %v2837, %v2836
        %v2851 = vpack.c.b16 %v2839, %v2838
        %v2852 = vpack.c.b16 %v2841, %v2840
        %v2853 = vpack.c.b16 %v2843, %v2842
        %v2854 = vpack.c.b16 %v2845, %v2844
        %v2855 = vpack.c.b16 %v2847, %v2846
        %2864 = vmatprep.subr.bf16.mxu0 0
        %2865 = vmatpush1.bf16.msra.mxu0 %v2855
        %2866 = vmatprep.subr.bf16.mxu0 0
        %2867 = vmatpush1.bf16.msra.mxu0 %v2854
        %2868 = vmatprep.subr.bf16.mxu0 0
        %2869 = vmatpush1.bf16.msra.mxu0 %v2853
        %2870 = vmatprep.subr.bf16.mxu0 0
        %2871 = vmatpush1.bf16.msra.mxu0 %v2852
        %2872 = vmatprep.subr.bf16.mxu0 0
        %2873 = vmatpush1.bf16.msra.mxu0 %v2851
        %2874 = vmatprep.subr.bf16.mxu0 0
        %2875 = vmatpush1.bf16.msra.mxu0 %v2850
        %2876 = vmatprep.subr.bf16.mxu0 0
        %2877 = vmatpush1.bf16.msra.mxu0 %v2849
        %2878 = vmatprep.subr.bf16.mxu0 0
        %2879 = vmatpush1.bf16.msra.mxu0 %v2848
        %2880 = vmatprep.subr.bf16.mxu0 0
        %2881 = vmatpush2.bf16.msra.mxu0 0
        %2882 = vmatprep.subr.bf16.mxu0 0
        %2883 = vmatpush2.bf16.msra.mxu0 0
        %2884 = vmatprep.subr.bf16.mxu0 0
        %2885 = vmatpush2.bf16.msra.mxu0 0
        %2886 = vmatprep.subr.bf16.mxu0 0
        %2887 = vmatpush2.bf16.msra.mxu0 0
        %2888 = vmatprep.subr.bf16.mxu0 0
        %2889 = vmatpush2.bf16.msra.mxu0 0
        %2890 = vmatprep.subr.bf16.mxu0 0
        %2891 = vmatpush2.bf16.msra.mxu0 0
        %2892 = vmatprep.subr.bf16.mxu0 0
        %2893 = vmatpush2.bf16.msra.mxu0 0
        %2894 = vmatprep.subr.bf16.mxu0 0
        %2895 = vmatpush2.bf16.msra.mxu0 0
        %2896 = vmatprep.mubr.bf16.mxu0 0
        %2897 = vmatmul.mubr.bf16.gmra.mxu0 %v2798
        %v2898 = vpop.f32.mrf.mxu0
        %v2899 = vadd.f32 0.0, %v2898
        %v2900 = vpop.f32.mrf.mxu0
        %v2901 = vpop.f32.mrf.mxu0
        %v2902 = vpop.f32.mrf.mxu0
        %2903 = vdwg.mxu0
        %v2920 = vunpack.c.l.b16 %v2778
        %v2921 = vunpack.c.l.b16 %v2779
        %v2922 = vunpack.c.l.b16 %v2780
        %v2923 = vunpack.c.l.b16 %v2781
        %v2924 = vunpack.c.l.b16 %v2782
        %v2925 = vunpack.c.l.b16 %v2783
        %v2926 = vunpack.c.l.b16 %v2784
        %v2927 = vunpack.c.l.b16 %v2785
        %v2928 = vunpack.c.l.b16 %v2786
        %v2929 = vunpack.c.l.b16 %v2787
        %v2930 = vunpack.c.l.b16 %v2788
        %v2931 = vunpack.c.l.b16 %v2789
        %v2932 = vunpack.c.l.b16 %v2790
        %v2933 = vunpack.c.l.b16 %v2791
        %v2934 = vunpack.c.l.b16 %v2792
        %v2935 = vunpack.c.l.b16 %v2793
        %v2936 = vpack.c.b16 %v2921, %v2920
        %v2937 = vpack.c.b16 %v2923, %v2922
        %v2938 = vpack.c.b16 %v2925, %v2924
        %v2939 = vpack.c.b16 %v2927, %v2926
        %v2940 = vpack.c.b16 %v2929, %v2928
        %v2941 = vpack.c.b16 %v2931, %v2930
        %v2942 = vpack.c.b16 %v2933, %v2932
        %v2943 = vpack.c.b16 %v2935, %v2934
        %2952 = vmatprep.subr.bf16.mxu0 0
        %2953 = vmatpush1.bf16.msra.mxu0 %v2943
        %2954 = vmatprep.subr.bf16.mxu0 0
        %2955 = vmatpush1.bf16.msra.mxu0 %v2942
        %2956 = vmatprep.subr.bf16.mxu0 0
        %2957 = vmatpush1.bf16.msra.mxu0 %v2941
        %2958 = vmatprep.subr.bf16.mxu0 0
        %2959 = vmatpush1.bf16.msra.mxu0 %v2940
        %2960 = vmatprep.subr.bf16.mxu0 0
        %2961 = vmatpush1.bf16.msra.mxu0 %v2939
        %2962 = vmatprep.subr.bf16.mxu0 0
        %2963 = vmatpush1.bf16.msra.mxu0 %v2938
        %2964 = vmatprep.subr.bf16.mxu0 0
        %2965 = vmatpush1.bf16.msra.mxu0 %v2937
        %2966 = vmatprep.subr.bf16.mxu0 0
        %2967 = vmatpush1.bf16.msra.mxu0 %v2936
        %2968 = vmatprep.subr.bf16.mxu0 0
        %2969 = vmatpush2.bf16.msra.mxu0 0
        %2970 = vmatprep.subr.bf16.mxu0 0
        %2971 = vmatpush2.bf16.msra.mxu0 0
        %2972 = vmatprep.subr.bf16.mxu0 0
        %2973 = vmatpush2.bf16.msra.mxu0 0
        %2974 = vmatprep.subr.bf16.mxu0 0
        %2975 = vmatpush2.bf16.msra.mxu0 0
        %2976 = vmatprep.subr.bf16.mxu0 0
        %2977 = vmatpush2.bf16.msra.mxu0 0
        %2978 = vmatprep.subr.bf16.mxu0 0
        %2979 = vmatpush2.bf16.msra.mxu0 0
        %2980 = vmatprep.subr.bf16.mxu0 0
        %2981 = vmatpush2.bf16.msra.mxu0 0
        %2982 = vmatprep.subr.bf16.mxu0 0
        %2983 = vmatpush2.bf16.msra.mxu0 0
        %2984 = vmatprep.mubr.bf16.mxu0 0
        %2985 = vmatmul.mubr.bf16.gmra.mxu0 %v2777
        %v2986 = vpop.f32.mrf.mxu0
        %v2987 = vadd.f32 %v2899, %v2986
        %v2988 = vpop.f32.mrf.mxu0
        %v2989 = vpop.f32.mrf.mxu0
        %v2990 = vpop.f32.mrf.mxu0
        %2991 = vdwg.mxu0
        %v2992 = vrot.slane %v2776, 2
        %v2994 = vsel %vm1841, %v2992, %v2992
        %v2995 = vpack.c.bf16 %v2994, %v2994
        %s2996 = scalar_lea.vmem %s5, 128
        %v2997 = vld [vmem:[%s2996] sm:$0xf]
        %v2998 = vld [vmem:[%s2996 + $0x4] sm:$0xf]
        %v2999 = vld [vmem:[%s2996 + $0x8] sm:$0xf]
        %v3000 = vld [vmem:[%s2996 + $0xc] sm:$0xf]
        %v3001 = vld [vmem:[%s2996 + $0x10] sm:$0xf]
        %v3002 = vld [vmem:[%s2996 + $0x14] sm:$0xf]
        %v3003 = vld [vmem:[%s2996 + $0x18] sm:$0xf]
        %v3004 = vld [vmem:[%s2996 + $0x1c] sm:$0xf]
        %v3005 = vld [vmem:[%s2996 + $0x20] sm:$0xf]
        %v3006 = vld [vmem:[%s2996 + $0x24] sm:$0xf]
        %v3007 = vld [vmem:[%s2996 + $0x28] sm:$0xf]
        %v3008 = vld [vmem:[%s2996 + $0x2c] sm:$0xf]
        %v3009 = vld [vmem:[%s2996 + $0x30] sm:$0xf]
        %v3010 = vld [vmem:[%s2996 + $0x34] sm:$0xf]
        %v3011 = vld [vmem:[%s2996 + $0x38] sm:$0xf]
        %v3012 = vld [vmem:[%s2996 + $0x3c] sm:$0xf]
        %v3029 = vunpack.c.l.b16 %v2997
        %v3030 = vunpack.c.l.b16 %v2998
        %v3031 = vunpack.c.l.b16 %v2999
        %v3032 = vunpack.c.l.b16 %v3000
        %v3033 = vunpack.c.l.b16 %v3001
        %v3034 = vunpack.c.l.b16 %v3002
        %v3035 = vunpack.c.l.b16 %v3003
        %v3036 = vunpack.c.l.b16 %v3004
        %v3037 = vunpack.c.l.b16 %v3005
        %v3038 = vunpack.c.l.b16 %v3006
        %v3039 = vunpack.c.l.b16 %v3007
        %v3040 = vunpack.c.l.b16 %v3008
        %v3041 = vunpack.c.l.b16 %v3009
        %v3042 = vunpack.c.l.b16 %v3010
        %v3043 = vunpack.c.l.b16 %v3011
        %v3044 = vunpack.c.l.b16 %v3012
        %v3045 = vpack.c.b16 %v3030, %v3029
        %v3046 = vpack.c.b16 %v3032, %v3031
        %v3047 = vpack.c.b16 %v3034, %v3033
        %v3048 = vpack.c.b16 %v3036, %v3035
        %v3049 = vpack.c.b16 %v3038, %v3037
        %v3050 = vpack.c.b16 %v3040, %v3039
        %v3051 = vpack.c.b16 %v3042, %v3041
        %v3052 = vpack.c.b16 %v3044, %v3043
        %3061 = vmatprep.subr.bf16.mxu0 0
        %3062 = vmatpush1.bf16.msra.mxu0 %v3052
        %3063 = vmatprep.subr.bf16.mxu0 0
        %3064 = vmatpush1.bf16.msra.mxu0 %v3051
        %3065 = vmatprep.subr.bf16.mxu0 0
        %3066 = vmatpush1.bf16.msra.mxu0 %v3050
        %3067 = vmatprep.subr.bf16.mxu0 0
        %3068 = vmatpush1.bf16.msra.mxu0 %v3049
        %3069 = vmatprep.subr.bf16.mxu0 0
        %3070 = vmatpush1.bf16.msra.mxu0 %v3048
        %3071 = vmatprep.subr.bf16.mxu0 0
        %3072 = vmatpush1.bf16.msra.mxu0 %v3047
        %3073 = vmatprep.subr.bf16.mxu0 0
        %3074 = vmatpush1.bf16.msra.mxu0 %v3046
        %3075 = vmatprep.subr.bf16.mxu0 0
        %3076 = vmatpush1.bf16.msra.mxu0 %v3045
        %3077 = vmatprep.subr.bf16.mxu0 0
        %3078 = vmatpush2.bf16.msra.mxu0 0
        %3079 = vmatprep.subr.bf16.mxu0 0
        %3080 = vmatpush2.bf16.msra.mxu0 0
        %3081 = vmatprep.subr.bf16.mxu0 0
        %3082 = vmatpush2.bf16.msra.mxu0 0
        %3083 = vmatprep.subr.bf16.mxu0 0
        %3084 = vmatpush2.bf16.msra.mxu0 0
        %3085 = vmatprep.subr.bf16.mxu0 0
        %3086 = vmatpush2.bf16.msra.mxu0 0
        %3087 = vmatprep.subr.bf16.mxu0 0
        %3088 = vmatpush2.bf16.msra.mxu0 0
        %3089 = vmatprep.subr.bf16.mxu0 0
        %3090 = vmatpush2.bf16.msra.mxu0 0
        %3091 = vmatprep.subr.bf16.mxu0 0
        %3092 = vmatpush2.bf16.msra.mxu0 0
        %3093 = vmatprep.mubr.bf16.mxu0 0
        %3094 = vmatmul.mubr.bf16.gmra.mxu0 %v2995
        %v3095 = vpop.f32.mrf.mxu0
        %v3096 = vadd.f32 0.0, %v3095
        %v3097 = vpop.f32.mrf.mxu0
        %v3098 = vpop.f32.mrf.mxu0
        %v3099 = vpop.f32.mrf.mxu0
        %3100 = vdwg.mxu0
        %v3101 = vadd.f32 %v2987, %v3096
        %v3102 = vrot.slane %v2776, 3
        %vm3104 = vcmask 1044480
        %v3105 = vsel %vm3104, %v3102, %v3102
        %v3106 = vpack.c.bf16 %v3105, %v3105
        %s3107 = scalar_lea.vmem %s5, 192
        %v3108 = vld [vmem:[%s3107] sm:$0xf]
        %v3109 = vld [vmem:[%s3107 + $0x4] sm:$0xf]
        %v3110 = vld [vmem:[%s3107 + $0x8] sm:$0xf]
        %v3111 = vld [vmem:[%s3107 + $0xc] sm:$0xf]
        %v3112 = vld [vmem:[%s3107 + $0x10] sm:$0xf]
        %v3113 = vld [vmem:[%s3107 + $0x14] sm:$0xf]
        %v3114 = vld [vmem:[%s3107 + $0x18] sm:$0xf]
        %v3115 = vld [vmem:[%s3107 + $0x1c] sm:$0xf]
        %v3116 = vld [vmem:[%s3107 + $0x20] sm:$0xf]
        %v3117 = vld [vmem:[%s3107 + $0x24] sm:$0xf]
        %v3118 = vld [vmem:[%s3107 + $0x28] sm:$0xf]
        %v3119 = vld [vmem:[%s3107 + $0x2c] sm:$0xf]
        %v3120 = vld [vmem:[%s3107 + $0x30] sm:$0xf]
        %v3121 = vld [vmem:[%s3107 + $0x34] sm:$0xf]
        %v3122 = vld [vmem:[%s3107 + $0x38] sm:$0xf]
        %v3123 = vld [vmem:[%s3107 + $0x3c] sm:$0xf]
        %v3140 = vunpack.c.l.b16 %v3108
        %v3141 = vunpack.c.l.b16 %v3109
        %v3142 = vunpack.c.l.b16 %v3110
        %v3143 = vunpack.c.l.b16 %v3111
        %v3144 = vunpack.c.l.b16 %v3112
        %v3145 = vunpack.c.l.b16 %v3113
        %v3146 = vunpack.c.l.b16 %v3114
        %v3147 = vunpack.c.l.b16 %v3115
        %v3148 = vunpack.c.l.b16 %v3116
        %v3149 = vunpack.c.l.b16 %v3117
        %v3150 = vunpack.c.l.b16 %v3118
        %v3151 = vunpack.c.l.b16 %v3119
        %v3152 = vunpack.c.l.b16 %v3120
        %v3153 = vunpack.c.l.b16 %v3121
        %v3154 = vunpack.c.l.b16 %v3122
        %v3155 = vunpack.c.l.b16 %v3123
        %v3156 = vpack.c.b16 %v3141, %v3140
        %v3157 = vpack.c.b16 %v3143, %v3142
        %v3158 = vpack.c.b16 %v3145, %v3144
        %v3159 = vpack.c.b16 %v3147, %v3146
        %v3160 = vpack.c.b16 %v3149, %v3148
        %v3161 = vpack.c.b16 %v3151, %v3150
        %v3162 = vpack.c.b16 %v3153, %v3152
        %v3163 = vpack.c.b16 %v3155, %v3154
        %3172 = vmatprep.subr.bf16.mxu0 0
        %3173 = vmatpush1.bf16.msra.mxu0 %v3163
        %3174 = vmatprep.subr.bf16.mxu0 0
        %3175 = vmatpush1.bf16.msra.mxu0 %v3162
        %3176 = vmatprep.subr.bf16.mxu0 0
        %3177 = vmatpush1.bf16.msra.mxu0 %v3161
        %3178 = vmatprep.subr.bf16.mxu0 0
        %3179 = vmatpush1.bf16.msra.mxu0 %v3160
        %3180 = vmatprep.subr.bf16.mxu0 0
        %3181 = vmatpush1.bf16.msra.mxu0 %v3159
        %3182 = vmatprep.subr.bf16.mxu0 0
        %3183 = vmatpush1.bf16.msra.mxu0 %v3158
        %3184 = vmatprep.subr.bf16.mxu0 0
        %3185 = vmatpush1.bf16.msra.mxu0 %v3157
        %3186 = vmatprep.subr.bf16.mxu0 0
        %3187 = vmatpush1.bf16.msra.mxu0 %v3156
        %3188 = vmatprep.subr.bf16.mxu0 0
        %3189 = vmatpush2.bf16.msra.mxu0 0
        %3190 = vmatprep.subr.bf16.mxu0 0
        %3191 = vmatpush2.bf16.msra.mxu0 0
        %3192 = vmatprep.subr.bf16.mxu0 0
        %3193 = vmatpush2.bf16.msra.mxu0 0
        %3194 = vmatprep.subr.bf16.mxu0 0
        %3195 = vmatpush2.bf16.msra.mxu0 0
        %3196 = vmatprep.subr.bf16.mxu0 0
        %3197 = vmatpush2.bf16.msra.mxu0 0
        %3198 = vmatprep.subr.bf16.mxu0 0
        %3199 = vmatpush2.bf16.msra.mxu0 0
        %3200 = vmatprep.subr.bf16.mxu0 0
        %3201 = vmatpush2.bf16.msra.mxu0 0
        %3202 = vmatprep.subr.bf16.mxu0 0
        %3203 = vmatpush2.bf16.msra.mxu0 0
        %3204 = vmatprep.mubr.bf16.mxu0 0
        %3205 = vmatmul.mubr.bf16.gmra.mxu0 %v3106
        %v3206 = vpop.f32.mrf.mxu0
        %v3207 = vadd.f32 0.0, %v3206
        %v3208 = vpop.f32.mrf.mxu0
        %v3209 = vpop.f32.mrf.mxu0
        %v3210 = vpop.f32.mrf.mxu0
        %3211 = vdwg.mxu0
        %v3212 = vadd.f32 %v3101, %v3207
        %v3213 = vrot.slane %v2776, 4
        %vm3215 = vcmask 1043456
        %v3216 = vsel %vm3215, %v3213, %v3213
        %v3217 = vpack.c.bf16 %v3216, %v3216
        %s3218 = scalar_lea.vmem %s5, 256
        %v3219 = vld [vmem:[%s3218] sm:$0xf]
        %v3220 = vld [vmem:[%s3218 + $0x4] sm:$0xf]
        %v3221 = vld [vmem:[%s3218 + $0x8] sm:$0xf]
        %v3222 = vld [vmem:[%s3218 + $0xc] sm:$0xf]
        %v3223 = vld [vmem:[%s3218 + $0x10] sm:$0xf]
        %v3224 = vld [vmem:[%s3218 + $0x14] sm:$0xf]
        %v3225 = vld [vmem:[%s3218 + $0x18] sm:$0xf]
        %v3226 = vld [vmem:[%s3218 + $0x1c] sm:$0xf]
        %v3227 = vld [vmem:[%s3218 + $0x20] sm:$0xf]
        %v3228 = vld [vmem:[%s3218 + $0x24] sm:$0xf]
        %v3229 = vld [vmem:[%s3218 + $0x28] sm:$0xf]
        %v3230 = vld [vmem:[%s3218 + $0x2c] sm:$0xf]
        %v3231 = vld [vmem:[%s3218 + $0x30] sm:$0xf]
        %v3232 = vld [vmem:[%s3218 + $0x34] sm:$0xf]
        %v3233 = vld [vmem:[%s3218 + $0x38] sm:$0xf]
        %v3234 = vld [vmem:[%s3218 + $0x3c] sm:$0xf]
        %v3251 = vunpack.c.l.b16 %v3219
        %v3252 = vunpack.c.l.b16 %v3220
        %v3253 = vunpack.c.l.b16 %v3221
        %v3254 = vunpack.c.l.b16 %v3222
        %v3255 = vunpack.c.l.b16 %v3223
        %v3256 = vunpack.c.l.b16 %v3224
        %v3257 = vunpack.c.l.b16 %v3225
        %v3258 = vunpack.c.l.b16 %v3226
        %v3259 = vunpack.c.l.b16 %v3227
        %v3260 = vunpack.c.l.b16 %v3228
        %v3261 = vunpack.c.l.b16 %v3229
        %v3262 = vunpack.c.l.b16 %v3230
        %v3263 = vunpack.c.l.b16 %v3231
        %v3264 = vunpack.c.l.b16 %v3232
        %v3265 = vunpack.c.l.b16 %v3233
        %v3266 = vunpack.c.l.b16 %v3234
        %v3267 = vpack.c.b16 %v3252, %v3251
        %v3268 = vpack.c.b16 %v3254, %v3253
        %v3269 = vpack.c.b16 %v3256, %v3255
        %v3270 = vpack.c.b16 %v3258, %v3257
        %v3271 = vpack.c.b16 %v3260, %v3259
        %v3272 = vpack.c.b16 %v3262, %v3261
        %v3273 = vpack.c.b16 %v3264, %v3263
        %v3274 = vpack.c.b16 %v3266, %v3265
        %3283 = vmatprep.subr.bf16.mxu0 0
        %3284 = vmatpush1.bf16.msra.mxu0 %v3274
        %3285 = vmatprep.subr.bf16.mxu0 0
        %3286 = vmatpush1.bf16.msra.mxu0 %v3273
        %3287 = vmatprep.subr.bf16.mxu0 0
        %3288 = vmatpush1.bf16.msra.mxu0 %v3272
        %3289 = vmatprep.subr.bf16.mxu0 0
        %3290 = vmatpush1.bf16.msra.mxu0 %v3271
        %3291 = vmatprep.subr.bf16.mxu0 0
        %3292 = vmatpush1.bf16.msra.mxu0 %v3270
        %3293 = vmatprep.subr.bf16.mxu0 0
        %3294 = vmatpush1.bf16.msra.mxu0 %v3269
        %3295 = vmatprep.subr.bf16.mxu0 0
        %3296 = vmatpush1.bf16.msra.mxu0 %v3268
        %3297 = vmatprep.subr.bf16.mxu0 0
        %3298 = vmatpush1.bf16.msra.mxu0 %v3267
        %3299 = vmatprep.subr.bf16.mxu0 0
        %3300 = vmatpush2.bf16.msra.mxu0 0
        %3301 = vmatprep.subr.bf16.mxu0 0
        %3302 = vmatpush2.bf16.msra.mxu0 0
        %3303 = vmatprep.subr.bf16.mxu0 0
        %3304 = vmatpush2.bf16.msra.mxu0 0
        %3305 = vmatprep.subr.bf16.mxu0 0
        %3306 = vmatpush2.bf16.msra.mxu0 0
        %3307 = vmatprep.subr.bf16.mxu0 0
        %3308 = vmatpush2.bf16.msra.mxu0 0
        %3309 = vmatprep.subr.bf16.mxu0 0
        %3310 = vmatpush2.bf16.msra.mxu0 0
        %3311 = vmatprep.subr.bf16.mxu0 0
        %3312 = vmatpush2.bf16.msra.mxu0 0
        %3313 = vmatprep.subr.bf16.mxu0 0
        %3314 = vmatpush2.bf16.msra.mxu0 0
        %3315 = vmatprep.mubr.bf16.mxu0 0
        %3316 = vmatmul.mubr.bf16.gmra.mxu0 %v3217
        %v3317 = vpop.f32.mrf.mxu0
        %v3318 = vadd.f32 0.0, %v3317
        %v3319 = vpop.f32.mrf.mxu0
        %v3320 = vpop.f32.mrf.mxu0
        %v3321 = vpop.f32.mrf.mxu0
        %3322 = vdwg.mxu0
        %v3323 = vadd.f32 %v3212, %v3318
        %v3324 = vld [vmem:[%s6] sm:$0x1]
        %v3326 = vlaneseq
        %v3327 = vshrl.u32 %v3326, 7
        %v3328 = vsub.s32 0, %v3327
        %v3329 = vrot.slane %v3324, %v3328
        %v3331 = vadd.f32 %v3323, %v3329
        %v3332 = vmax.f32 %v3331, 0.0
        %v3333 = vpack.c.bf16 %v3332, %v3332
        %v3334 = vld [vmem:[%s7] sm:$0xf]
        %v3335 = vld [vmem:[%s7 + $0x4] sm:$0xf]
        %v3336 = vld [vmem:[%s7 + $0x8] sm:$0xf]
        %v3337 = vld [vmem:[%s7 + $0xc] sm:$0xf]
        %v3338 = vld [vmem:[%s7 + $0x10] sm:$0xf]
        %v3339 = vld [vmem:[%s7 + $0x14] sm:$0xf]
        %v3340 = vld [vmem:[%s7 + $0x18] sm:$0xf]
        %v3341 = vld [vmem:[%s7 + $0x1c] sm:$0xf]
        %v3342 = vld [vmem:[%s7 + $0x20] sm:$0xf]
        %v3343 = vld [vmem:[%s7 + $0x24] sm:$0xf]
        %v3344 = vld [vmem:[%s7 + $0x28] sm:$0xf]
        %v3345 = vld [vmem:[%s7 + $0x2c] sm:$0xf]
        %v3346 = vld [vmem:[%s7 + $0x30] sm:$0xf]
        %v3347 = vld [vmem:[%s7 + $0x34] sm:$0xf]
        %v3348 = vld [vmem:[%s7 + $0x38] sm:$0xf]
        %v3349 = vld [vmem:[%s7 + $0x3c] sm:$0xf]
        %v3350 = vld [vmem:[%s8] sm:$0x1]
        %v3352 = vlaneseq
        %v3353 = vshrl.u32 %v3352, 7
        %v3354 = vsub.s32 0, %v3353
        %v3355 = vrot.slane %v3350, %v3354
        %v3373 = vunpack.c.l.b16 %v3334
        %v3374 = vunpack.c.l.b16 %v3335
        %v3375 = vunpack.c.l.b16 %v3336
        %v3376 = vunpack.c.l.b16 %v3337
        %v3377 = vunpack.c.l.b16 %v3338
        %v3378 = vunpack.c.l.b16 %v3339
        %v3379 = vunpack.c.l.b16 %v3340
        %v3380 = vunpack.c.l.b16 %v3341
        %v3381 = vunpack.c.l.b16 %v3342
        %v3382 = vunpack.c.l.b16 %v3343
        %v3383 = vunpack.c.l.b16 %v3344
        %v3384 = vunpack.c.l.b16 %v3345
        %v3385 = vunpack.c.l.b16 %v3346
        %v3386 = vunpack.c.l.b16 %v3347
        %v3387 = vunpack.c.l.b16 %v3348
        %v3388 = vunpack.c.l.b16 %v3349
        %v3389 = vpack.c.b16 %v3374, %v3373
        %v3390 = vpack.c.b16 %v3376, %v3375
        %v3391 = vpack.c.b16 %v3378, %v3377
        %v3392 = vpack.c.b16 %v3380, %v3379
        %v3393 = vpack.c.b16 %v3382, %v3381
        %v3394 = vpack.c.b16 %v3384, %v3383
        %v3395 = vpack.c.b16 %v3386, %v3385
        %v3396 = vpack.c.b16 %v3388, %v3387
        %3405 = vmatprep.subr.bf16.mxu0 0
        %3406 = vmatpush1.bf16.msra.mxu0 %v3396
        %3407 = vmatprep.subr.bf16.mxu0 0
        %3408 = vmatpush1.bf16.msra.mxu0 %v3395
        %3409 = vmatprep.subr.bf16.mxu0 0
        %3410 = vmatpush1.bf16.msra.mxu0 %v3394
        %3411 = vmatprep.subr.bf16.mxu0 0
        %3412 = vmatpush1.bf16.msra.mxu0 %v3393
        %3413 = vmatprep.subr.bf16.mxu0 0
        %3414 = vmatpush1.bf16.msra.mxu0 %v3392
        %3415 = vmatprep.subr.bf16.mxu0 0
        %3416 = vmatpush1.bf16.msra.mxu0 %v3391
        %3417 = vmatprep.subr.bf16.mxu0 0
        %3418 = vmatpush1.bf16.msra.mxu0 %v3390
        %3419 = vmatprep.subr.bf16.mxu0 0
        %3420 = vmatpush1.bf16.msra.mxu0 %v3389
        %3421 = vmatprep.subr.bf16.mxu0 0
        %3422 = vmatpush2.bf16.msra.mxu0 0
        %3423 = vmatprep.subr.bf16.mxu0 0
        %3424 = vmatpush2.bf16.msra.mxu0 0
        %3425 = vmatprep.subr.bf16.mxu0 0
        %3426 = vmatpush2.bf16.msra.mxu0 0
        %3427 = vmatprep.subr.bf16.mxu0 0
        %3428 = vmatpush2.bf16.msra.mxu0 0
        %3429 = vmatprep.subr.bf16.mxu0 0
        %3430 = vmatpush2.bf16.msra.mxu0 0
        %3431 = vmatprep.subr.bf16.mxu0 0
        %3432 = vmatpush2.bf16.msra.mxu0 0
        %3433 = vmatprep.subr.bf16.mxu0 0
        %3434 = vmatpush2.bf16.msra.mxu0 0
        %3435 = vmatprep.subr.bf16.mxu0 0
        %3436 = vmatpush2.bf16.msra.mxu0 0
        %3437 = vmatprep.mubr.bf16.mxu0 0
        %3438 = vmatmul.mubr.bf16.gmra.mxu0 %v3333
        %v3439 = vpop.f32.mrf.mxu0
        %v3440 = vadd.f32 %v3355, %v3439
        %v3441 = vpop.f32.mrf.mxu0
        %v3442 = vpop.f32.mrf.mxu0
        %v3443 = vpop.f32.mrf.mxu0
        %3444 = vdwg.mxu0
        %v3445 = vmax.f32 %v3440, 0.0
        %v3446 = vpack.c.bf16 %v3445, %v3445
        %v3447 = vld [vmem:[%s9] sm:$0xf]
        %v3448 = vld [vmem:[%s9 + $0x4] sm:$0xf]
        %v3449 = vld [vmem:[%s9 + $0x8] sm:$0xf]
        %v3450 = vld [vmem:[%s9 + $0xc] sm:$0xf]
        %v3451 = vld [vmem:[%s9 + $0x10] sm:$0xf]
        %v3452 = vld [vmem:[%s9 + $0x14] sm:$0xf]
        %v3453 = vld [vmem:[%s9 + $0x18] sm:$0xf]
        %v3454 = vld [vmem:[%s9 + $0x1c] sm:$0xf]
        %v3455 = vld [vmem:[%s9 + $0x20] sm:$0xf]
        %v3456 = vld [vmem:[%s9 + $0x24] sm:$0xf]
        %v3457 = vld [vmem:[%s9 + $0x28] sm:$0xf]
        %v3458 = vld [vmem:[%s9 + $0x2c] sm:$0xf]
        %v3459 = vld [vmem:[%s9 + $0x30] sm:$0xf]
        %v3460 = vld [vmem:[%s9 + $0x34] sm:$0xf]
        %v3461 = vld [vmem:[%s9 + $0x38] sm:$0xf]
        %v3462 = vld [vmem:[%s9 + $0x3c] sm:$0xf]
        %v3463 = vld [vmem:[%s10] sm:$0x1]
        %v3465 = vlaneseq
        %v3466 = vshrl.u32 %v3465, 7
        %v3467 = vsub.s32 0, %v3466
        %v3468 = vrot.slane %v3463, %v3467
        %v3486 = vunpack.c.l.b16 %v3447
        %v3487 = vunpack.c.l.b16 %v3448
        %v3488 = vunpack.c.l.b16 %v3449
        %v3489 = vunpack.c.l.b16 %v3450
        %v3490 = vunpack.c.l.b16 %v3451
        %v3491 = vunpack.c.l.b16 %v3452
        %v3492 = vunpack.c.l.b16 %v3453
        %v3493 = vunpack.c.l.b16 %v3454
        %v3494 = vunpack.c.l.b16 %v3455
        %v3495 = vunpack.c.l.b16 %v3456
        %v3496 = vunpack.c.l.b16 %v3457
        %v3497 = vunpack.c.l.b16 %v3458
        %v3498 = vunpack.c.l.b16 %v3459
        %v3499 = vunpack.c.l.b16 %v3460
        %v3500 = vunpack.c.l.b16 %v3461
        %v3501 = vunpack.c.l.b16 %v3462
        %v3502 = vpack.c.b16 %v3487, %v3486
        %v3503 = vpack.c.b16 %v3489, %v3488
        %v3504 = vpack.c.b16 %v3491, %v3490
        %v3505 = vpack.c.b16 %v3493, %v3492
        %v3506 = vpack.c.b16 %v3495, %v3494
        %v3507 = vpack.c.b16 %v3497, %v3496
        %v3508 = vpack.c.b16 %v3499, %v3498
        %v3509 = vpack.c.b16 %v3501, %v3500
        %3518 = vmatprep.subr.bf16.mxu0 0
        %3519 = vmatpush1.bf16.msra.mxu0 %v3509
        %3520 = vmatprep.subr.bf16.mxu0 0
        %3521 = vmatpush1.bf16.msra.mxu0 %v3508
        %3522 = vmatprep.subr.bf16.mxu0 0
        %3523 = vmatpush1.bf16.msra.mxu0 %v3507
        %3524 = vmatprep.subr.bf16.mxu0 0
        %3525 = vmatpush1.bf16.msra.mxu0 %v3506
        %3526 = vmatprep.subr.bf16.mxu0 0
        %3527 = vmatpush1.bf16.msra.mxu0 %v3505
        %3528 = vmatprep.subr.bf16.mxu0 0
        %3529 = vmatpush1.bf16.msra.mxu0 %v3504
        %3530 = vmatprep.subr.bf16.mxu0 0
        %3531 = vmatpush1.bf16.msra.mxu0 %v3503
        %3532 = vmatprep.subr.bf16.mxu0 0
        %3533 = vmatpush1.bf16.msra.mxu0 %v3502
        %3534 = vmatprep.subr.bf16.mxu0 0
        %3535 = vmatpush2.bf16.msra.mxu0 0
        %3536 = vmatprep.subr.bf16.mxu0 0
        %3537 = vmatpush2.bf16.msra.mxu0 0
        %3538 = vmatprep.subr.bf16.mxu0 0
        %3539 = vmatpush2.bf16.msra.mxu0 0
        %3540 = vmatprep.subr.bf16.mxu0 0
        %3541 = vmatpush2.bf16.msra.mxu0 0
        %3542 = vmatprep.subr.bf16.mxu0 0
        %3543 = vmatpush2.bf16.msra.mxu0 0
        %3544 = vmatprep.subr.bf16.mxu0 0
        %3545 = vmatpush2.bf16.msra.mxu0 0
        %3546 = vmatprep.subr.bf16.mxu0 0
        %3547 = vmatpush2.bf16.msra.mxu0 0
        %3548 = vmatprep.subr.bf16.mxu0 0
        %3549 = vmatpush2.bf16.msra.mxu0 0
        %3550 = vmatprep.mubr.bf16.mxu0 0
        %3551 = vmatmul.mubr.bf16.gmra.mxu0 %v3446
        %v3552 = vpop.f32.mrf.mxu0
        %v3553 = vadd.f32 %v3468, %v3552
        %v3554 = vpop.f32.mrf.mxu0
        %v3555 = vpop.f32.mrf.mxu0
        %v3556 = vpop.f32.mrf.mxu0
        %3557 = vdwg.mxu0
        %3558 = vst [vmem:[%s431] sm:$0xff] %v3553
        %p3559 = scmp.lt.s32.totalorder %s22, 1
        %s3560 = scalar_select %p3559, %s22, 1
        %s3561 = smul.addr %s3560, 8
        %s3562 = scalar_lea.vmem %s11, %s3561
        // Predicated region
        $region103: #{mynet_forward.1} parent=97 // pred_check
          %p3563 = pneg %p276
        $region104: #{mynet_forward.1} parent=97 // pred_check_branch
          %3565 = sbr.rel (%p3563) target = $region106
        $region105: #{mynet_forward.1} parent=97 // pred_region
          _
        $region106: #{mynet_forward.1} parent=97 // pred_fallthru
          _
      $region98: #{mynet_forward.1} parent=5 // pred_fallthru
        _
      %p3566 = scmp.le.s32.totalorder 2, %s17
      // Predicated region
      $region107: #{mynet_forward.1} parent=5 // pred_check
        %p3567 = pneg %p3566
      $region108: #{mynet_forward.1} parent=5 // pred_check_branch
        %3569 = sbr.rel (%p3567) target = $region110
      $region109: #{mynet_forward.1} parent=5 // pred_region
        %s3570 = ssub.s32 %s17, 2
        // Predicated region
        $region111: #{mynet_forward.1} parent=109 // pred_check
          %p3571 = pneg %p282
        $region112: #{mynet_forward.1} parent=109 // pred_check_branch
          %3573 = sbr.rel (%p3571) target = $region114
        $region113: #{mynet_forward.1} parent=109 // pred_region
          %p3574 = scmp.lt.s32.totalorder %s23, 1
          %s3575 = scalar_select %p3574, %s23, 1
          %s3576 = smul.addr %s3575, 8
          %s3577 = scalar_lea.vmem %s11, %s3576
        $region114: #{mynet_forward.1} parent=109 // pred_fallthru
          _
      $region110: #{mynet_forward.1} parent=5 // pred_fallthru
        _
    $region6: #{mynet_forward.1} parent=1 // loop_footer
      %s21 = sadd.s32 1, %s17
    $region7: #{mynet_forward.1} parent=1 // loop_footer_branch
      %16 = sbr.rel target = $region3
    $region8: #{mynet_forward.1} parent=1 // loop_exit
      _

</llo_original>
